<compile_context>
chip_gen: v7x
topology: tpu7x:2x2x1
jax: 0.10.0
libtpu: 0.0.40
codegen_flags: <defaults>
</compile_context>

<pallas_src>
import functools

import jax
import jax.numpy as jnp
from jax import lax
from jax.experimental import pallas as pl
from jax.experimental.pallas import tpu as pltpu

_EPS = 1e-5
_LANE = 128


# ----------------------------- Pallas kernel ------------------------------

def _encoder_kernel(taps_ref, w1_ref, g1_ref, b1_ref, w2_ref, g2_ref, b2_ref,
                    o_ref, h0_ref, h1_ref, *, N, Ho, Wo, Cin, CP):
    """Fused maxpool -> (conv3x3 + BN + ReLU) x 2.

    taps_ref : (4, N*Ho, Wo, Cin)  four taps of each 2x2 pooling window
    w1_ref   : (9, Cin, CP)        conv1 weights, tap index = ky*3 + kx
    w2_ref   : (9, CP, CP)         conv2 weights (channel-padded)
    g*/b*    : (1, CP)             BN gamma / beta (channel-padded with zeros)
    o_ref    : (N*Ho*Wo, CP)       lane-dense output slab
    h0_ref   : (N, Ho+2, Wo+2, Cin) scratch: zero-padded pooled activation
    h1_ref   : (N, Ho+2, Wo+2, CP)  scratch: zero-padded conv1 activation
    """
    M = N * Ho * Wo
    inv_m = 1.0 / M

    def bn_relu(y, gamma, beta):
        # Batch statistics over all N*Ho*Wo rows, biased variance, one
        # reduction pass; normalize as a single mul+add (scale/shift form).
        m1 = jnp.sum(y, axis=0, keepdims=True) * inv_m
        m2 = jnp.sum(y * y, axis=0, keepdims=True) * inv_m
        var = m2 - m1 * m1
        scale = gamma * lax.rsqrt(var + _EPS)
        shift = beta - m1 * scale
        return jnp.maximum(y * scale + shift, 0.0)

    def conv3x3(src_ref, w_ref, cin):
        # src_ref is spatially zero-padded (pad=1); accumulate 9 shifted
        # matmuls on the MXU (default precision, f32 accumulation).
        acc = jnp.zeros((M, CP), jnp.float32)
        for tap in range(9):
            ky, kx = tap // 3, tap % 3
            xt = src_ref[:, ky:ky + Ho, kx:kx + Wo, :].reshape(M, cin)
            acc = acc + jnp.dot(xt, w_ref[tap],
                                preferred_element_type=jnp.float32)
        return acc

    # ---- MaxPool2d(kernel=2, stride=2): reduce the four window taps ----
    t = taps_ref[...]
    pooled = jnp.maximum(jnp.maximum(t[0], t[1]), jnp.maximum(t[2], t[3]))

    # Zero-padded (padding=1) copy of the pooled activation for conv1.
    h0_ref[...] = jnp.zeros_like(h0_ref)
    h0_ref[:, 1:1 + Ho, 1:1 + Wo, :] = pooled.reshape(N, Ho, Wo, Cin)

    # ---- conv1 + BN1 + ReLU (conv bias omitted: cancelled by BN mean) ----
    h1 = bn_relu(conv3x3(h0_ref, w1_ref, Cin), g1_ref[...], b1_ref[...])

    # Keep the intermediate resident in VMEM, spatially padded for conv2.
    h1_ref[...] = jnp.zeros_like(h1_ref)
    h1_ref[:, 1:1 + Ho, 1:1 + Wo, :] = h1.reshape(N, Ho, Wo, CP)

    # ---- conv2 + BN2 + ReLU -> dense (M, CP) store ----
    o_ref[...] = bn_relu(conv3x3(h1_ref, w2_ref, CP), g2_ref[...], b2_ref[...])


# ------------------------------ JAX wrapper --------------------------------

def encoder_forward(x_nchw, params):
    """Encoder.forward: maxpool -> conv/bn/relu x2. NCHW in / NCHW out."""
    N, Cin, H, W = x_nchw.shape
    Ho, Wo = H // 2, W // 2
    M = N * Ho * Wo
    Cmid = params["w1"].shape[-1]
    Cout = params["w2"].shape[-1]
    CP = ((max(Cmid, Cout) + _LANE - 1) // _LANE) * _LANE   # lane-dense width

    # Layout glue (XLA): NCHW -> NHWC and gather the four 2x2-window taps.
    xn = jnp.transpose(x_nchw, (0, 2, 3, 1))
    taps = jnp.stack([xn[:, 0::2, 0::2, :], xn[:, 0::2, 1::2, :],
                      xn[:, 1::2, 0::2, :], xn[:, 1::2, 1::2, :]],
                     axis=0).reshape(4, N * Ho, Wo, Cin)

    def pad_last(a, width):
        return jnp.pad(a, [(0, 0)] * (a.ndim - 1) + [(0, width - a.shape[-1])])

    # Weights as (tap, cin, cout) with output (and conv2 input) channels
    # zero-padded to CP so matmuls and the HBM store are lane-dense.
    w1 = pad_last(params["w1"].reshape(9, Cin, Cmid), CP)            # (9,Cin,CP)
    w2 = jnp.pad(params["w2"].reshape(9, Cmid, Cout),
                 ((0, 0), (0, CP - Cmid), (0, CP - Cout)))           # (9,CP,CP)
    g1 = pad_last(params["g1"].reshape(1, Cmid), CP)
    b1 = pad_last(params["beta1"].reshape(1, Cmid), CP)
    g2 = pad_last(params["g2"].reshape(1, Cout), CP)
    b2 = pad_last(params["beta2"].reshape(1, Cout), CP)

    kernel = functools.partial(_encoder_kernel, N=N, Ho=Ho, Wo=Wo,
                               Cin=Cin, CP=CP)

    out = pl.pallas_call(
        kernel,
        grid=(1,),
        in_specs=[
            pl.BlockSpec((4, N * Ho, Wo, Cin), lambda i: (0, 0, 0, 0)),
            pl.BlockSpec((9, Cin, CP), lambda i: (0, 0, 0)),
            pl.BlockSpec((1, CP), lambda i: (0, 0)),
            pl.BlockSpec((1, CP), lambda i: (0, 0)),
            pl.BlockSpec((9, CP, CP), lambda i: (0, 0, 0)),
            pl.BlockSpec((1, CP), lambda i: (0, 0)),
            pl.BlockSpec((1, CP), lambda i: (0, 0)),
        ],
        out_specs=pl.BlockSpec((M, CP), lambda i: (0, 0)),
        out_shape=jax.ShapeDtypeStruct((M, CP), jnp.float32),
        scratch_shapes=[
            pltpu.VMEM((N, Ho + 2, Wo + 2, Cin), jnp.float32),
            pltpu.VMEM((N, Ho + 2, Wo + 2, CP), jnp.float32),
        ],
        compiler_params=pltpu.CompilerParams(
            dimension_semantics=("arbitrary",)),
    )(taps, w1, g1, b1, w2, g2, b2)

    # Slice off channel padding, restore NCHW.
    y = out[:, :Cout].reshape(N, Ho, Wo, Cout)
    return jnp.transpose(y, (0, 3, 1, 2))


# ----------------------------- parameter init ------------------------------

def init_params(key, in_channels, out_channels):
    # mid_channels defaults to out_channels in DoubleConvHelper.
    mid = out_channels
    ks = jax.random.split(key, 8)

    def conv_w(k, ci, co):
        bound = 1.0 / jnp.sqrt(9.0 * ci)       # PyTorch Conv2d default range
        # Stored HWIO (3,3,Cin,Cout); PyTorch OIHW maps via transpose(2,3,1,0).
        return jax.random.uniform(k, (3, 3, ci, co), jnp.float32, -bound, bound)

    def conv_b(k, ci, co):
        bound = 1.0 / jnp.sqrt(9.0 * ci)
        return jax.random.uniform(k, (co,), jnp.float32, -bound, bound)

    return {
        "w1": conv_w(ks[0], in_channels, mid),
        "b1": conv_b(ks[1], in_channels, mid),
        "g1": 1.0 + 0.1 * jax.random.normal(ks[2], (mid,), jnp.float32),
        "beta1": 0.1 * jax.random.normal(ks[3], (mid,), jnp.float32),
        "w2": conv_w(ks[4], mid, out_channels),
        "b2": conv_b(ks[5], mid, out_channels),
        "g2": 1.0 + 0.1 * jax.random.normal(ks[6], (out_channels,), jnp.float32),
        "beta2": 0.1 * jax.random.normal(ks[7], (out_channels,), jnp.float32),
    }


# ------------------------- pure-JAX reference check ------------------------

def reference_forward(x, params):
    # Faithful to the PyTorch module, including the conv biases (which the
    # Pallas kernel drops because BN's mean subtraction cancels them).
    p = lax.reduce_window(x, -jnp.inf, lax.max, (1, 1, 2, 2), (1, 1, 2, 2),
                          "VALID")

    def block(h, w_hwio, b, g, be):
        w_oihw = jnp.transpose(w_hwio, (3, 2, 0, 1))
        y = lax.conv_general_dilated(
            h, w_oihw, (1, 1), ((1, 1), (1, 1)),
            dimension_numbers=("NCHW", "OIHW", "NCHW"),
            precision=lax.Precision.HIGHEST)
        y = y + b.reshape(1, -1, 1, 1)
        mean = jnp.mean(y, axis=(0, 2, 3), keepdims=True)
        var = jnp.mean((y - mean) ** 2, axis=(0, 2, 3), keepdims=True)
        y = (y - mean) * lax.rsqrt(var + _EPS) * g.reshape(1, -1, 1, 1) \
            + be.reshape(1, -1, 1, 1)
        return jnp.maximum(y, 0.0)

    h = block(p, params["w1"], params["b1"], params["g1"], params["beta1"])
    h = block(h, params["w2"], params["b2"], params["g2"], params["beta2"])
    return h


# ----------------------------------- main -----------------------------------

if __name__ == "__main__":
    key = jax.random.PRNGKey(0)
    k_x, k_p = jax.random.split(key)

    N, Cin, H, W = 2, 4, 16, 16
    Cout = 8
    x = jax.random.normal(k_x, (N, Cin, H, W), jnp.float32)
    params = init_params(k_p, Cin, Cout)

    out = jax.block_until_ready(jax.jit(encoder_forward)(x, params))
    ref = jax.block_until_ready(reference_forward(x, params))

    assert out.shape == (N, Cout, H // 2, W // 2), out.shape
    # The kernel uses default MXU precision (bf16-level products, f32
    # accumulation) per the perf review, while the reference runs at HIGHEST
    # precision, so allow a correspondingly sized tolerance.
    assert jnp.allclose(out, ref, atol=2e-2, rtol=2e-2), (
        float(jnp.max(jnp.abs(out - ref))))

    print("KERNEL_OK")
</pallas_src>

<mosaic_0001>
module attributes {stable_mosaic.version = 11 : i64} {
  func.func @_encoder_kernel(%arg0: i32, %arg1: memref<4x16x8x4xf32, #tpu.memory_space<vmem>>, %arg2: memref<9x4x128xf32, #tpu.memory_space<vmem>>, %arg3: memref<1x128xf32, #tpu.memory_space<vmem>>, %arg4: memref<1x128xf32, #tpu.memory_space<vmem>>, %arg5: memref<9x128x128xf32, #tpu.memory_space<vmem>>, %arg6: memref<1x128xf32, #tpu.memory_space<vmem>>, %arg7: memref<1x128xf32, #tpu.memory_space<vmem>>, %arg8: memref<128x128xf32, #tpu.memory_space<vmem>>, %arg9: memref<2x10x10x4xf32, #tpu.memory_space<vmem>>, %arg10: memref<2x10x10x128xf32, #tpu.memory_space<vmem>>) attributes {dimension_semantics = [#tpu.dimension_semantics<arbitrary>], iteration_bounds = array<i64: 1>, scalar_prefetch = 0 : i64, scratch_operands = 2 : i64, tpu.core_type = #tpu.core_type<tc>, window_params = [{pipeline_mode = #tpu.pipeline_mode<synchronous>, transform_indices = @transform_0, window_bounds = array<i64: 4, 16, 8, 4>}, {pipeline_mode = #tpu.pipeline_mode<synchronous>, transform_indices = @transform_1, window_bounds = array<i64: 9, 4, 128>}, {pipeline_mode = #tpu.pipeline_mode<synchronous>, transform_indices = @transform_2, window_bounds = array<i64: 1, 128>}, {pipeline_mode = #tpu.pipeline_mode<synchronous>, transform_indices = @transform_3, window_bounds = array<i64: 1, 128>}, {pipeline_mode = #tpu.pipeline_mode<synchronous>, transform_indices = @transform_4, window_bounds = array<i64: 9, 128, 128>}, {pipeline_mode = #tpu.pipeline_mode<synchronous>, transform_indices = @transform_5, window_bounds = array<i64: 1, 128>}, {pipeline_mode = #tpu.pipeline_mode<synchronous>, transform_indices = @transform_6, window_bounds = array<i64: 1, 128>}, {pipeline_mode = #tpu.pipeline_mode<synchronous>, transform_indices = @transform_7, window_bounds = array<i64: 128, 128>}]} {
    %c0 = arith.constant 0 : index
    %c0_0 = arith.constant 0 : index
    %c0_1 = arith.constant 0 : index
    %c0_2 = arith.constant 0 : index
    %0 = vector.load %arg1[%c0, %c0_0, %c0_1, %c0_2] : memref<4x16x8x4xf32, #tpu.memory_space<vmem>>, vector<4x16x8x4xf32>
    %1 = vector.extract_strided_slice %0 {offsets = [0, 0, 0, 0], sizes = [1, 16, 8, 4], strides = [1, 1, 1, 1]} : vector<4x16x8x4xf32> to vector<1x16x8x4xf32>
    %2 = vector.shape_cast %1 : vector<1x16x8x4xf32> to vector<16x8x4xf32>
    %3 = vector.extract_strided_slice %0 {offsets = [1, 0, 0, 0], sizes = [1, 16, 8, 4], strides = [1, 1, 1, 1]} : vector<4x16x8x4xf32> to vector<1x16x8x4xf32>
    %4 = vector.shape_cast %3 : vector<1x16x8x4xf32> to vector<16x8x4xf32>
    %5 = arith.maximumf %2, %4 : vector<16x8x4xf32>
    %6 = vector.extract_strided_slice %0 {offsets = [2, 0, 0, 0], sizes = [1, 16, 8, 4], strides = [1, 1, 1, 1]} : vector<4x16x8x4xf32> to vector<1x16x8x4xf32>
    %7 = vector.shape_cast %6 : vector<1x16x8x4xf32> to vector<16x8x4xf32>
    %8 = vector.extract_strided_slice %0 {offsets = [3, 0, 0, 0], sizes = [1, 16, 8, 4], strides = [1, 1, 1, 1]} : vector<4x16x8x4xf32> to vector<1x16x8x4xf32>
    %9 = vector.shape_cast %8 : vector<1x16x8x4xf32> to vector<16x8x4xf32>
    %10 = arith.maximumf %7, %9 : vector<16x8x4xf32>
    %11 = arith.maximumf %5, %10 : vector<16x8x4xf32>
    %cst = arith.constant 0.000000e+00 : f32
    %12 = vector.broadcast %cst : f32 to vector<2x10x10x4xf32>
    %c0_3 = arith.constant 0 : index
    %c0_4 = arith.constant 0 : index
    %c0_5 = arith.constant 0 : index
    %c0_6 = arith.constant 0 : index
    %13 = vector.load %arg9[%c0_3, %c0_4, %c0_5, %c0_6] : memref<2x10x10x4xf32, #tpu.memory_space<vmem>>, vector<2x10x10x4xf32>
    tpu.vector_store %arg9[%c0_3, %c0_4, %c0_5, %c0_6], %12 {strides = array<i32>} : memref<2x10x10x4xf32, #tpu.memory_space<vmem>>, vector<2x10x10x4xf32>,
    %14 = vector.shape_cast %11 : vector<16x8x4xf32> to vector<2x8x8x4xf32>
    %c0_7 = arith.constant 0 : index
    %c1 = arith.constant 1 : index
    %c1_8 = arith.constant 1 : index
    %c0_9 = arith.constant 0 : index
    %15 = vector.load %arg9[%c0_7, %c1, %c1_8, %c0_9] : memref<2x10x10x4xf32, #tpu.memory_space<vmem>>, vector<2x8x8x4xf32>
    tpu.vector_store %arg9[%c0_7, %c1, %c1_8, %c0_9], %14 {strides = array<i32>} : memref<2x10x10x4xf32, #tpu.memory_space<vmem>>, vector<2x8x8x4xf32>,
    %cst_10 = arith.constant 0.000000e+00 : f32
    %16 = vector.broadcast %cst_10 : f32 to vector<128x128xf32>
    %c0_11 = arith.constant 0 : index
    %c0_12 = arith.constant 0 : index
    %c0_13 = arith.constant 0 : index
    %c0_14 = arith.constant 0 : index
    %17 = vector.load %arg9[%c0_11, %c0_12, %c0_13, %c0_14] : memref<2x10x10x4xf32, #tpu.memory_space<vmem>>, vector<2x8x8x4xf32>
    %18 = vector.shape_cast %17 : vector<2x8x8x4xf32> to vector<128x4xf32>
    %c0_15 = arith.constant 0 : index
    %c0_16 = arith.constant 0 : index
    %c0_17 = arith.constant 0 : index
    %19 = vector.load %arg2[%c0_15, %c0_16, %c0_17] : memref<9x4x128xf32, #tpu.memory_space<vmem>>, vector<1x4x128xf32>
    %20 = vector.shape_cast %19 : vector<1x4x128xf32> to vector<4x128xf32>
    %cst_18 = arith.constant dense<0.000000e+00> : vector<128x128xf32>
    %21 = tpu.matmul %18, %20, %cst_18 {dimension_numbers = #tpu.dot_dimension_numbers<[1], [0], [0], [1], [0, 0, 1, 1], [], []>} : vector<128x4xf32>, vector<4x128xf32>, vector<128x128xf32> -> vector<128x128xf32>
    %22 = arith.addf %16, %21 : vector<128x128xf32>
    %c0_19 = arith.constant 0 : index
    %c0_20 = arith.constant 0 : index
    %c1_21 = arith.constant 1 : index
    %c0_22 = arith.constant 0 : index
    %23 = vector.load %arg9[%c0_19, %c0_20, %c1_21, %c0_22] : memref<2x10x10x4xf32, #tpu.memory_space<vmem>>, vector<2x8x8x4xf32>
    %24 = vector.shape_cast %23 : vector<2x8x8x4xf32> to vector<128x4xf32>
    %c1_23 = arith.constant 1 : index
    %c0_24 = arith.constant 0 : index
    %c0_25 = arith.constant 0 : index
    %25 = vector.load %arg2[%c1_23, %c0_24, %c0_25] : memref<9x4x128xf32, #tpu.memory_space<vmem>>, vector<1x4x128xf32>
    %26 = vector.shape_cast %25 : vector<1x4x128xf32> to vector<4x128xf32>
    %cst_26 = arith.constant dense<0.000000e+00> : vector<128x128xf32>
    %27 = tpu.matmul %24, %26, %cst_26 {dimension_numbers = #tpu.dot_dimension_numbers<[1], [0], [0], [1], [0, 0, 1, 1], [], []>} : vector<128x4xf32>, vector<4x128xf32>, vector<128x128xf32> -> vector<128x128xf32>
    %28 = arith.addf %22, %27 : vector<128x128xf32>
    %c0_27 = arith.constant 0 : index
    %c0_28 = arith.constant 0 : index
    %c2 = arith.constant 2 : index
    %c0_29 = arith.constant 0 : index
    %29 = vector.load %arg9[%c0_27, %c0_28, %c2, %c0_29] : memref<2x10x10x4xf32, #tpu.memory_space<vmem>>, vector<2x8x8x4xf32>
    %30 = vector.shape_cast %29 : vector<2x8x8x4xf32> to vector<128x4xf32>
    %c2_30 = arith.constant 2 : index
    %c0_31 = arith.constant 0 : index
    %c0_32 = arith.constant 0 : index
    %31 = vector.load %arg2[%c2_30, %c0_31, %c0_32] : memref<9x4x128xf32, #tpu.memory_space<vmem>>, vector<1x4x128xf32>
    %32 = vector.shape_cast %31 : vector<1x4x128xf32> to vector<4x128xf32>
    %cst_33 = arith.constant dense<0.000000e+00> : vector<128x128xf32>
    %33 = tpu.matmul %30, %32, %cst_33 {dimension_numbers = #tpu.dot_dimension_numbers<[1], [0], [0], [1], [0, 0, 1, 1], [], []>} : vector<128x4xf32>, vector<4x128xf32>, vector<128x128xf32> -> vector<128x128xf32>
    %34 = arith.addf %28, %33 : vector<128x128xf32>
    %c0_34 = arith.constant 0 : index
    %c1_35 = arith.constant 1 : index
    %c0_36 = arith.constant 0 : index
    %c0_37 = arith.constant 0 : index
    %35 = vector.load %arg9[%c0_34, %c1_35, %c0_36, %c0_37] : memref<2x10x10x4xf32, #tpu.memory_space<vmem>>, vector<2x8x8x4xf32>
    %36 = vector.shape_cast %35 : vector<2x8x8x4xf32> to vector<128x4xf32>
    %c3 = arith.constant 3 : index
    %c0_38 = arith.constant 0 : index
    %c0_39 = arith.constant 0 : index
    %37 = vector.load %arg2[%c3, %c0_38, %c0_39] : memref<9x4x128xf32, #tpu.memory_space<vmem>>, vector<1x4x128xf32>
    %38 = vector.shape_cast %37 : vector<1x4x128xf32> to vector<4x128xf32>
    %cst_40 = arith.constant dense<0.000000e+00> : vector<128x128xf32>
    %39 = tpu.matmul %36, %38, %cst_40 {dimension_numbers = #tpu.dot_dimension_numbers<[1], [0], [0], [1], [0, 0, 1, 1], [], []>} : vector<128x4xf32>, vector<4x128xf32>, vector<128x128xf32> -> vector<128x128xf32>
    %40 = arith.addf %34, %39 : vector<128x128xf32>
    %c0_41 = arith.constant 0 : index
    %c1_42 = arith.constant 1 : index
    %c1_43 = arith.constant 1 : index
    %c0_44 = arith.constant 0 : index
    %41 = vector.load %arg9[%c0_41, %c1_42, %c1_43, %c0_44] : memref<2x10x10x4xf32, #tpu.memory_space<vmem>>, vector<2x8x8x4xf32>
    %42 = vector.shape_cast %41 : vector<2x8x8x4xf32> to vector<128x4xf32>
    %c4 = arith.constant 4 : index
    %c0_45 = arith.constant 0 : index
    %c0_46 = arith.constant 0 : index
    %43 = vector.load %arg2[%c4, %c0_45, %c0_46] : memref<9x4x128xf32, #tpu.memory_space<vmem>>, vector<1x4x128xf32>
    %44 = vector.shape_cast %43 : vector<1x4x128xf32> to vector<4x128xf32>
    %cst_47 = arith.constant dense<0.000000e+00> : vector<128x128xf32>
    %45 = tpu.matmul %42, %44, %cst_47 {dimension_numbers = #tpu.dot_dimension_numbers<[1], [0], [0], [1], [0, 0, 1, 1], [], []>} : vector<128x4xf32>, vector<4x128xf32>, vector<128x128xf32> -> vector<128x128xf32>
    %46 = arith.addf %40, %45 : vector<128x128xf32>
    %c0_48 = arith.constant 0 : index
    %c1_49 = arith.constant 1 : index
    %c2_50 = arith.constant 2 : index
    %c0_51 = arith.constant 0 : index
    %47 = vector.load %arg9[%c0_48, %c1_49, %c2_50, %c0_51] : memref<2x10x10x4xf32, #tpu.memory_space<vmem>>, vector<2x8x8x4xf32>
    %48 = vector.shape_cast %47 : vector<2x8x8x4xf32> to vector<128x4xf32>
    %c5 = arith.constant 5 : index
    %c0_52 = arith.constant 0 : index
    %c0_53 = arith.constant 0 : index
    %49 = vector.load %arg2[%c5, %c0_52, %c0_53] : memref<9x4x128xf32, #tpu.memory_space<vmem>>, vector<1x4x128xf32>
    %50 = vector.shape_cast %49 : vector<1x4x128xf32> to vector<4x128xf32>
    %cst_54 = arith.constant dense<0.000000e+00> : vector<128x128xf32>
    %51 = tpu.matmul %48, %50, %cst_54 {dimension_numbers = #tpu.dot_dimension_numbers<[1], [0], [0], [1], [0, 0, 1, 1], [], []>} : vector<128x4xf32>, vector<4x128xf32>, vector<128x128xf32> -> vector<128x128xf32>
    %52 = arith.addf %46, %51 : vector<128x128xf32>
    %c0_55 = arith.constant 0 : index
    %c2_56 = arith.constant 2 : index
    %c0_57 = arith.constant 0 : index
    %c0_58 = arith.constant 0 : index
    %53 = vector.load %arg9[%c0_55, %c2_56, %c0_57, %c0_58] : memref<2x10x10x4xf32, #tpu.memory_space<vmem>>, vector<2x8x8x4xf32>
    %54 = vector.shape_cast %53 : vector<2x8x8x4xf32> to vector<128x4xf32>
    %c6 = arith.constant 6 : index
    %c0_59 = arith.constant 0 : index
    %c0_60 = arith.constant 0 : index
    %55 = vector.load %arg2[%c6, %c0_59, %c0_60] : memref<9x4x128xf32, #tpu.memory_space<vmem>>, vector<1x4x128xf32>
    %56 = vector.shape_cast %55 : vector<1x4x128xf32> to vector<4x128xf32>
    %cst_61 = arith.constant dense<0.000000e+00> : vector<128x128xf32>
    %57 = tpu.matmul %54, %56, %cst_61 {dimension_numbers = #tpu.dot_dimension_numbers<[1], [0], [0], [1], [0, 0, 1, 1], [], []>} : vector<128x4xf32>, vector<4x128xf32>, vector<128x128xf32> -> vector<128x128xf32>
    %58 = arith.addf %52, %57 : vector<128x128xf32>
    %c0_62 = arith.constant 0 : index
    %c2_63 = arith.constant 2 : index
    %c1_64 = arith.constant 1 : index
    %c0_65 = arith.constant 0 : index
    %59 = vector.load %arg9[%c0_62, %c2_63, %c1_64, %c0_65] : memref<2x10x10x4xf32, #tpu.memory_space<vmem>>, vector<2x8x8x4xf32>
    %60 = vector.shape_cast %59 : vector<2x8x8x4xf32> to vector<128x4xf32>
    %c7 = arith.constant 7 : index
    %c0_66 = arith.constant 0 : index
    %c0_67 = arith.constant 0 : index
    %61 = vector.load %arg2[%c7, %c0_66, %c0_67] : memref<9x4x128xf32, #tpu.memory_space<vmem>>, vector<1x4x128xf32>
    %62 = vector.shape_cast %61 : vector<1x4x128xf32> to vector<4x128xf32>
    %cst_68 = arith.constant dense<0.000000e+00> : vector<128x128xf32>
    %63 = tpu.matmul %60, %62, %cst_68 {dimension_numbers = #tpu.dot_dimension_numbers<[1], [0], [0], [1], [0, 0, 1, 1], [], []>} : vector<128x4xf32>, vector<4x128xf32>, vector<128x128xf32> -> vector<128x128xf32>
    %64 = arith.addf %58, %63 : vector<128x128xf32>
    %c0_69 = arith.constant 0 : index
    %c2_70 = arith.constant 2 : index
    %c2_71 = arith.constant 2 : index
    %c0_72 = arith.constant 0 : index
    %65 = vector.load %arg9[%c0_69, %c2_70, %c2_71, %c0_72] : memref<2x10x10x4xf32, #tpu.memory_space<vmem>>, vector<2x8x8x4xf32>
    %66 = vector.shape_cast %65 : vector<2x8x8x4xf32> to vector<128x4xf32>
    %c8 = arith.constant 8 : index
    %c0_73 = arith.constant 0 : index
    %c0_74 = arith.constant 0 : index
    %67 = vector.load %arg2[%c8, %c0_73, %c0_74] : memref<9x4x128xf32, #tpu.memory_space<vmem>>, vector<1x4x128xf32>
    %68 = vector.shape_cast %67 : vector<1x4x128xf32> to vector<4x128xf32>
    %cst_75 = arith.constant dense<0.000000e+00> : vector<128x128xf32>
    %69 = tpu.matmul %66, %68, %cst_75 {dimension_numbers = #tpu.dot_dimension_numbers<[1], [0], [0], [1], [0, 0, 1, 1], [], []>} : vector<128x4xf32>, vector<4x128xf32>, vector<128x128xf32> -> vector<128x128xf32>
    %70 = arith.addf %64, %69 : vector<128x128xf32>
    %c0_76 = arith.constant 0 : index
    %c0_77 = arith.constant 0 : index
    %71 = vector.load %arg3[%c0_76, %c0_77] : memref<1x128xf32, #tpu.memory_space<vmem>>, vector<1x128xf32>
    %c0_78 = arith.constant 0 : index
    %c0_79 = arith.constant 0 : index
    %72 = vector.load %arg4[%c0_78, %c0_79] : memref<1x128xf32, #tpu.memory_space<vmem>>, vector<1x128xf32>
    %cst_80 = arith.constant dense<0.000000e+00> : vector<128xf32>
    %73 = vector.multi_reduction <add>, %70, %cst_80 [0] : vector<128x128xf32> to vector<128xf32>
    %74 = vector.shape_cast %73 : vector<128xf32> to vector<1x128xf32>
    %cst_81 = arith.constant 7.812500e-03 : f32
    %75 = vector.broadcast %cst_81 : f32 to vector<1x128xf32>
    %76 = arith.mulf %74, %75 : vector<1x128xf32>
    %77 = arith.mulf %70, %70 : vector<128x128xf32>
    %cst_82 = arith.constant dense<0.000000e+00> : vector<128xf32>
    %78 = vector.multi_reduction <add>, %77, %cst_82 [0] : vector<128x128xf32> to vector<128xf32>
    %79 = vector.shape_cast %78 : vector<128xf32> to vector<1x128xf32>
    %cst_83 = arith.constant 7.812500e-03 : f32
    %80 = vector.broadcast %cst_83 : f32 to vector<1x128xf32>
    %81 = arith.mulf %79, %80 : vector<1x128xf32>
    %82 = arith.mulf %76, %76 : vector<1x128xf32>
    %83 = arith.subf %81, %82 : vector<1x128xf32>
    %cst_84 = arith.constant 9.99999974E-6 : f32
    %84 = vector.broadcast %cst_84 : f32 to vector<1x128xf32>
    %85 = arith.addf %83, %84 : vector<1x128xf32>
    %86 = math.rsqrt %85 : vector<1x128xf32>
    %87 = arith.mulf %71, %86 : vector<1x128xf32>
    %88 = arith.mulf %76, %87 : vector<1x128xf32>
    %89 = arith.subf %72, %88 : vector<1x128xf32>
    %90 = vector.broadcast %87 : vector<1x128xf32> to vector<128x128xf32>
    %91 = arith.mulf %70, %90 : vector<128x128xf32>
    %92 = vector.broadcast %89 : vector<1x128xf32> to vector<128x128xf32>
    %93 = arith.addf %91, %92 : vector<128x128xf32>
    %cst_85 = arith.constant 0.000000e+00 : f32
    %94 = vector.broadcast %cst_85 : f32 to vector<128x128xf32>
    %95 = arith.maximumf %93, %94 : vector<128x128xf32>
    %cst_86 = arith.constant 0.000000e+00 : f32
    %96 = vector.broadcast %cst_86 : f32 to vector<2x10x10x128xf32>
    %c0_87 = arith.constant 0 : index
    %c0_88 = arith.constant 0 : index
    %c0_89 = arith.constant 0 : index
    %c0_90 = arith.constant 0 : index
    %97 = vector.load %arg10[%c0_87, %c0_88, %c0_89, %c0_90] : memref<2x10x10x128xf32, #tpu.memory_space<vmem>>, vector<2x10x10x128xf32>
    tpu.vector_store %arg10[%c0_87, %c0_88, %c0_89, %c0_90], %96 {strides = array<i32>} : memref<2x10x10x128xf32, #tpu.memory_space<vmem>>, vector<2x10x10x128xf32>,
    %98 = vector.shape_cast %95 : vector<128x128xf32> to vector<2x8x8x128xf32>
    %c0_91 = arith.constant 0 : index
    %c1_92 = arith.constant 1 : index
    %c1_93 = arith.constant 1 : index
    %c0_94 = arith.constant 0 : index
    %99 = vector.load %arg10[%c0_91, %c1_92, %c1_93, %c0_94] : memref<2x10x10x128xf32, #tpu.memory_space<vmem>>, vector<2x8x8x128xf32>
    tpu.vector_store %arg10[%c0_91, %c1_92, %c1_93, %c0_94], %98 {strides = array<i32>} : memref<2x10x10x128xf32, #tpu.memory_space<vmem>>, vector<2x8x8x128xf32>,
    %cst_95 = arith.constant 0.000000e+00 : f32
    %100 = vector.broadcast %cst_95 : f32 to vector<128x128xf32>
    %c0_96 = arith.constant 0 : index
    %c0_97 = arith.constant 0 : index
    %c0_98 = arith.constant 0 : index
    %c0_99 = arith.constant 0 : index
    %101 = vector.load %arg10[%c0_96, %c0_97, %c0_98, %c0_99] : memref<2x10x10x128xf32, #tpu.memory_space<vmem>>, vector<2x8x8x128xf32>
    %102 = vector.shape_cast %101 : vector<2x8x8x128xf32> to vector<128x128xf32>
    %c0_100 = arith.constant 0 : index
    %c0_101 = arith.constant 0 : index
    %c0_102 = arith.constant 0 : index
    %103 = vector.load %arg5[%c0_100, %c0_101, %c0_102] : memref<9x128x128xf32, #tpu.memory_space<vmem>>, vector<1x128x128xf32>
    %104 = vector.shape_cast %103 : vector<1x128x128xf32> to vector<128x128xf32>
    %cst_103 = arith.constant dense<0.000000e+00> : vector<128x128xf32>
    %105 = tpu.matmul %102, %104, %cst_103 {dimension_numbers = #tpu.dot_dimension_numbers<[1], [0], [0], [1], [0, 0, 1, 1], [], []>} : vector<128x128xf32>, vector<128x128xf32>, vector<128x128xf32> -> vector<128x128xf32>
    %106 = arith.addf %100, %105 : vector<128x128xf32>
    %c0_104 = arith.constant 0 : index
    %c0_105 = arith.constant 0 : index
    %c1_106 = arith.constant 1 : index
    %c0_107 = arith.constant 0 : index
    %107 = vector.load %arg10[%c0_104, %c0_105, %c1_106, %c0_107] : memref<2x10x10x128xf32, #tpu.memory_space<vmem>>, vector<2x8x8x128xf32>
    %108 = vector.shape_cast %107 : vector<2x8x8x128xf32> to vector<128x128xf32>
    %c1_108 = arith.constant 1 : index
    %c0_109 = arith.constant 0 : index
    %c0_110 = arith.constant 0 : index
    %109 = vector.load %arg5[%c1_108, %c0_109, %c0_110] : memref<9x128x128xf32, #tpu.memory_space<vmem>>, vector<1x128x128xf32>
    %110 = vector.shape_cast %109 : vector<1x128x128xf32> to vector<128x128xf32>
    %cst_111 = arith.constant dense<0.000000e+00> : vector<128x128xf32>
    %111 = tpu.matmul %108, %110, %cst_111 {dimension_numbers = #tpu.dot_dimension_numbers<[1], [0], [0], [1], [0, 0, 1, 1], [], []>} : vector<128x128xf32>, vector<128x128xf32>, vector<128x128xf32> -> vector<128x128xf32>
    %112 = arith.addf %106, %111 : vector<128x128xf32>
    %c0_112 = arith.constant 0 : index
    %c0_113 = arith.constant 0 : index
    %c2_114 = arith.constant 2 : index
    %c0_115 = arith.constant 0 : index
    %113 = vector.load %arg10[%c0_112, %c0_113, %c2_114, %c0_115] : memref<2x10x10x128xf32, #tpu.memory_space<vmem>>, vector<2x8x8x128xf32>
    %114 = vector.shape_cast %113 : vector<2x8x8x128xf32> to vector<128x128xf32>
    %c2_116 = arith.constant 2 : index
    %c0_117 = arith.constant 0 : index
    %c0_118 = arith.constant 0 : index
    %115 = vector.load %arg5[%c2_116, %c0_117, %c0_118] : memref<9x128x128xf32, #tpu.memory_space<vmem>>, vector<1x128x128xf32>
    %116 = vector.shape_cast %115 : vector<1x128x128xf32> to vector<128x128xf32>
    %cst_119 = arith.constant dense<0.000000e+00> : vector<128x128xf32>
    %117 = tpu.matmul %114, %116, %cst_119 {dimension_numbers = #tpu.dot_dimension_numbers<[1], [0], [0], [1], [0, 0, 1, 1], [], []>} : vector<128x128xf32>, vector<128x128xf32>, vector<128x128xf32> -> vector<128x128xf32>
    %118 = arith.addf %112, %117 : vector<128x128xf32>
    %c0_120 = arith.constant 0 : index
    %c1_121 = arith.constant 1 : index
    %c0_122 = arith.constant 0 : index
    %c0_123 = arith.constant 0 : index
    %119 = vector.load %arg10[%c0_120, %c1_121, %c0_122, %c0_123] : memref<2x10x10x128xf32, #tpu.memory_space<vmem>>, vector<2x8x8x128xf32>
    %120 = vector.shape_cast %119 : vector<2x8x8x128xf32> to vector<128x128xf32>
    %c3_124 = arith.constant 3 : index
    %c0_125 = arith.constant 0 : index
    %c0_126 = arith.constant 0 : index
    %121 = vector.load %arg5[%c3_124, %c0_125, %c0_126] : memref<9x128x128xf32, #tpu.memory_space<vmem>>, vector<1x128x128xf32>
    %122 = vector.shape_cast %121 : vector<1x128x128xf32> to vector<128x128xf32>
    %cst_127 = arith.constant dense<0.000000e+00> : vector<128x128xf32>
    %123 = tpu.matmul %120, %122, %cst_127 {dimension_numbers = #tpu.dot_dimension_numbers<[1], [0], [0], [1], [0, 0, 1, 1], [], []>} : vector<128x128xf32>, vector<128x128xf32>, vector<128x128xf32> -> vector<128x128xf32>
    %124 = arith.addf %118, %123 : vector<128x128xf32>
    %c0_128 = arith.constant 0 : index
    %c1_129 = arith.constant 1 : index
    %c1_130 = arith.constant 1 : index
    %c0_131 = arith.constant 0 : index
    %125 = vector.load %arg10[%c0_128, %c1_129, %c1_130, %c0_131] : memref<2x10x10x128xf32, #tpu.memory_space<vmem>>, vector<2x8x8x128xf32>
    %126 = vector.shape_cast %125 : vector<2x8x8x128xf32> to vector<128x128xf32>
    %c4_132 = arith.constant 4 : index
    %c0_133 = arith.constant 0 : index
    %c0_134 = arith.constant 0 : index
    %127 = vector.load %arg5[%c4_132, %c0_133, %c0_134] : memref<9x128x128xf32, #tpu.memory_space<vmem>>, vector<1x128x128xf32>
    %128 = vector.shape_cast %127 : vector<1x128x128xf32> to vector<128x128xf32>
    %cst_135 = arith.constant dense<0.000000e+00> : vector<128x128xf32>
    %129 = tpu.matmul %126, %128, %cst_135 {dimension_numbers = #tpu.dot_dimension_numbers<[1], [0], [0], [1], [0, 0, 1, 1], [], []>} : vector<128x128xf32>, vector<128x128xf32>, vector<128x128xf32> -> vector<128x128xf32>
    %130 = arith.addf %124, %129 : vector<128x128xf32>
    %c0_136 = arith.constant 0 : index
    %c1_137 = arith.constant 1 : index
    %c2_138 = arith.constant 2 : index
    %c0_139 = arith.constant 0 : index
    %131 = vector.load %arg10[%c0_136, %c1_137, %c2_138, %c0_139] : memref<2x10x10x128xf32, #tpu.memory_space<vmem>>, vector<2x8x8x128xf32>
    %132 = vector.shape_cast %131 : vector<2x8x8x128xf32> to vector<128x128xf32>
    %c5_140 = arith.constant 5 : index
    %c0_141 = arith.constant 0 : index
    %c0_142 = arith.constant 0 : index
    %133 = vector.load %arg5[%c5_140, %c0_141, %c0_142] : memref<9x128x128xf32, #tpu.memory_space<vmem>>, vector<1x128x128xf32>
    %134 = vector.shape_cast %133 : vector<1x128x128xf32> to vector<128x128xf32>
    %cst_143 = arith.constant dense<0.000000e+00> : vector<128x128xf32>
    %135 = tpu.matmul %132, %134, %cst_143 {dimension_numbers = #tpu.dot_dimension_numbers<[1], [0], [0], [1], [0, 0, 1, 1], [], []>} : vector<128x128xf32>, vector<128x128xf32>, vector<128x128xf32> -> vector<128x128xf32>
    %136 = arith.addf %130, %135 : vector<128x128xf32>
    %c0_144 = arith.constant 0 : index
    %c2_145 = arith.constant 2 : index
    %c0_146 = arith.constant 0 : index
    %c0_147 = arith.constant 0 : index
    %137 = vector.load %arg10[%c0_144, %c2_145, %c0_146, %c0_147] : memref<2x10x10x128xf32, #tpu.memory_space<vmem>>, vector<2x8x8x128xf32>
    %138 = vector.shape_cast %137 : vector<2x8x8x128xf32> to vector<128x128xf32>
    %c6_148 = arith.constant 6 : index
    %c0_149 = arith.constant 0 : index
    %c0_150 = arith.constant 0 : index
    %139 = vector.load %arg5[%c6_148, %c0_149, %c0_150] : memref<9x128x128xf32, #tpu.memory_space<vmem>>, vector<1x128x128xf32>
    %140 = vector.shape_cast %139 : vector<1x128x128xf32> to vector<128x128xf32>
    %cst_151 = arith.constant dense<0.000000e+00> : vector<128x128xf32>
    %141 = tpu.matmul %138, %140, %cst_151 {dimension_numbers = #tpu.dot_dimension_numbers<[1], [0], [0], [1], [0, 0, 1, 1], [], []>} : vector<128x128xf32>, vector<128x128xf32>, vector<128x128xf32> -> vector<128x128xf32>
    %142 = arith.addf %136, %141 : vector<128x128xf32>
    %c0_152 = arith.constant 0 : index
    %c2_153 = arith.constant 2 : index
    %c1_154 = arith.constant 1 : index
    %c0_155 = arith.constant 0 : index
    %143 = vector.load %arg10[%c0_152, %c2_153, %c1_154, %c0_155] : memref<2x10x10x128xf32, #tpu.memory_space<vmem>>, vector<2x8x8x128xf32>
    %144 = vector.shape_cast %143 : vector<2x8x8x128xf32> to vector<128x128xf32>
    %c7_156 = arith.constant 7 : index
    %c0_157 = arith.constant 0 : index
    %c0_158 = arith.constant 0 : index
    %145 = vector.load %arg5[%c7_156, %c0_157, %c0_158] : memref<9x128x128xf32, #tpu.memory_space<vmem>>, vector<1x128x128xf32>
    %146 = vector.shape_cast %145 : vector<1x128x128xf32> to vector<128x128xf32>
    %cst_159 = arith.constant dense<0.000000e+00> : vector<128x128xf32>
    %147 = tpu.matmul %144, %146, %cst_159 {dimension_numbers = #tpu.dot_dimension_numbers<[1], [0], [0], [1], [0, 0, 1, 1], [], []>} : vector<128x128xf32>, vector<128x128xf32>, vector<128x128xf32> -> vector<128x128xf32>
    %148 = arith.addf %142, %147 : vector<128x128xf32>
    %c0_160 = arith.constant 0 : index
    %c2_161 = arith.constant 2 : index
    %c2_162 = arith.constant 2 : index
    %c0_163 = arith.constant 0 : index
    %149 = vector.load %arg10[%c0_160, %c2_161, %c2_162, %c0_163] : memref<2x10x10x128xf32, #tpu.memory_space<vmem>>, vector<2x8x8x128xf32>
    %150 = vector.shape_cast %149 : vector<2x8x8x128xf32> to vector<128x128xf32>
    %c8_164 = arith.constant 8 : index
    %c0_165 = arith.constant 0 : index
    %c0_166 = arith.constant 0 : index
    %151 = vector.load %arg5[%c8_164, %c0_165, %c0_166] : memref<9x128x128xf32, #tpu.memory_space<vmem>>, vector<1x128x128xf32>
    %152 = vector.shape_cast %151 : vector<1x128x128xf32> to vector<128x128xf32>
    %cst_167 = arith.constant dense<0.000000e+00> : vector<128x128xf32>
    %153 = tpu.matmul %150, %152, %cst_167 {dimension_numbers = #tpu.dot_dimension_numbers<[1], [0], [0], [1], [0, 0, 1, 1], [], []>} : vector<128x128xf32>, vector<128x128xf32>, vector<128x128xf32> -> vector<128x128xf32>
    %154 = arith.addf %148, %153 : vector<128x128xf32>
    %c0_168 = arith.constant 0 : index
    %c0_169 = arith.constant 0 : index
    %155 = vector.load %arg6[%c0_168, %c0_169] : memref<1x128xf32, #tpu.memory_space<vmem>>, vector<1x128xf32>
    %c0_170 = arith.constant 0 : index
    %c0_171 = arith.constant 0 : index
    %156 = vector.load %arg7[%c0_170, %c0_171] : memref<1x128xf32, #tpu.memory_space<vmem>>, vector<1x128xf32>
    %cst_172 = arith.constant dense<0.000000e+00> : vector<128xf32>
    %157 = vector.multi_reduction <add>, %154, %cst_172 [0] : vector<128x128xf32> to vector<128xf32>
    %158 = vector.shape_cast %157 : vector<128xf32> to vector<1x128xf32>
    %cst_173 = arith.constant 7.812500e-03 : f32
    %159 = vector.broadcast %cst_173 : f32 to vector<1x128xf32>
    %160 = arith.mulf %158, %159 : vector<1x128xf32>
    %161 = arith.mulf %154, %154 : vector<128x128xf32>
    %cst_174 = arith.constant dense<0.000000e+00> : vector<128xf32>
    %162 = vector.multi_reduction <add>, %161, %cst_174 [0] : vector<128x128xf32> to vector<128xf32>
    %163 = vector.shape_cast %162 : vector<128xf32> to vector<1x128xf32>
    %cst_175 = arith.constant 7.812500e-03 : f32
    %164 = vector.broadcast %cst_175 : f32 to vector<1x128xf32>
    %165 = arith.mulf %163, %164 : vector<1x128xf32>
    %166 = arith.mulf %160, %160 : vector<1x128xf32>
    %167 = arith.subf %165, %166 : vector<1x128xf32>
    %cst_176 = arith.constant 9.99999974E-6 : f32
    %168 = vector.broadcast %cst_176 : f32 to vector<1x128xf32>
    %169 = arith.addf %167, %168 : vector<1x128xf32>
    %170 = math.rsqrt %169 : vector<1x128xf32>
    %171 = arith.mulf %155, %170 : vector<1x128xf32>
    %172 = arith.mulf %160, %171 : vector<1x128xf32>
    %173 = arith.subf %156, %172 : vector<1x128xf32>
    %174 = vector.broadcast %171 : vector<1x128xf32> to vector<128x128xf32>
    %175 = arith.mulf %154, %174 : vector<128x128xf32>
    %176 = vector.broadcast %173 : vector<1x128xf32> to vector<128x128xf32>
    %177 = arith.addf %175, %176 : vector<128x128xf32>
    %cst_177 = arith.constant 0.000000e+00 : f32
    %178 = vector.broadcast %cst_177 : f32 to vector<128x128xf32>
    %179 = arith.maximumf %177, %178 : vector<128x128xf32>
    %c0_178 = arith.constant 0 : index
    %c0_179 = arith.constant 0 : index
    %180 = vector.load %arg8[%c0_178, %c0_179] : memref<128x128xf32, #tpu.memory_space<vmem>>, vector<128x128xf32>
    tpu.vector_store %arg8[%c0_178, %c0_179], %179 {strides = array<i32>} : memref<128x128xf32, #tpu.memory_space<vmem>>, vector<128x128xf32>,
    return
  }
  func.func @transform_0(%arg0: i32) -> (i32, i32, i32, i32) {
    %c0_i32 = arith.constant 0 : i32
    %c0_i32_0 = arith.constant 0 : i32
    %c0_i32_1 = arith.constant 0 : i32
    %c0_i32_2 = arith.constant 0 : i32
    %c0_i32_3 = arith.constant 0 : i32
    return %c0_i32, %c0_i32_0, %c0_i32_1, %c0_i32_2 : i32, i32, i32, i32
  }
  func.func @transform_1(%arg0: i32) -> (i32, i32, i32) {
    %c0_i32 = arith.constant 0 : i32
    %c0_i32_0 = arith.constant 0 : i32
    %c0_i32_1 = arith.constant 0 : i32
    %c0_i32_2 = arith.constant 0 : i32
    return %c0_i32, %c0_i32_0, %c0_i32_1 : i32, i32, i32
  }
  func.func @transform_2(%arg0: i32) -> (i32, i32) {
    %c0_i32 = arith.constant 0 : i32
    %c0_i32_0 = arith.constant 0 : i32
    %c0_i32_1 = arith.constant 0 : i32
    return %c0_i32, %c0_i32_0 : i32, i32
  }
  func.func @transform_3(%arg0: i32) -> (i32, i32) {
    %c0_i32 = arith.constant 0 : i32
    %c0_i32_0 = arith.constant 0 : i32
    %c0_i32_1 = arith.constant 0 : i32
    return %c0_i32, %c0_i32_0 : i32, i32
  }
  func.func @transform_4(%arg0: i32) -> (i32, i32, i32) {
    %c0_i32 = arith.constant 0 : i32
    %c0_i32_0 = arith.constant 0 : i32
    %c0_i32_1 = arith.constant 0 : i32
    %c0_i32_2 = arith.constant 0 : i32
    return %c0_i32, %c0_i32_0, %c0_i32_1 : i32, i32, i32
  }
  func.func @transform_5(%arg0: i32) -> (i32, i32) {
    %c0_i32 = arith.constant 0 : i32
    %c0_i32_0 = arith.constant 0 : i32
    %c0_i32_1 = arith.constant 0 : i32
    return %c0_i32, %c0_i32_0 : i32, i32
  }
  func.func @transform_6(%arg0: i32) -> (i32, i32) {
    %c0_i32 = arith.constant 0 : i32
    %c0_i32_0 = arith.constant 0 : i32
    %c0_i32_1 = arith.constant 0 : i32
    return %c0_i32, %c0_i32_0 : i32, i32
  }
  func.func @transform_7(%arg0: i32) -> (i32, i32) {
    %c0_i32 = arith.constant 0 : i32
    %c0_i32_0 = arith.constant 0 : i32
    %c0_i32_1 = arith.constant 0 : i32
    return %c0_i32, %c0_i32_0 : i32, i32
  }
}

</mosaic_0001>

<llo_original>
// kernel: encoder_forward.1
$region0: #{encoder_forward.1}
  #allocation0 [shape = 'u32[]', space=smem, size = 0x4, offset = 0x4, fixed_abs, tag = 'smem constant byte address 0x4 - core index']
  #allocation1 [shape = 'u32[144,128]{1,0:T(1,128)}', space=vmem, size = 0x12000, scoped, tag = 'internal scratch']
  #allocation2 [shape = 'f32[2,10,10,4]{3,2,1,0:T(8,128)}', space=vmem, size = 0x28000, scoped, tag = 'scratch operand']
  #allocation3 [shape = 'f32[2,10,10,128]{3,2,1,0:T(8,128)}', space=vmem, size = 0x28000, scoped, tag = 'scratch operand']
  %s0 = inlined_call_operand.vmem [shape: f32[4,16,8,4], index: 0, kind: input, shape index: {}]
  %s1 = inlined_call_operand.vmem [shape: f32[9,4,128], index: 1, kind: input, shape index: {}]
  %s2 = inlined_call_operand.vmem [shape: f32[1,128], index: 2, kind: input, shape index: {}]
  %s3 = inlined_call_operand.vmem [shape: f32[1,128], index: 3, kind: input, shape index: {}]
  %s4 = inlined_call_operand.vmem [shape: f32[9,128,128], index: 4, kind: input, shape index: {}]
  %s5 = inlined_call_operand.vmem [shape: f32[1,128], index: 5, kind: input, shape index: {}]
  %s6 = inlined_call_operand.vmem [shape: f32[1,128], index: 6, kind: input, shape index: {}]
  %s7 = inlined_call_operand.vmem [shape: f32[128,128], index: 7, kind: output, shape index: {}]
  %s8 = sld [smem:[#allocation0]]
  $region38: #{encoder_forward.1} parent=0
    _
  %s10 = ssub.s32 1, %s8
  %s11 = scalar_select 0, %s10, %s8
  // Predicated region
  $region2: #{encoder_forward.1} parent=0 // pred_check
    _
  $region3: #{encoder_forward.1} parent=0 // pred_check_branch
    %13 = sbr.rel (0) target = $region5
  $region4: #{encoder_forward.1} parent=0 // pred_region
    _
  $region5: #{encoder_forward.1} parent=0 // pred_fallthru
    _
  // Predicated region
  $region6: #{encoder_forward.1} parent=0 // pred_check
    _
  $region7: #{encoder_forward.1} parent=0 // pred_check_branch
    %15 = sbr.rel (0) target = $region9
  $region8: #{encoder_forward.1} parent=0 // pred_region
    _
  $region9: #{encoder_forward.1} parent=0 // pred_fallthru
    _
  // Predicated region
  $region10: #{encoder_forward.1} parent=0 // pred_check
    _
  $region11: #{encoder_forward.1} parent=0 // pred_check_branch
    %17 = sbr.rel (0) target = $region13
  $region12: #{encoder_forward.1} parent=0 // pred_region
    _
  $region13: #{encoder_forward.1} parent=0 // pred_fallthru
    _
  // Predicated region
  $region14: #{encoder_forward.1} parent=0 // pred_check
    _
  $region15: #{encoder_forward.1} parent=0 // pred_check_branch
    %19 = sbr.rel (0) target = $region17
  $region16: #{encoder_forward.1} parent=0 // pred_region
    _
  $region17: #{encoder_forward.1} parent=0 // pred_fallthru
    _
  // Predicated region
  $region18: #{encoder_forward.1} parent=0 // pred_check
    _
  $region19: #{encoder_forward.1} parent=0 // pred_check_branch
    %21 = sbr.rel (0) target = $region21
  $region20: #{encoder_forward.1} parent=0 // pred_region
    _
  $region21: #{encoder_forward.1} parent=0 // pred_fallthru
    _
  // Predicated region
  $region22: #{encoder_forward.1} parent=0 // pred_check
    _
  $region23: #{encoder_forward.1} parent=0 // pred_check_branch
    %23 = sbr.rel (0) target = $region25
  $region24: #{encoder_forward.1} parent=0 // pred_region
    _
  $region25: #{encoder_forward.1} parent=0 // pred_fallthru
    _
  // Predicated region
  $region26: #{encoder_forward.1} parent=0 // pred_check
    _
  $region27: #{encoder_forward.1} parent=0 // pred_check_branch
    %25 = sbr.rel (0) target = $region29
  $region28: #{encoder_forward.1} parent=0 // pred_region
    _
  $region29: #{encoder_forward.1} parent=0 // pred_fallthru
    _
  %v26 = vld [vmem:[%s0] sm:$0xff]
  %v27 = vld [vmem:[%s0 + $0x8] sm:$0xff]
  %v28 = vld [vmem:[%s0 + $0x10] sm:$0xff]
  %v29 = vld [vmem:[%s0 + $0x18] sm:$0xff]
  %v30 = vld [vmem:[%s0 + $0x20] sm:$0xff]
  %v31 = vld [vmem:[%s0 + $0x28] sm:$0xff]
  %v32 = vld [vmem:[%s0 + $0x30] sm:$0xff]
  %v33 = vld [vmem:[%s0 + $0x38] sm:$0xff]
  %v34 = vld [vmem:[%s0 + $0x40] sm:$0xff]
  %v35 = vld [vmem:[%s0 + $0x48] sm:$0xff]
  %v36 = vld [vmem:[%s0 + $0x50] sm:$0xff]
  %v37 = vld [vmem:[%s0 + $0x58] sm:$0xff]
  %v38 = vld [vmem:[%s0 + $0x60] sm:$0xff]
  %v39 = vld [vmem:[%s0 + $0x68] sm:$0xff]
  %v40 = vld [vmem:[%s0 + $0x70] sm:$0xff]
  %v41 = vld [vmem:[%s0 + $0x78] sm:$0xff]
  %v42 = vld [vmem:[%s0 + $0x80] sm:$0xff]
  %v43 = vld [vmem:[%s0 + $0x88] sm:$0xff]
  %v44 = vld [vmem:[%s0 + $0x90] sm:$0xff]
  %v45 = vld [vmem:[%s0 + $0x98] sm:$0xff]
  %v46 = vld [vmem:[%s0 + $0xa0] sm:$0xff]
  %v47 = vld [vmem:[%s0 + $0xa8] sm:$0xff]
  %v48 = vld [vmem:[%s0 + $0xb0] sm:$0xff]
  %v49 = vld [vmem:[%s0 + $0xb8] sm:$0xff]
  %v50 = vld [vmem:[%s0 + $0xc0] sm:$0xff]
  %v51 = vld [vmem:[%s0 + $0xc8] sm:$0xff]
  %v52 = vld [vmem:[%s0 + $0xd0] sm:$0xff]
  %v53 = vld [vmem:[%s0 + $0xd8] sm:$0xff]
  %v54 = vld [vmem:[%s0 + $0xe0] sm:$0xff]
  %v55 = vld [vmem:[%s0 + $0xe8] sm:$0xff]
  %v56 = vld [vmem:[%s0 + $0xf0] sm:$0xff]
  %v57 = vld [vmem:[%s0 + $0xf8] sm:$0xff]
  %v58 = vld [vmem:[%s0 + $0x100] sm:$0xff]
  %v59 = vld [vmem:[%s0 + $0x108] sm:$0xff]
  %v60 = vld [vmem:[%s0 + $0x110] sm:$0xff]
  %v61 = vld [vmem:[%s0 + $0x118] sm:$0xff]
  %v62 = vld [vmem:[%s0 + $0x120] sm:$0xff]
  %v63 = vld [vmem:[%s0 + $0x128] sm:$0xff]
  %v64 = vld [vmem:[%s0 + $0x130] sm:$0xff]
  %v65 = vld [vmem:[%s0 + $0x138] sm:$0xff]
  %v66 = vld [vmem:[%s0 + $0x140] sm:$0xff]
  %v67 = vld [vmem:[%s0 + $0x148] sm:$0xff]
  %v68 = vld [vmem:[%s0 + $0x150] sm:$0xff]
  %v69 = vld [vmem:[%s0 + $0x158] sm:$0xff]
  %v70 = vld [vmem:[%s0 + $0x160] sm:$0xff]
  %v71 = vld [vmem:[%s0 + $0x168] sm:$0xff]
  %v72 = vld [vmem:[%s0 + $0x170] sm:$0xff]
  %v73 = vld [vmem:[%s0 + $0x178] sm:$0xff]
  %v74 = vld [vmem:[%s0 + $0x180] sm:$0xff]
  %v75 = vld [vmem:[%s0 + $0x188] sm:$0xff]
  %v76 = vld [vmem:[%s0 + $0x190] sm:$0xff]
  %v77 = vld [vmem:[%s0 + $0x198] sm:$0xff]
  %v78 = vld [vmem:[%s0 + $0x1a0] sm:$0xff]
  %v79 = vld [vmem:[%s0 + $0x1a8] sm:$0xff]
  %v80 = vld [vmem:[%s0 + $0x1b0] sm:$0xff]
  %v81 = vld [vmem:[%s0 + $0x1b8] sm:$0xff]
  %v82 = vld [vmem:[%s0 + $0x1c0] sm:$0xff]
  %v83 = vld [vmem:[%s0 + $0x1c8] sm:$0xff]
  %v84 = vld [vmem:[%s0 + $0x1d0] sm:$0xff]
  %v85 = vld [vmem:[%s0 + $0x1d8] sm:$0xff]
  %v86 = vld [vmem:[%s0 + $0x1e0] sm:$0xff]
  %v87 = vld [vmem:[%s0 + $0x1e8] sm:$0xff]
  %v88 = vld [vmem:[%s0 + $0x1f0] sm:$0xff]
  %v89 = vld [vmem:[%s0 + $0x1f8] sm:$0xff]
  %v90 = vmax.f32 %v26, %v42
  %v91 = vmax.f32 %v27, %v43
  %v92 = vmax.f32 %v28, %v44
  %v93 = vmax.f32 %v29, %v45
  %v94 = vmax.f32 %v30, %v46
  %v95 = vmax.f32 %v31, %v47
  %v96 = vmax.f32 %v32, %v48
  %v97 = vmax.f32 %v33, %v49
  %v98 = vmax.f32 %v34, %v50
  %v99 = vmax.f32 %v35, %v51
  %v100 = vmax.f32 %v36, %v52
  %v101 = vmax.f32 %v37, %v53
  %v102 = vmax.f32 %v38, %v54
  %v103 = vmax.f32 %v39, %v55
  %v104 = vmax.f32 %v40, %v56
  %v105 = vmax.f32 %v41, %v57
  %v106 = vmax.f32 %v58, %v74
  %v107 = vmax.f32 %v59, %v75
  %v108 = vmax.f32 %v60, %v76
  %v109 = vmax.f32 %v61, %v77
  %v110 = vmax.f32 %v62, %v78
  %v111 = vmax.f32 %v63, %v79
  %v112 = vmax.f32 %v64, %v80
  %v113 = vmax.f32 %v65, %v81
  %v114 = vmax.f32 %v66, %v82
  %v115 = vmax.f32 %v67, %v83
  %v116 = vmax.f32 %v68, %v84
  %v117 = vmax.f32 %v69, %v85
  %v118 = vmax.f32 %v70, %v86
  %v119 = vmax.f32 %v71, %v87
  %v120 = vmax.f32 %v72, %v88
  %v121 = vmax.f32 %v73, %v89
  %v122 = vmax.f32 %v90, %v106
  %v123 = vmax.f32 %v91, %v107
  %v124 = vmax.f32 %v92, %v108
  %v125 = vmax.f32 %v93, %v109
  %v126 = vmax.f32 %v94, %v110
  %v127 = vmax.f32 %v95, %v111
  %v128 = vmax.f32 %v96, %v112
  %v129 = vmax.f32 %v97, %v113
  %v130 = vmax.f32 %v98, %v114
  %v131 = vmax.f32 %v99, %v115
  %v132 = vmax.f32 %v100, %v116
  %v133 = vmax.f32 %v101, %v117
  %v134 = vmax.f32 %v102, %v118
  %v135 = vmax.f32 %v103, %v119
  %v136 = vmax.f32 %v104, %v120
  %v137 = vmax.f32 %v105, %v121
  %vm138 = vcmask 31744
  %139 = vst.msk [vmem:[#allocation2] sm:$0xff] %vm138, 0.0
  %vm140 = vcmask 25600
  %141 = vst.msk [vmem:[#allocation2 + $0x8] sm:$0x3] %vm140, 0.0
  %142 = vst.msk [vmem:[#allocation2 + $0x10] sm:$0xff] %vm138, 0.0
  %143 = vst.msk [vmem:[#allocation2 + $0x18] sm:$0x3] %vm140, 0.0
  %144 = vst.msk [vmem:[#allocation2 + $0x20] sm:$0xff] %vm138, 0.0
  %145 = vst.msk [vmem:[#allocation2 + $0x28] sm:$0x3] %vm140, 0.0
  %146 = vst.msk [vmem:[#allocation2 + $0x30] sm:$0xff] %vm138, 0.0
  %147 = vst.msk [vmem:[#allocation2 + $0x38] sm:$0x3] %vm140, 0.0
  %148 = vst.msk [vmem:[#allocation2 + $0x40] sm:$0xff] %vm138, 0.0
  %149 = vst.msk [vmem:[#allocation2 + $0x48] sm:$0x3] %vm140, 0.0
  %150 = vst.msk [vmem:[#allocation2 + $0x50] sm:$0xff] %vm138, 0.0
  %151 = vst.msk [vmem:[#allocation2 + $0x58] sm:$0x3] %vm140, 0.0
  %152 = vst.msk [vmem:[#allocation2 + $0x60] sm:$0xff] %vm138, 0.0
  %153 = vst.msk [vmem:[#allocation2 + $0x68] sm:$0x3] %vm140, 0.0
  %154 = vst.msk [vmem:[#allocation2 + $0x70] sm:$0xff] %vm138, 0.0
  %155 = vst.msk [vmem:[#allocation2 + $0x78] sm:$0x3] %vm140, 0.0
  %156 = vst.msk [vmem:[#allocation2 + $0x80] sm:$0xff] %vm138, 0.0
  %157 = vst.msk [vmem:[#allocation2 + $0x88] sm:$0x3] %vm140, 0.0
  %158 = vst.msk [vmem:[#allocation2 + $0x90] sm:$0xff] %vm138, 0.0
  %159 = vst.msk [vmem:[#allocation2 + $0x98] sm:$0x3] %vm140, 0.0
  %160 = vst.msk [vmem:[#allocation2 + $0xa0] sm:$0xff] %vm138, 0.0
  %161 = vst.msk [vmem:[#allocation2 + $0xa8] sm:$0x3] %vm140, 0.0
  %162 = vst.msk [vmem:[#allocation2 + $0xb0] sm:$0xff] %vm138, 0.0
  %163 = vst.msk [vmem:[#allocation2 + $0xb8] sm:$0x3] %vm140, 0.0
  %164 = vst.msk [vmem:[#allocation2 + $0xc0] sm:$0xff] %vm138, 0.0
  %165 = vst.msk [vmem:[#allocation2 + $0xc8] sm:$0x3] %vm140, 0.0
  %166 = vst.msk [vmem:[#allocation2 + $0xd0] sm:$0xff] %vm138, 0.0
  %167 = vst.msk [vmem:[#allocation2 + $0xd8] sm:$0x3] %vm140, 0.0
  %168 = vst.msk [vmem:[#allocation2 + $0xe0] sm:$0xff] %vm138, 0.0
  %169 = vst.msk [vmem:[#allocation2 + $0xe8] sm:$0x3] %vm140, 0.0
  %170 = vst.msk [vmem:[#allocation2 + $0xf0] sm:$0xff] %vm138, 0.0
  %171 = vst.msk [vmem:[#allocation2 + $0xf8] sm:$0x3] %vm140, 0.0
  %172 = vst.msk [vmem:[#allocation2 + $0x100] sm:$0xff] %vm138, 0.0
  %173 = vst.msk [vmem:[#allocation2 + $0x108] sm:$0x3] %vm140, 0.0
  %174 = vst.msk [vmem:[#allocation2 + $0x110] sm:$0xff] %vm138, 0.0
  %175 = vst.msk [vmem:[#allocation2 + $0x118] sm:$0x3] %vm140, 0.0
  %176 = vst.msk [vmem:[#allocation2 + $0x120] sm:$0xff] %vm138, 0.0
  %177 = vst.msk [vmem:[#allocation2 + $0x128] sm:$0x3] %vm140, 0.0
  %178 = vst.msk [vmem:[#allocation2 + $0x130] sm:$0xff] %vm138, 0.0
  %179 = vst.msk [vmem:[#allocation2 + $0x138] sm:$0x3] %vm140, 0.0
  %s180 = scalar_lea.vmem [#allocation2], 16
  %181 = vst.msk [vmem:[%s180 + $0x1] sm:$0xff] %vm138, %v122
  %182 = vst.msk [vmem:[%s180 + $0x11] sm:$0xff] %vm138, %v123
  %183 = vst.msk [vmem:[%s180 + $0x21] sm:$0xff] %vm138, %v124
  %184 = vst.msk [vmem:[%s180 + $0x31] sm:$0xff] %vm138, %v125
  %185 = vst.msk [vmem:[%s180 + $0x41] sm:$0xff] %vm138, %v126
  %186 = vst.msk [vmem:[%s180 + $0x51] sm:$0xff] %vm138, %v127
  %187 = vst.msk [vmem:[%s180 + $0x61] sm:$0xff] %vm138, %v128
  %188 = vst.msk [vmem:[%s180 + $0x71] sm:$0xff] %vm138, %v129
  %189 = vst.msk [vmem:[%s180 + $0xa1] sm:$0xff] %vm138, %v130
  %190 = vst.msk [vmem:[%s180 + $0xb1] sm:$0xff] %vm138, %v131
  %191 = vst.msk [vmem:[%s180 + $0xc1] sm:$0xff] %vm138, %v132
  %192 = vst.msk [vmem:[%s180 + $0xd1] sm:$0xff] %vm138, %v133
  %193 = vst.msk [vmem:[%s180 + $0xe1] sm:$0xff] %vm138, %v134
  %194 = vst.msk [vmem:[%s180 + $0xf1] sm:$0xff] %vm138, %v135
  %195 = vst.msk [vmem:[%s180 + $0x101] sm:$0xff] %vm138, %v136
  %196 = vst.msk [vmem:[%s180 + $0x111] sm:$0xff] %vm138, %v137
  %v197 = vld [vmem:[#allocation2] sm:$0xff]
  %v198 = vld [vmem:[#allocation2 + $0x10] sm:$0xff]
  %v199 = vld [vmem:[#allocation2 + $0x20] sm:$0xff]
  %v200 = vld [vmem:[#allocation2 + $0x30] sm:$0xff]
  %v201 = vld [vmem:[#allocation2 + $0x40] sm:$0xff]
  %v202 = vld [vmem:[#allocation2 + $0x50] sm:$0xff]
  %v203 = vld [vmem:[#allocation2 + $0x60] sm:$0xff]
  %v204 = vld [vmem:[#allocation2 + $0x70] sm:$0xff]
  %v205 = vld [vmem:[#allocation2 + $0xa0] sm:$0xff]
  %v206 = vld [vmem:[#allocation2 + $0xb0] sm:$0xff]
  %v207 = vld [vmem:[#allocation2 + $0xc0] sm:$0xff]
  %v208 = vld [vmem:[#allocation2 + $0xd0] sm:$0xff]
  %v209 = vld [vmem:[#allocation2 + $0xe0] sm:$0xff]
  %v210 = vld [vmem:[#allocation2 + $0xf0] sm:$0xff]
  %v211 = vld [vmem:[#allocation2 + $0x100] sm:$0xff]
  %v212 = vld [vmem:[#allocation2 + $0x110] sm:$0xff]
  %v213 = vld [vmem:[%s1] sm:$0xf]
  %v214 = vld [vmem:[#allocation2 + $0x1] sm:$0xff]
  %v215 = vld [vmem:[#allocation2 + $0x11] sm:$0xff]
  %v216 = vld [vmem:[#allocation2 + $0x21] sm:$0xff]
  %v217 = vld [vmem:[#allocation2 + $0x31] sm:$0xff]
  %v218 = vld [vmem:[#allocation2 + $0x41] sm:$0xff]
  %v219 = vld [vmem:[#allocation2 + $0x51] sm:$0xff]
  %v220 = vld [vmem:[#allocation2 + $0x61] sm:$0xff]
  %v221 = vld [vmem:[#allocation2 + $0x71] sm:$0xff]
  %v222 = vld [vmem:[#allocation2 + $0xa1] sm:$0xff]
  %v223 = vld [vmem:[#allocation2 + $0xb1] sm:$0xff]
  %v224 = vld [vmem:[#allocation2 + $0xc1] sm:$0xff]
  %v225 = vld [vmem:[#allocation2 + $0xd1] sm:$0xff]
  %v226 = vld [vmem:[#allocation2 + $0xe1] sm:$0xff]
  %v227 = vld [vmem:[#allocation2 + $0xf1] sm:$0xff]
  %v228 = vld [vmem:[#allocation2 + $0x101] sm:$0xff]
  %v229 = vld [vmem:[#allocation2 + $0x111] sm:$0xff]
  %s230 = scalar_lea.vmem %s1, 4
  %v231 = vld [vmem:[%s230] sm:$0xf]
  %v233 = vsel %vm138, %v214, 0
  %v236 = vsel %vm138, %v215, 0
  %v239 = vsel %vm138, %v216, 0
  %v242 = vsel %vm138, %v217, 0
  %v245 = vsel %vm138, %v218, 0
  %v248 = vsel %vm138, %v219, 0
  %v251 = vsel %vm138, %v220, 0
  %v254 = vsel %vm138, %v221, 0
  %v257 = vsel %vm138, %v222, 0
  %v260 = vsel %vm138, %v223, 0
  %v263 = vsel %vm138, %v224, 0
  %v266 = vsel %vm138, %v225, 0
  %v269 = vsel %vm138, %v226, 0
  %v272 = vsel %vm138, %v227, 0
  %v275 = vsel %vm138, %v228, 0
  %v278 = vsel %vm138, %v229, 0
  %vm280 = vcmask 1043456
  %v282 = vsel %vm280, %v231, 0
  %284 = vmatprep.subr.mxu0 0.0
  %285 = vmatpush1.msra.mxu0 %v282
  %286 = vmatprep.subr.mxu0 0.0
  %287 = vmatpush1.msra.mxu0 0.0
  %288 = vmatprep.subr.mxu0 0.0
  %289 = vmatpush1.msra.mxu0 0.0
  %290 = vmatprep.subr.mxu0 0.0
  %291 = vmatpush1.msra.mxu0 0.0
  %292 = vmatprep.subr.mxu0 0.0
  %293 = vmatpush1.msra.mxu0 0.0
  %294 = vmatprep.subr.mxu0 0.0
  %295 = vmatpush1.msra.mxu0 0.0
  %296 = vmatprep.subr.mxu0 0.0
  %297 = vmatpush1.msra.mxu0 0.0
  %298 = vmatprep.subr.mxu0 0.0
  %299 = vmatpush1.msra.mxu0 0.0
  %300 = vmatprep.subr.mxu0 0.0
  %301 = vmatpush1.msra.mxu0 0.0
  %302 = vmatprep.subr.mxu0 0.0
  %303 = vmatpush1.msra.mxu0 0.0
  %304 = vmatprep.subr.mxu0 0.0
  %305 = vmatpush1.msra.mxu0 0.0
  %306 = vmatprep.subr.mxu0 0.0
  %307 = vmatpush1.msra.mxu0 0.0
  %308 = vmatprep.subr.mxu0 0.0
  %309 = vmatpush1.msra.mxu0 0.0
  %310 = vmatprep.subr.mxu0 0.0
  %311 = vmatpush1.msra.mxu0 0.0
  %312 = vmatprep.subr.mxu0 0.0
  %313 = vmatpush1.msra.mxu0 0.0
  %314 = vmatprep.subr.mxu0 0.0
  %315 = vmatpush1.msra.mxu0 0.0
  %316 = vmatprep.subr.mxu0 0.0
  %317 = vmatpush1.msra.mxu0 0.0
  %318 = vmatprep.subr.mxu0 0.0
  %319 = vmatpush1.msra.mxu0 0.0
  %320 = vmatprep.subr.mxu0 0.0
  %321 = vmatpush1.msra.mxu0 0.0
  %322 = vmatprep.subr.mxu0 0.0
  %323 = vmatpush1.msra.mxu0 0.0
  %324 = vmatprep.subr.mxu0 0.0
  %325 = vmatpush1.msra.mxu0 0.0
  %326 = vmatprep.subr.mxu0 0.0
  %327 = vmatpush1.msra.mxu0 0.0
  %328 = vmatprep.subr.mxu0 0.0
  %329 = vmatpush1.msra.mxu0 0.0
  %330 = vmatprep.subr.mxu0 0.0
  %331 = vmatpush1.msra.mxu0 0.0
  %332 = vmatprep.subr.mxu0 0.0
  %333 = vmatpush1.msra.mxu0 0.0
  %334 = vmatprep.subr.mxu0 0.0
  %335 = vmatpush1.msra.mxu0 0.0
  %336 = vmatprep.subr.mxu0 0.0
  %337 = vmatpush1.msra.mxu0 0.0
  %338 = vmatprep.subr.mxu0 0.0
  %339 = vmatpush1.msra.mxu0 0.0
  %340 = vmatprep.subr.mxu0 0.0
  %341 = vmatpush1.msra.mxu0 0.0
  %342 = vmatprep.subr.mxu0 0.0
  %343 = vmatpush1.msra.mxu0 0.0
  %344 = vmatprep.subr.mxu0 0.0
  %345 = vmatpush1.msra.mxu0 0.0
  %346 = vmatprep.subr.mxu0 0.0
  %347 = vmatpush1.msra.mxu0 0.0
  %348 = vmatprep.mubr.f32.mxu0 0.0
  %349 = vmatmul.mubr.f32.gmra.mrb[0].mxu0 %v233
  %v350 = vpop.f32.mrb[0].mxu0
  %v351 = vadd.f32 0.0, %v350
  %v352 = vpop.f32.mrb[0].mxu0
  %353 = vmatprep.mubr.f32.mxu0 0.0
  %354 = vmatmul.mubr.f32.gmra.mrb[0].mxu0 %v236
  %v355 = vpop.f32.mrb[0].mxu0
  %v356 = vadd.f32 0.0, %v355
  %v357 = vpop.f32.mrb[0].mxu0
  %358 = vmatprep.mubr.f32.mxu0 0.0
  %359 = vmatmul.mubr.f32.gmra.mrb[0].mxu0 %v239
  %v360 = vpop.f32.mrb[0].mxu0
  %v361 = vadd.f32 0.0, %v360
  %v362 = vpop.f32.mrb[0].mxu0
  %363 = vmatprep.mubr.f32.mxu0 0.0
  %364 = vmatmul.mubr.f32.gmra.mrb[0].mxu0 %v242
  %v365 = vpop.f32.mrb[0].mxu0
  %v366 = vadd.f32 0.0, %v365
  %v367 = vpop.f32.mrb[0].mxu0
  %368 = vmatprep.mubr.f32.mxu0 0.0
  %369 = vmatmul.mubr.f32.gmra.mrb[0].mxu0 %v245
  %v370 = vpop.f32.mrb[0].mxu0
  %v371 = vadd.f32 0.0, %v370
  %v372 = vpop.f32.mrb[0].mxu0
  %373 = vmatprep.mubr.f32.mxu0 0.0
  %374 = vmatmul.mubr.f32.gmra.mrb[0].mxu0 %v248
  %v375 = vpop.f32.mrb[0].mxu0
  %v376 = vadd.f32 0.0, %v375
  %v377 = vpop.f32.mrb[0].mxu0
  %378 = vmatprep.mubr.f32.mxu0 0.0
  %379 = vmatmul.mubr.f32.gmra.mrb[0].mxu0 %v251
  %v380 = vpop.f32.mrb[0].mxu0
  %v381 = vadd.f32 0.0, %v380
  %v382 = vpop.f32.mrb[0].mxu0
  %383 = vmatprep.mubr.f32.mxu0 0.0
  %384 = vmatmul.mubr.f32.gmra.mrb[0].mxu0 %v254
  %v385 = vpop.f32.mrb[0].mxu0
  %v386 = vadd.f32 0.0, %v385
  %v387 = vpop.f32.mrb[0].mxu0
  %388 = vmatprep.mubr.f32.mxu0 0.0
  %389 = vmatmul.mubr.f32.gmra.mrb[0].mxu0 %v257
  %v390 = vpop.f32.mrb[0].mxu0
  %v391 = vadd.f32 0.0, %v390
  %v392 = vpop.f32.mrb[0].mxu0
  %393 = vmatprep.mubr.f32.mxu0 0.0
  %394 = vmatmul.mubr.f32.gmra.mrb[0].mxu0 %v260
  %v395 = vpop.f32.mrb[0].mxu0
  %v396 = vadd.f32 0.0, %v395
  %v397 = vpop.f32.mrb[0].mxu0
  %398 = vmatprep.mubr.f32.mxu0 0.0
  %399 = vmatmul.mubr.f32.gmra.mrb[0].mxu0 %v263
  %v400 = vpop.f32.mrb[0].mxu0
  %v401 = vadd.f32 0.0, %v400
  %v402 = vpop.f32.mrb[0].mxu0
  %403 = vmatprep.mubr.f32.mxu0 0.0
  %404 = vmatmul.mubr.f32.gmra.mrb[0].mxu0 %v266
  %v405 = vpop.f32.mrb[0].mxu0
  %v406 = vadd.f32 0.0, %v405
  %v407 = vpop.f32.mrb[0].mxu0
  %408 = vmatprep.mubr.f32.mxu0 0.0
  %409 = vmatmul.mubr.f32.gmra.mrb[0].mxu0 %v269
  %v410 = vpop.f32.mrb[0].mxu0
  %v411 = vadd.f32 0.0, %v410
  %v412 = vpop.f32.mrb[0].mxu0
  %413 = vmatprep.mubr.f32.mxu0 0.0
  %414 = vmatmul.mubr.f32.gmra.mrb[0].mxu0 %v272
  %v415 = vpop.f32.mrb[0].mxu0
  %v416 = vadd.f32 0.0, %v415
  %v417 = vpop.f32.mrb[0].mxu0
  %418 = vmatprep.mubr.f32.mxu0 0.0
  %419 = vmatmul.mubr.f32.gmra.mrb[0].mxu0 %v275
  %v420 = vpop.f32.mrb[0].mxu0
  %v421 = vadd.f32 0.0, %v420
  %v422 = vpop.f32.mrb[0].mxu0
  %423 = vmatprep.mubr.f32.mxu0 0.0
  %424 = vmatmul.mubr.f32.gmra.mrb[0].mxu0 %v278
  %v425 = vpop.f32.mrb[0].mxu0
  %v426 = vadd.f32 0.0, %v425
  %v427 = vpop.f32.mrb[0].mxu0
  %428 = vdwg.mxu0
  %v430 = vsel %vm138, %v197, 0
  %v433 = vsel %vm138, %v198, 0
  %v436 = vsel %vm138, %v199, 0
  %v439 = vsel %vm138, %v200, 0
  %v442 = vsel %vm138, %v201, 0
  %v445 = vsel %vm138, %v202, 0
  %v448 = vsel %vm138, %v203, 0
  %v451 = vsel %vm138, %v204, 0
  %v454 = vsel %vm138, %v205, 0
  %v457 = vsel %vm138, %v206, 0
  %v460 = vsel %vm138, %v207, 0
  %v463 = vsel %vm138, %v208, 0
  %v466 = vsel %vm138, %v209, 0
  %v469 = vsel %vm138, %v210, 0
  %v472 = vsel %vm138, %v211, 0
  %v475 = vsel %vm138, %v212, 0
  %v478 = vsel %vm280, %v213, 0
  %480 = vmatprep.subr.mxu0 0.0
  %481 = vmatpush1.msra.mxu0 %v478
  %482 = vmatprep.subr.mxu0 0.0
  %483 = vmatpush1.msra.mxu0 0.0
  %484 = vmatprep.subr.mxu0 0.0
  %485 = vmatpush1.msra.mxu0 0.0
  %486 = vmatprep.subr.mxu0 0.0
  %487 = vmatpush1.msra.mxu0 0.0
  %488 = vmatprep.subr.mxu0 0.0
  %489 = vmatpush1.msra.mxu0 0.0
  %490 = vmatprep.subr.mxu0 0.0
  %491 = vmatpush1.msra.mxu0 0.0
  %492 = vmatprep.subr.mxu0 0.0
  %493 = vmatpush1.msra.mxu0 0.0
  %494 = vmatprep.subr.mxu0 0.0
  %495 = vmatpush1.msra.mxu0 0.0
  %496 = vmatprep.subr.mxu0 0.0
  %497 = vmatpush1.msra.mxu0 0.0
  %498 = vmatprep.subr.mxu0 0.0
  %499 = vmatpush1.msra.mxu0 0.0
  %500 = vmatprep.subr.mxu0 0.0
  %501 = vmatpush1.msra.mxu0 0.0
  %502 = vmatprep.subr.mxu0 0.0
  %503 = vmatpush1.msra.mxu0 0.0
  %504 = vmatprep.subr.mxu0 0.0
  %505 = vmatpush1.msra.mxu0 0.0
  %506 = vmatprep.subr.mxu0 0.0
  %507 = vmatpush1.msra.mxu0 0.0
  %508 = vmatprep.subr.mxu0 0.0
  %509 = vmatpush1.msra.mxu0 0.0
  %510 = vmatprep.subr.mxu0 0.0
  %511 = vmatpush1.msra.mxu0 0.0
  %512 = vmatprep.subr.mxu0 0.0
  %513 = vmatpush1.msra.mxu0 0.0
  %514 = vmatprep.subr.mxu0 0.0
  %515 = vmatpush1.msra.mxu0 0.0
  %516 = vmatprep.subr.mxu0 0.0
  %517 = vmatpush1.msra.mxu0 0.0
  %518 = vmatprep.subr.mxu0 0.0
  %519 = vmatpush1.msra.mxu0 0.0
  %520 = vmatprep.subr.mxu0 0.0
  %521 = vmatpush1.msra.mxu0 0.0
  %522 = vmatprep.subr.mxu0 0.0
  %523 = vmatpush1.msra.mxu0 0.0
  %524 = vmatprep.subr.mxu0 0.0
  %525 = vmatpush1.msra.mxu0 0.0
  %526 = vmatprep.subr.mxu0 0.0
  %527 = vmatpush1.msra.mxu0 0.0
  %528 = vmatprep.subr.mxu0 0.0
  %529 = vmatpush1.msra.mxu0 0.0
  %530 = vmatprep.subr.mxu0 0.0
  %531 = vmatpush1.msra.mxu0 0.0
  %532 = vmatprep.subr.mxu0 0.0
  %533 = vmatpush1.msra.mxu0 0.0
  %534 = vmatprep.subr.mxu0 0.0
  %535 = vmatpush1.msra.mxu0 0.0
  %536 = vmatprep.subr.mxu0 0.0
  %537 = vmatpush1.msra.mxu0 0.0
  %538 = vmatprep.subr.mxu0 0.0
  %539 = vmatpush1.msra.mxu0 0.0
  %540 = vmatprep.subr.mxu0 0.0
  %541 = vmatpush1.msra.mxu0 0.0
  %542 = vmatprep.subr.mxu0 0.0
  %543 = vmatpush1.msra.mxu0 0.0
  %544 = vmatprep.mubr.f32.mxu0 0.0
  %545 = vmatmul.mubr.f32.gmra.mrb[0].mxu0 %v430
  %v546 = vpop.f32.mrb[0].mxu0
  %v547 = vadd.f32 %v351, %v546
  %v548 = vpop.f32.mrb[0].mxu0
  %549 = vmatprep.mubr.f32.mxu0 0.0
  %550 = vmatmul.mubr.f32.gmra.mrb[0].mxu0 %v433
  %v551 = vpop.f32.mrb[0].mxu0
  %v552 = vadd.f32 %v356, %v551
  %v553 = vpop.f32.mrb[0].mxu0
  %554 = vmatprep.mubr.f32.mxu0 0.0
  %555 = vmatmul.mubr.f32.gmra.mrb[0].mxu0 %v436
  %v556 = vpop.f32.mrb[0].mxu0
  %v557 = vadd.f32 %v361, %v556
  %v558 = vpop.f32.mrb[0].mxu0
  %559 = vmatprep.mubr.f32.mxu0 0.0
  %560 = vmatmul.mubr.f32.gmra.mrb[0].mxu0 %v439
  %v561 = vpop.f32.mrb[0].mxu0
  %v562 = vadd.f32 %v366, %v561
  %v563 = vpop.f32.mrb[0].mxu0
  %564 = vmatprep.mubr.f32.mxu0 0.0
  %565 = vmatmul.mubr.f32.gmra.mrb[0].mxu0 %v442
  %v566 = vpop.f32.mrb[0].mxu0
  %v567 = vadd.f32 %v371, %v566
  %v568 = vpop.f32.mrb[0].mxu0
  %569 = vmatprep.mubr.f32.mxu0 0.0
  %570 = vmatmul.mubr.f32.gmra.mrb[0].mxu0 %v445
  %v571 = vpop.f32.mrb[0].mxu0
  %v572 = vadd.f32 %v376, %v571
  %v573 = vpop.f32.mrb[0].mxu0
  %574 = vmatprep.mubr.f32.mxu0 0.0
  %575 = vmatmul.mubr.f32.gmra.mrb[0].mxu0 %v448
  %v576 = vpop.f32.mrb[0].mxu0
  %v577 = vadd.f32 %v381, %v576
  %v578 = vpop.f32.mrb[0].mxu0
  %579 = vmatprep.mubr.f32.mxu0 0.0
  %580 = vmatmul.mubr.f32.gmra.mrb[0].mxu0 %v451
  %v581 = vpop.f32.mrb[0].mxu0
  %v582 = vadd.f32 %v386, %v581
  %v583 = vpop.f32.mrb[0].mxu0
  %584 = vmatprep.mubr.f32.mxu0 0.0
  %585 = vmatmul.mubr.f32.gmra.mrb[0].mxu0 %v454
  %v586 = vpop.f32.mrb[0].mxu0
  %v587 = vadd.f32 %v391, %v586
  %v588 = vpop.f32.mrb[0].mxu0
  %589 = vmatprep.mubr.f32.mxu0 0.0
  %590 = vmatmul.mubr.f32.gmra.mrb[0].mxu0 %v457
  %v591 = vpop.f32.mrb[0].mxu0
  %v592 = vadd.f32 %v396, %v591
  %v593 = vpop.f32.mrb[0].mxu0
  %594 = vmatprep.mubr.f32.mxu0 0.0
  %595 = vmatmul.mubr.f32.gmra.mrb[0].mxu0 %v460
  %v596 = vpop.f32.mrb[0].mxu0
  %v597 = vadd.f32 %v401, %v596
  %v598 = vpop.f32.mrb[0].mxu0
  %599 = vmatprep.mubr.f32.mxu0 0.0
  %600 = vmatmul.mubr.f32.gmra.mrb[0].mxu0 %v463
  %v601 = vpop.f32.mrb[0].mxu0
  %v602 = vadd.f32 %v406, %v601
  %v603 = vpop.f32.mrb[0].mxu0
  %604 = vmatprep.mubr.f32.mxu0 0.0
  %605 = vmatmul.mubr.f32.gmra.mrb[0].mxu0 %v466
  %v606 = vpop.f32.mrb[0].mxu0
  %v607 = vadd.f32 %v411, %v606
  %v608 = vpop.f32.mrb[0].mxu0
  %609 = vmatprep.mubr.f32.mxu0 0.0
  %610 = vmatmul.mubr.f32.gmra.mrb[0].mxu0 %v469
  %v611 = vpop.f32.mrb[0].mxu0
  %v612 = vadd.f32 %v416, %v611
  %v613 = vpop.f32.mrb[0].mxu0
  %614 = vmatprep.mubr.f32.mxu0 0.0
  %615 = vmatmul.mubr.f32.gmra.mrb[0].mxu0 %v472
  %v616 = vpop.f32.mrb[0].mxu0
  %v617 = vadd.f32 %v421, %v616
  %v618 = vpop.f32.mrb[0].mxu0
  %619 = vmatprep.mubr.f32.mxu0 0.0
  %620 = vmatmul.mubr.f32.gmra.mrb[0].mxu0 %v475
  %v621 = vpop.f32.mrb[0].mxu0
  %v622 = vadd.f32 %v426, %v621
  %v623 = vpop.f32.mrb[0].mxu0
  %624 = vdwg.mxu0
  %v625 = vld [vmem:[#allocation2 + $0x2] sm:$0xff]
  %v626 = vld [vmem:[#allocation2 + $0x12] sm:$0xff]
  %v627 = vld [vmem:[#allocation2 + $0x22] sm:$0xff]
  %v628 = vld [vmem:[#allocation2 + $0x32] sm:$0xff]
  %v629 = vld [vmem:[#allocation2 + $0x42] sm:$0xff]
  %v630 = vld [vmem:[#allocation2 + $0x52] sm:$0xff]
  %v631 = vld [vmem:[#allocation2 + $0x62] sm:$0xff]
  %v632 = vld [vmem:[#allocation2 + $0x72] sm:$0xff]
  %v633 = vld [vmem:[#allocation2 + $0xa2] sm:$0xff]
  %v634 = vld [vmem:[#allocation2 + $0xb2] sm:$0xff]
  %v635 = vld [vmem:[#allocation2 + $0xc2] sm:$0xff]
  %v636 = vld [vmem:[#allocation2 + $0xd2] sm:$0xff]
  %v637 = vld [vmem:[#allocation2 + $0xe2] sm:$0xff]
  %v638 = vld [vmem:[#allocation2 + $0xf2] sm:$0xff]
  %v639 = vld [vmem:[#allocation2 + $0x102] sm:$0xff]
  %v640 = vld [vmem:[#allocation2 + $0x112] sm:$0xff]
  %s641 = scalar_lea.vmem %s1, 8
  %v642 = vld [vmem:[%s641] sm:$0xf]
  %v644 = vsel %vm138, %v625, 0
  %v647 = vsel %vm138, %v626, 0
  %v650 = vsel %vm138, %v627, 0
  %v653 = vsel %vm138, %v628, 0
  %v656 = vsel %vm138, %v629, 0
  %v659 = vsel %vm138, %v630, 0
  %v662 = vsel %vm138, %v631, 0
  %v665 = vsel %vm138, %v632, 0
  %v668 = vsel %vm138, %v633, 0
  %v671 = vsel %vm138, %v634, 0
  %v674 = vsel %vm138, %v635, 0
  %v677 = vsel %vm138, %v636, 0
  %v680 = vsel %vm138, %v637, 0
  %v683 = vsel %vm138, %v638, 0
  %v686 = vsel %vm138, %v639, 0
  %v689 = vsel %vm138, %v640, 0
  %v692 = vsel %vm280, %v642, 0
  %694 = vmatprep.subr.mxu0 0.0
  %695 = vmatpush1.msra.mxu0 %v692
  %696 = vmatprep.subr.mxu0 0.0
  %697 = vmatpush1.msra.mxu0 0.0
  %698 = vmatprep.subr.mxu0 0.0
  %699 = vmatpush1.msra.mxu0 0.0
  %700 = vmatprep.subr.mxu0 0.0
  %701 = vmatpush1.msra.mxu0 0.0
  %702 = vmatprep.subr.mxu0 0.0
  %703 = vmatpush1.msra.mxu0 0.0
  %704 = vmatprep.subr.mxu0 0.0
  %705 = vmatpush1.msra.mxu0 0.0
  %706 = vmatprep.subr.mxu0 0.0
  %707 = vmatpush1.msra.mxu0 0.0
  %708 = vmatprep.subr.mxu0 0.0
  %709 = vmatpush1.msra.mxu0 0.0
  %710 = vmatprep.subr.mxu0 0.0
  %711 = vmatpush1.msra.mxu0 0.0
  %712 = vmatprep.subr.mxu0 0.0
  %713 = vmatpush1.msra.mxu0 0.0
  %714 = vmatprep.subr.mxu0 0.0
  %715 = vmatpush1.msra.mxu0 0.0
  %716 = vmatprep.subr.mxu0 0.0
  %717 = vmatpush1.msra.mxu0 0.0
  %718 = vmatprep.subr.mxu0 0.0
  %719 = vmatpush1.msra.mxu0 0.0
  %720 = vmatprep.subr.mxu0 0.0
  %721 = vmatpush1.msra.mxu0 0.0
  %722 = vmatprep.subr.mxu0 0.0
  %723 = vmatpush1.msra.mxu0 0.0
  %724 = vmatprep.subr.mxu0 0.0
  %725 = vmatpush1.msra.mxu0 0.0
  %726 = vmatprep.subr.mxu0 0.0
  %727 = vmatpush1.msra.mxu0 0.0
  %728 = vmatprep.subr.mxu0 0.0
  %729 = vmatpush1.msra.mxu0 0.0
  %730 = vmatprep.subr.mxu0 0.0
  %731 = vmatpush1.msra.mxu0 0.0
  %732 = vmatprep.subr.mxu0 0.0
  %733 = vmatpush1.msra.mxu0 0.0
  %734 = vmatprep.subr.mxu0 0.0
  %735 = vmatpush1.msra.mxu0 0.0
  %736 = vmatprep.subr.mxu0 0.0
  %737 = vmatpush1.msra.mxu0 0.0
  %738 = vmatprep.subr.mxu0 0.0
  %739 = vmatpush1.msra.mxu0 0.0
  %740 = vmatprep.subr.mxu0 0.0
  %741 = vmatpush1.msra.mxu0 0.0
  %742 = vmatprep.subr.mxu0 0.0
  %743 = vmatpush1.msra.mxu0 0.0
  %744 = vmatprep.subr.mxu0 0.0
  %745 = vmatpush1.msra.mxu0 0.0
  %746 = vmatprep.subr.mxu0 0.0
  %747 = vmatpush1.msra.mxu0 0.0
  %748 = vmatprep.subr.mxu0 0.0
  %749 = vmatpush1.msra.mxu0 0.0
  %750 = vmatprep.subr.mxu0 0.0
  %751 = vmatpush1.msra.mxu0 0.0
  %752 = vmatprep.subr.mxu0 0.0
  %753 = vmatpush1.msra.mxu0 0.0
  %754 = vmatprep.subr.mxu0 0.0
  %755 = vmatpush1.msra.mxu0 0.0
  %756 = vmatprep.subr.mxu0 0.0
  %757 = vmatpush1.msra.mxu0 0.0
  %758 = vmatprep.mubr.f32.mxu0 0.0
  %759 = vmatmul.mubr.f32.gmra.mrb[0].mxu0 %v644
  %v760 = vpop.f32.mrb[0].mxu0
  %v761 = vadd.f32 0.0, %v760
  %v762 = vpop.f32.mrb[0].mxu0
  %763 = vmatprep.mubr.f32.mxu0 0.0
  %764 = vmatmul.mubr.f32.gmra.mrb[0].mxu0 %v647
  %v765 = vpop.f32.mrb[0].mxu0
  %v766 = vadd.f32 0.0, %v765
  %v767 = vpop.f32.mrb[0].mxu0
  %768 = vmatprep.mubr.f32.mxu0 0.0
  %769 = vmatmul.mubr.f32.gmra.mrb[0].mxu0 %v650
  %v770 = vpop.f32.mrb[0].mxu0
  %v771 = vadd.f32 0.0, %v770
  %v772 = vpop.f32.mrb[0].mxu0
  %773 = vmatprep.mubr.f32.mxu0 0.0
  %774 = vmatmul.mubr.f32.gmra.mrb[0].mxu0 %v653
  %v775 = vpop.f32.mrb[0].mxu0
  %v776 = vadd.f32 0.0, %v775
  %v777 = vpop.f32.mrb[0].mxu0
  %778 = vmatprep.mubr.f32.mxu0 0.0
  %779 = vmatmul.mubr.f32.gmra.mrb[0].mxu0 %v656
  %v780 = vpop.f32.mrb[0].mxu0
  %v781 = vadd.f32 0.0, %v780
  %v782 = vpop.f32.mrb[0].mxu0
  %783 = vmatprep.mubr.f32.mxu0 0.0
  %784 = vmatmul.mubr.f32.gmra.mrb[0].mxu0 %v659
  %v785 = vpop.f32.mrb[0].mxu0
  %v786 = vadd.f32 0.0, %v785
  %v787 = vpop.f32.mrb[0].mxu0
  %788 = vmatprep.mubr.f32.mxu0 0.0
  %789 = vmatmul.mubr.f32.gmra.mrb[0].mxu0 %v662
  %v790 = vpop.f32.mrb[0].mxu0
  %v791 = vadd.f32 0.0, %v790
  %v792 = vpop.f32.mrb[0].mxu0
  %793 = vmatprep.mubr.f32.mxu0 0.0
  %794 = vmatmul.mubr.f32.gmra.mrb[0].mxu0 %v665
  %v795 = vpop.f32.mrb[0].mxu0
  %v796 = vadd.f32 0.0, %v795
  %v797 = vpop.f32.mrb[0].mxu0
  %798 = vmatprep.mubr.f32.mxu0 0.0
  %799 = vmatmul.mubr.f32.gmra.mrb[0].mxu0 %v668
  %v800 = vpop.f32.mrb[0].mxu0
  %v801 = vadd.f32 0.0, %v800
  %v802 = vpop.f32.mrb[0].mxu0
  %803 = vmatprep.mubr.f32.mxu0 0.0
  %804 = vmatmul.mubr.f32.gmra.mrb[0].mxu0 %v671
  %v805 = vpop.f32.mrb[0].mxu0
  %v806 = vadd.f32 0.0, %v805
  %v807 = vpop.f32.mrb[0].mxu0
  %808 = vmatprep.mubr.f32.mxu0 0.0
  %809 = vmatmul.mubr.f32.gmra.mrb[0].mxu0 %v674
  %v810 = vpop.f32.mrb[0].mxu0
  %v811 = vadd.f32 0.0, %v810
  %v812 = vpop.f32.mrb[0].mxu0
  %813 = vmatprep.mubr.f32.mxu0 0.0
  %814 = vmatmul.mubr.f32.gmra.mrb[0].mxu0 %v677
  %v815 = vpop.f32.mrb[0].mxu0
  %v816 = vadd.f32 0.0, %v815
  %v817 = vpop.f32.mrb[0].mxu0
  %818 = vmatprep.mubr.f32.mxu0 0.0
  %819 = vmatmul.mubr.f32.gmra.mrb[0].mxu0 %v680
  %v820 = vpop.f32.mrb[0].mxu0
  %v821 = vadd.f32 0.0, %v820
  %v822 = vpop.f32.mrb[0].mxu0
  %823 = vmatprep.mubr.f32.mxu0 0.0
  %824 = vmatmul.mubr.f32.gmra.mrb[0].mxu0 %v683
  %v825 = vpop.f32.mrb[0].mxu0
  %v826 = vadd.f32 0.0, %v825
  %v827 = vpop.f32.mrb[0].mxu0
  %828 = vmatprep.mubr.f32.mxu0 0.0
  %829 = vmatmul.mubr.f32.gmra.mrb[0].mxu0 %v686
  %v830 = vpop.f32.mrb[0].mxu0
  %v831 = vadd.f32 0.0, %v830
  %v832 = vpop.f32.mrb[0].mxu0
  %833 = vmatprep.mubr.f32.mxu0 0.0
  %834 = vmatmul.mubr.f32.gmra.mrb[0].mxu0 %v689
  %v835 = vpop.f32.mrb[0].mxu0
  %v836 = vadd.f32 0.0, %v835
  %v837 = vpop.f32.mrb[0].mxu0
  %838 = vdwg.mxu0
  %v839 = vadd.f32 %v547, %v761
  %v840 = vadd.f32 %v552, %v766
  %v841 = vadd.f32 %v557, %v771
  %v842 = vadd.f32 %v562, %v776
  %v843 = vadd.f32 %v567, %v781
  %v844 = vadd.f32 %v572, %v786
  %v845 = vadd.f32 %v577, %v791
  %v846 = vadd.f32 %v582, %v796
  %v847 = vadd.f32 %v587, %v801
  %v848 = vadd.f32 %v592, %v806
  %v849 = vadd.f32 %v597, %v811
  %v850 = vadd.f32 %v602, %v816
  %v851 = vadd.f32 %v607, %v821
  %v852 = vadd.f32 %v612, %v826
  %v853 = vadd.f32 %v617, %v831
  %v854 = vadd.f32 %v622, %v836
  %v855 = vld [vmem:[%s180] sm:$0xff]
  %v856 = vld [vmem:[%s180 + $0x10] sm:$0xff]
  %v857 = vld [vmem:[%s180 + $0x20] sm:$0xff]
  %v858 = vld [vmem:[%s180 + $0x30] sm:$0xff]
  %v859 = vld [vmem:[%s180 + $0x40] sm:$0xff]
  %v860 = vld [vmem:[%s180 + $0x50] sm:$0xff]
  %v861 = vld [vmem:[%s180 + $0x60] sm:$0xff]
  %v862 = vld [vmem:[%s180 + $0x70] sm:$0xff]
  %v863 = vld [vmem:[%s180 + $0xa0] sm:$0xff]
  %v864 = vld [vmem:[%s180 + $0xb0] sm:$0xff]
  %v865 = vld [vmem:[%s180 + $0xc0] sm:$0xff]
  %v866 = vld [vmem:[%s180 + $0xd0] sm:$0xff]
  %v867 = vld [vmem:[%s180 + $0xe0] sm:$0xff]
  %v868 = vld [vmem:[%s180 + $0xf0] sm:$0xff]
  %v869 = vld [vmem:[%s180 + $0x100] sm:$0xff]
  %v870 = vld [vmem:[%s180 + $0x110] sm:$0xff]
  %s871 = scalar_lea.vmem %s1, 12
  %v872 = vld [vmem:[%s871] sm:$0xf]
  %v874 = vsel %vm138, %v855, 0
  %v877 = vsel %vm138, %v856, 0
  %v880 = vsel %vm138, %v857, 0
  %v883 = vsel %vm138, %v858, 0
  %v886 = vsel %vm138, %v859, 0
  %v889 = vsel %vm138, %v860, 0
  %v892 = vsel %vm138, %v861, 0
  %v895 = vsel %vm138, %v862, 0
  %v898 = vsel %vm138, %v863, 0
  %v901 = vsel %vm138, %v864, 0
  %v904 = vsel %vm138, %v865, 0
  %v907 = vsel %vm138, %v866, 0
  %v910 = vsel %vm138, %v867, 0
  %v913 = vsel %vm138, %v868, 0
  %v916 = vsel %vm138, %v869, 0
  %v919 = vsel %vm138, %v870, 0
  %v922 = vsel %vm280, %v872, 0
  %924 = vmatprep.subr.mxu0 0.0
  %925 = vmatpush1.msra.mxu0 %v922
  %926 = vmatprep.subr.mxu0 0.0
  %927 = vmatpush1.msra.mxu0 0.0
  %928 = vmatprep.subr.mxu0 0.0
  %929 = vmatpush1.msra.mxu0 0.0
  %930 = vmatprep.subr.mxu0 0.0
  %931 = vmatpush1.msra.mxu0 0.0
  %932 = vmatprep.subr.mxu0 0.0
  %933 = vmatpush1.msra.mxu0 0.0
  %934 = vmatprep.subr.mxu0 0.0
  %935 = vmatpush1.msra.mxu0 0.0
  %936 = vmatprep.subr.mxu0 0.0
  %937 = vmatpush1.msra.mxu0 0.0
  %938 = vmatprep.subr.mxu0 0.0
  %939 = vmatpush1.msra.mxu0 0.0
  %940 = vmatprep.subr.mxu0 0.0
  %941 = vmatpush1.msra.mxu0 0.0
  %942 = vmatprep.subr.mxu0 0.0
  %943 = vmatpush1.msra.mxu0 0.0
  %944 = vmatprep.subr.mxu0 0.0
  %945 = vmatpush1.msra.mxu0 0.0
  %946 = vmatprep.subr.mxu0 0.0
  %947 = vmatpush1.msra.mxu0 0.0
  %948 = vmatprep.subr.mxu0 0.0
  %949 = vmatpush1.msra.mxu0 0.0
  %950 = vmatprep.subr.mxu0 0.0
  %951 = vmatpush1.msra.mxu0 0.0
  %952 = vmatprep.subr.mxu0 0.0
  %953 = vmatpush1.msra.mxu0 0.0
  %954 = vmatprep.subr.mxu0 0.0
  %955 = vmatpush1.msra.mxu0 0.0
  %956 = vmatprep.subr.mxu0 0.0
  %957 = vmatpush1.msra.mxu0 0.0
  %958 = vmatprep.subr.mxu0 0.0
  %959 = vmatpush1.msra.mxu0 0.0
  %960 = vmatprep.subr.mxu0 0.0
  %961 = vmatpush1.msra.mxu0 0.0
  %962 = vmatprep.subr.mxu0 0.0
  %963 = vmatpush1.msra.mxu0 0.0
  %964 = vmatprep.subr.mxu0 0.0
  %965 = vmatpush1.msra.mxu0 0.0
  %966 = vmatprep.subr.mxu0 0.0
  %967 = vmatpush1.msra.mxu0 0.0
  %968 = vmatprep.subr.mxu0 0.0
  %969 = vmatpush1.msra.mxu0 0.0
  %970 = vmatprep.subr.mxu0 0.0
  %971 = vmatpush1.msra.mxu0 0.0
  %972 = vmatprep.subr.mxu0 0.0
  %973 = vmatpush1.msra.mxu0 0.0
  %974 = vmatprep.subr.mxu0 0.0
  %975 = vmatpush1.msra.mxu0 0.0
  %976 = vmatprep.subr.mxu0 0.0
  %977 = vmatpush1.msra.mxu0 0.0
  %978 = vmatprep.subr.mxu0 0.0
  %979 = vmatpush1.msra.mxu0 0.0
  %980 = vmatprep.subr.mxu0 0.0
  %981 = vmatpush1.msra.mxu0 0.0
  %982 = vmatprep.subr.mxu0 0.0
  %983 = vmatpush1.msra.mxu0 0.0
  %984 = vmatprep.subr.mxu0 0.0
  %985 = vmatpush1.msra.mxu0 0.0
  %986 = vmatprep.subr.mxu0 0.0
  %987 = vmatpush1.msra.mxu0 0.0
  %988 = vmatprep.mubr.f32.mxu0 0.0
  %989 = vmatmul.mubr.f32.gmra.mrb[0].mxu0 %v874
  %v990 = vpop.f32.mrb[0].mxu0
  %v991 = vadd.f32 0.0, %v990
  %v992 = vpop.f32.mrb[0].mxu0
  %993 = vmatprep.mubr.f32.mxu0 0.0
  %994 = vmatmul.mubr.f32.gmra.mrb[0].mxu0 %v877
  %v995 = vpop.f32.mrb[0].mxu0
  %v996 = vadd.f32 0.0, %v995
  %v997 = vpop.f32.mrb[0].mxu0
  %998 = vmatprep.mubr.f32.mxu0 0.0
  %999 = vmatmul.mubr.f32.gmra.mrb[0].mxu0 %v880
  %v1000 = vpop.f32.mrb[0].mxu0
  %v1001 = vadd.f32 0.0, %v1000
  %v1002 = vpop.f32.mrb[0].mxu0
  %1003 = vmatprep.mubr.f32.mxu0 0.0
  %1004 = vmatmul.mubr.f32.gmra.mrb[0].mxu0 %v883
  %v1005 = vpop.f32.mrb[0].mxu0
  %v1006 = vadd.f32 0.0, %v1005
  %v1007 = vpop.f32.mrb[0].mxu0
  %1008 = vmatprep.mubr.f32.mxu0 0.0
  %1009 = vmatmul.mubr.f32.gmra.mrb[0].mxu0 %v886
  %v1010 = vpop.f32.mrb[0].mxu0
  %v1011 = vadd.f32 0.0, %v1010
  %v1012 = vpop.f32.mrb[0].mxu0
  %1013 = vmatprep.mubr.f32.mxu0 0.0
  %1014 = vmatmul.mubr.f32.gmra.mrb[0].mxu0 %v889
  %v1015 = vpop.f32.mrb[0].mxu0
  %v1016 = vadd.f32 0.0, %v1015
  %v1017 = vpop.f32.mrb[0].mxu0
  %1018 = vmatprep.mubr.f32.mxu0 0.0
  %1019 = vmatmul.mubr.f32.gmra.mrb[0].mxu0 %v892
  %v1020 = vpop.f32.mrb[0].mxu0
  %v1021 = vadd.f32 0.0, %v1020
  %v1022 = vpop.f32.mrb[0].mxu0
  %1023 = vmatprep.mubr.f32.mxu0 0.0
  %1024 = vmatmul.mubr.f32.gmra.mrb[0].mxu0 %v895
  %v1025 = vpop.f32.mrb[0].mxu0
  %v1026 = vadd.f32 0.0, %v1025
  %v1027 = vpop.f32.mrb[0].mxu0
  %1028 = vmatprep.mubr.f32.mxu0 0.0
  %1029 = vmatmul.mubr.f32.gmra.mrb[0].mxu0 %v898
  %v1030 = vpop.f32.mrb[0].mxu0
  %v1031 = vadd.f32 0.0, %v1030
  %v1032 = vpop.f32.mrb[0].mxu0
  %1033 = vmatprep.mubr.f32.mxu0 0.0
  %1034 = vmatmul.mubr.f32.gmra.mrb[0].mxu0 %v901
  %v1035 = vpop.f32.mrb[0].mxu0
  %v1036 = vadd.f32 0.0, %v1035
  %v1037 = vpop.f32.mrb[0].mxu0
  %1038 = vmatprep.mubr.f32.mxu0 0.0
  %1039 = vmatmul.mubr.f32.gmra.mrb[0].mxu0 %v904
  %v1040 = vpop.f32.mrb[0].mxu0
  %v1041 = vadd.f32 0.0, %v1040
  %v1042 = vpop.f32.mrb[0].mxu0
  %1043 = vmatprep.mubr.f32.mxu0 0.0
  %1044 = vmatmul.mubr.f32.gmra.mrb[0].mxu0 %v907
  %v1045 = vpop.f32.mrb[0].mxu0
  %v1046 = vadd.f32 0.0, %v1045
  %v1047 = vpop.f32.mrb[0].mxu0
  %1048 = vmatprep.mubr.f32.mxu0 0.0
  %1049 = vmatmul.mubr.f32.gmra.mrb[0].mxu0 %v910
  %v1050 = vpop.f32.mrb[0].mxu0
  %v1051 = vadd.f32 0.0, %v1050
  %v1052 = vpop.f32.mrb[0].mxu0
  %1053 = vmatprep.mubr.f32.mxu0 0.0
  %1054 = vmatmul.mubr.f32.gmra.mrb[0].mxu0 %v913
  %v1055 = vpop.f32.mrb[0].mxu0
  %v1056 = vadd.f32 0.0, %v1055
  %v1057 = vpop.f32.mrb[0].mxu0
  %1058 = vmatprep.mubr.f32.mxu0 0.0
  %1059 = vmatmul.mubr.f32.gmra.mrb[0].mxu0 %v916
  %v1060 = vpop.f32.mrb[0].mxu0
  %v1061 = vadd.f32 0.0, %v1060
  %v1062 = vpop.f32.mrb[0].mxu0
  %1063 = vmatprep.mubr.f32.mxu0 0.0
  %1064 = vmatmul.mubr.f32.gmra.mrb[0].mxu0 %v919
  %v1065 = vpop.f32.mrb[0].mxu0
  %v1066 = vadd.f32 0.0, %v1065
  %v1067 = vpop.f32.mrb[0].mxu0
  %1068 = vdwg.mxu0
  %v1069 = vadd.f32 %v839, %v991
  %v1070 = vadd.f32 %v840, %v996
  %v1071 = vadd.f32 %v841, %v1001
  %v1072 = vadd.f32 %v842, %v1006
  %v1073 = vadd.f32 %v843, %v1011
  %v1074 = vadd.f32 %v844, %v1016
  %v1075 = vadd.f32 %v845, %v1021
  %v1076 = vadd.f32 %v846, %v1026
  %v1077 = vadd.f32 %v847, %v1031
  %v1078 = vadd.f32 %v848, %v1036
  %v1079 = vadd.f32 %v849, %v1041
  %v1080 = vadd.f32 %v850, %v1046
  %v1081 = vadd.f32 %v851, %v1051
  %v1082 = vadd.f32 %v852, %v1056
  %v1083 = vadd.f32 %v853, %v1061
  %v1084 = vadd.f32 %v854, %v1066
  %v1085 = vld [vmem:[%s180 + $0x1] sm:$0xff]
  %v1086 = vld [vmem:[%s180 + $0x11] sm:$0xff]
  %v1087 = vld [vmem:[%s180 + $0x21] sm:$0xff]
  %v1088 = vld [vmem:[%s180 + $0x31] sm:$0xff]
  %v1089 = vld [vmem:[%s180 + $0x41] sm:$0xff]
  %v1090 = vld [vmem:[%s180 + $0x51] sm:$0xff]
  %v1091 = vld [vmem:[%s180 + $0x61] sm:$0xff]
  %v1092 = vld [vmem:[%s180 + $0x71] sm:$0xff]
  %v1093 = vld [vmem:[%s180 + $0xa1] sm:$0xff]
  %v1094 = vld [vmem:[%s180 + $0xb1] sm:$0xff]
  %v1095 = vld [vmem:[%s180 + $0xc1] sm:$0xff]
  %v1096 = vld [vmem:[%s180 + $0xd1] sm:$0xff]
  %v1097 = vld [vmem:[%s180 + $0xe1] sm:$0xff]
  %v1098 = vld [vmem:[%s180 + $0xf1] sm:$0xff]
  %v1099 = vld [vmem:[%s180 + $0x101] sm:$0xff]
  %v1100 = vld [vmem:[%s180 + $0x111] sm:$0xff]
  %s1101 = scalar_lea.vmem %s1, 16
  %v1102 = vld [vmem:[%s1101] sm:$0xf]
  %v1104 = vsel %vm138, %v1085, 0
  %v1107 = vsel %vm138, %v1086, 0
  %v1110 = vsel %vm138, %v1087, 0
  %v1113 = vsel %vm138, %v1088, 0
  %v1116 = vsel %vm138, %v1089, 0
  %v1119 = vsel %vm138, %v1090, 0
  %v1122 = vsel %vm138, %v1091, 0
  %v1125 = vsel %vm138, %v1092, 0
  %v1128 = vsel %vm138, %v1093, 0
  %v1131 = vsel %vm138, %v1094, 0
  %v1134 = vsel %vm138, %v1095, 0
  %v1137 = vsel %vm138, %v1096, 0
  %v1140 = vsel %vm138, %v1097, 0
  %v1143 = vsel %vm138, %v1098, 0
  %v1146 = vsel %vm138, %v1099, 0
  %v1149 = vsel %vm138, %v1100, 0
  %v1152 = vsel %vm280, %v1102, 0
  %1154 = vmatprep.subr.mxu0 0.0
  %1155 = vmatpush1.msra.mxu0 %v1152
  %1156 = vmatprep.subr.mxu0 0.0
  %1157 = vmatpush1.msra.mxu0 0.0
  %1158 = vmatprep.subr.mxu0 0.0
  %1159 = vmatpush1.msra.mxu0 0.0
  %1160 = vmatprep.subr.mxu0 0.0
  %1161 = vmatpush1.msra.mxu0 0.0
  %1162 = vmatprep.subr.mxu0 0.0
  %1163 = vmatpush1.msra.mxu0 0.0
  %1164 = vmatprep.subr.mxu0 0.0
  %1165 = vmatpush1.msra.mxu0 0.0
  %1166 = vmatprep.subr.mxu0 0.0
  %1167 = vmatpush1.msra.mxu0 0.0
  %1168 = vmatprep.subr.mxu0 0.0
  %1169 = vmatpush1.msra.mxu0 0.0
  %1170 = vmatprep.subr.mxu0 0.0
  %1171 = vmatpush1.msra.mxu0 0.0
  %1172 = vmatprep.subr.mxu0 0.0
  %1173 = vmatpush1.msra.mxu0 0.0
  %1174 = vmatprep.subr.mxu0 0.0
  %1175 = vmatpush1.msra.mxu0 0.0
  %1176 = vmatprep.subr.mxu0 0.0
  %1177 = vmatpush1.msra.mxu0 0.0
  %1178 = vmatprep.subr.mxu0 0.0
  %1179 = vmatpush1.msra.mxu0 0.0
  %1180 = vmatprep.subr.mxu0 0.0
  %1181 = vmatpush1.msra.mxu0 0.0
  %1182 = vmatprep.subr.mxu0 0.0
  %1183 = vmatpush1.msra.mxu0 0.0
  %1184 = vmatprep.subr.mxu0 0.0
  %1185 = vmatpush1.msra.mxu0 0.0
  %1186 = vmatprep.subr.mxu0 0.0
  %1187 = vmatpush1.msra.mxu0 0.0
  %1188 = vmatprep.subr.mxu0 0.0
  %1189 = vmatpush1.msra.mxu0 0.0
  %1190 = vmatprep.subr.mxu0 0.0
  %1191 = vmatpush1.msra.mxu0 0.0
  %1192 = vmatprep.subr.mxu0 0.0
  %1193 = vmatpush1.msra.mxu0 0.0
  %1194 = vmatprep.subr.mxu0 0.0
  %1195 = vmatpush1.msra.mxu0 0.0
  %1196 = vmatprep.subr.mxu0 0.0
  %1197 = vmatpush1.msra.mxu0 0.0
  %1198 = vmatprep.subr.mxu0 0.0
  %1199 = vmatpush1.msra.mxu0 0.0
  %1200 = vmatprep.subr.mxu0 0.0
  %1201 = vmatpush1.msra.mxu0 0.0
  %1202 = vmatprep.subr.mxu0 0.0
  %1203 = vmatpush1.msra.mxu0 0.0
  %1204 = vmatprep.subr.mxu0 0.0
  %1205 = vmatpush1.msra.mxu0 0.0
  %1206 = vmatprep.subr.mxu0 0.0
  %1207 = vmatpush1.msra.mxu0 0.0
  %1208 = vmatprep.subr.mxu0 0.0
  %1209 = vmatpush1.msra.mxu0 0.0
  %1210 = vmatprep.subr.mxu0 0.0
  %1211 = vmatpush1.msra.mxu0 0.0
  %1212 = vmatprep.subr.mxu0 0.0
  %1213 = vmatpush1.msra.mxu0 0.0
  %1214 = vmatprep.subr.mxu0 0.0
  %1215 = vmatpush1.msra.mxu0 0.0
  %1216 = vmatprep.subr.mxu0 0.0
  %1217 = vmatpush1.msra.mxu0 0.0
  %1218 = vmatprep.mubr.f32.mxu0 0.0
  %1219 = vmatmul.mubr.f32.gmra.mrb[0].mxu0 %v1104
  %v1220 = vpop.f32.mrb[0].mxu0
  %v1221 = vadd.f32 0.0, %v1220
  %v1222 = vpop.f32.mrb[0].mxu0
  %1223 = vmatprep.mubr.f32.mxu0 0.0
  %1224 = vmatmul.mubr.f32.gmra.mrb[0].mxu0 %v1107
  %v1225 = vpop.f32.mrb[0].mxu0
  %v1226 = vadd.f32 0.0, %v1225
  %v1227 = vpop.f32.mrb[0].mxu0
  %1228 = vmatprep.mubr.f32.mxu0 0.0
  %1229 = vmatmul.mubr.f32.gmra.mrb[0].mxu0 %v1110
  %v1230 = vpop.f32.mrb[0].mxu0
  %v1231 = vadd.f32 0.0, %v1230
  %v1232 = vpop.f32.mrb[0].mxu0
  %1233 = vmatprep.mubr.f32.mxu0 0.0
  %1234 = vmatmul.mubr.f32.gmra.mrb[0].mxu0 %v1113
  %v1235 = vpop.f32.mrb[0].mxu0
  %v1236 = vadd.f32 0.0, %v1235
  %v1237 = vpop.f32.mrb[0].mxu0
  %1238 = vmatprep.mubr.f32.mxu0 0.0
  %1239 = vmatmul.mubr.f32.gmra.mrb[0].mxu0 %v1116
  %v1240 = vpop.f32.mrb[0].mxu0
  %v1241 = vadd.f32 0.0, %v1240
  %v1242 = vpop.f32.mrb[0].mxu0
  %1243 = vmatprep.mubr.f32.mxu0 0.0
  %1244 = vmatmul.mubr.f32.gmra.mrb[0].mxu0 %v1119
  %v1245 = vpop.f32.mrb[0].mxu0
  %v1246 = vadd.f32 0.0, %v1245
  %v1247 = vpop.f32.mrb[0].mxu0
  %1248 = vmatprep.mubr.f32.mxu0 0.0
  %1249 = vmatmul.mubr.f32.gmra.mrb[0].mxu0 %v1122
  %v1250 = vpop.f32.mrb[0].mxu0
  %v1251 = vadd.f32 0.0, %v1250
  %v1252 = vpop.f32.mrb[0].mxu0
  %1253 = vmatprep.mubr.f32.mxu0 0.0
  %1254 = vmatmul.mubr.f32.gmra.mrb[0].mxu0 %v1125
  %v1255 = vpop.f32.mrb[0].mxu0
  %v1256 = vadd.f32 0.0, %v1255
  %v1257 = vpop.f32.mrb[0].mxu0
  %1258 = vmatprep.mubr.f32.mxu0 0.0
  %1259 = vmatmul.mubr.f32.gmra.mrb[0].mxu0 %v1128
  %v1260 = vpop.f32.mrb[0].mxu0
  %v1261 = vadd.f32 0.0, %v1260
  %v1262 = vpop.f32.mrb[0].mxu0
  %1263 = vmatprep.mubr.f32.mxu0 0.0
  %1264 = vmatmul.mubr.f32.gmra.mrb[0].mxu0 %v1131
  %v1265 = vpop.f32.mrb[0].mxu0
  %v1266 = vadd.f32 0.0, %v1265
  %v1267 = vpop.f32.mrb[0].mxu0
  %1268 = vmatprep.mubr.f32.mxu0 0.0
  %1269 = vmatmul.mubr.f32.gmra.mrb[0].mxu0 %v1134
  %v1270 = vpop.f32.mrb[0].mxu0
  %v1271 = vadd.f32 0.0, %v1270
  %v1272 = vpop.f32.mrb[0].mxu0
  %1273 = vmatprep.mubr.f32.mxu0 0.0
  %1274 = vmatmul.mubr.f32.gmra.mrb[0].mxu0 %v1137
  %v1275 = vpop.f32.mrb[0].mxu0
  %v1276 = vadd.f32 0.0, %v1275
  %v1277 = vpop.f32.mrb[0].mxu0
  %1278 = vmatprep.mubr.f32.mxu0 0.0
  %1279 = vmatmul.mubr.f32.gmra.mrb[0].mxu0 %v1140
  %v1280 = vpop.f32.mrb[0].mxu0
  %v1281 = vadd.f32 0.0, %v1280
  %v1282 = vpop.f32.mrb[0].mxu0
  %1283 = vmatprep.mubr.f32.mxu0 0.0
  %1284 = vmatmul.mubr.f32.gmra.mrb[0].mxu0 %v1143
  %v1285 = vpop.f32.mrb[0].mxu0
  %v1286 = vadd.f32 0.0, %v1285
  %v1287 = vpop.f32.mrb[0].mxu0
  %1288 = vmatprep.mubr.f32.mxu0 0.0
  %1289 = vmatmul.mubr.f32.gmra.mrb[0].mxu0 %v1146
  %v1290 = vpop.f32.mrb[0].mxu0
  %v1291 = vadd.f32 0.0, %v1290
  %v1292 = vpop.f32.mrb[0].mxu0
  %1293 = vmatprep.mubr.f32.mxu0 0.0
  %1294 = vmatmul.mubr.f32.gmra.mrb[0].mxu0 %v1149
  %v1295 = vpop.f32.mrb[0].mxu0
  %v1296 = vadd.f32 0.0, %v1295
  %v1297 = vpop.f32.mrb[0].mxu0
  %1298 = vdwg.mxu0
  %v1299 = vadd.f32 %v1069, %v1221
  %v1300 = vadd.f32 %v1070, %v1226
  %v1301 = vadd.f32 %v1071, %v1231
  %v1302 = vadd.f32 %v1072, %v1236
  %v1303 = vadd.f32 %v1073, %v1241
  %v1304 = vadd.f32 %v1074, %v1246
  %v1305 = vadd.f32 %v1075, %v1251
  %v1306 = vadd.f32 %v1076, %v1256
  %v1307 = vadd.f32 %v1077, %v1261
  %v1308 = vadd.f32 %v1078, %v1266
  %v1309 = vadd.f32 %v1079, %v1271
  %v1310 = vadd.f32 %v1080, %v1276
  %v1311 = vadd.f32 %v1081, %v1281
  %v1312 = vadd.f32 %v1082, %v1286
  %v1313 = vadd.f32 %v1083, %v1291
  %v1314 = vadd.f32 %v1084, %v1296
  %v1315 = vld [vmem:[%s180 + $0x2] sm:$0xff]
  %v1316 = vld [vmem:[%s180 + $0x12] sm:$0xff]
  %v1317 = vld [vmem:[%s180 + $0x22] sm:$0xff]
  %v1318 = vld [vmem:[%s180 + $0x32] sm:$0xff]
  %v1319 = vld [vmem:[%s180 + $0x42] sm:$0xff]
  %v1320 = vld [vmem:[%s180 + $0x52] sm:$0xff]
  %v1321 = vld [vmem:[%s180 + $0x62] sm:$0xff]
  %v1322 = vld [vmem:[%s180 + $0x72] sm:$0xff]
  %v1323 = vld [vmem:[%s180 + $0xa2] sm:$0xff]
  %v1324 = vld [vmem:[%s180 + $0xb2] sm:$0xff]
  %v1325 = vld [vmem:[%s180 + $0xc2] sm:$0xff]
  %v1326 = vld [vmem:[%s180 + $0xd2] sm:$0xff]
  %v1327 = vld [vmem:[%s180 + $0xe2] sm:$0xff]
  %v1328 = vld [vmem:[%s180 + $0xf2] sm:$0xff]
  %v1329 = vld [vmem:[%s180 + $0x102] sm:$0xff]
  %v1330 = vld [vmem:[%s180 + $0x112] sm:$0xff]
  %s1331 = scalar_lea.vmem %s1, 20
  %v1332 = vld [vmem:[%s1331] sm:$0xf]
  %v1334 = vsel %vm138, %v1315, 0
  %v1337 = vsel %vm138, %v1316, 0
  %v1340 = vsel %vm138, %v1317, 0
  %v1343 = vsel %vm138, %v1318, 0
  %v1346 = vsel %vm138, %v1319, 0
  %v1349 = vsel %vm138, %v1320, 0
  %v1352 = vsel %vm138, %v1321, 0
  %v1355 = vsel %vm138, %v1322, 0
  %v1358 = vsel %vm138, %v1323, 0
  %v1361 = vsel %vm138, %v1324, 0
  %v1364 = vsel %vm138, %v1325, 0
  %v1367 = vsel %vm138, %v1326, 0
  %v1370 = vsel %vm138, %v1327, 0
  %v1373 = vsel %vm138, %v1328, 0
  %v1376 = vsel %vm138, %v1329, 0
  %v1379 = vsel %vm138, %v1330, 0
  %v1382 = vsel %vm280, %v1332, 0
  %1384 = vmatprep.subr.mxu0 0.0
  %1385 = vmatpush1.msra.mxu0 %v1382
  %1386 = vmatprep.subr.mxu0 0.0
  %1387 = vmatpush1.msra.mxu0 0.0
  %1388 = vmatprep.subr.mxu0 0.0
  %1389 = vmatpush1.msra.mxu0 0.0
  %1390 = vmatprep.subr.mxu0 0.0
  %1391 = vmatpush1.msra.mxu0 0.0
  %1392 = vmatprep.subr.mxu0 0.0
  %1393 = vmatpush1.msra.mxu0 0.0
  %1394 = vmatprep.subr.mxu0 0.0
  %1395 = vmatpush1.msra.mxu0 0.0
  %1396 = vmatprep.subr.mxu0 0.0
  %1397 = vmatpush1.msra.mxu0 0.0
  %1398 = vmatprep.subr.mxu0 0.0
  %1399 = vmatpush1.msra.mxu0 0.0
  %1400 = vmatprep.subr.mxu0 0.0
  %1401 = vmatpush1.msra.mxu0 0.0
  %1402 = vmatprep.subr.mxu0 0.0
  %1403 = vmatpush1.msra.mxu0 0.0
  %1404 = vmatprep.subr.mxu0 0.0
  %1405 = vmatpush1.msra.mxu0 0.0
  %1406 = vmatprep.subr.mxu0 0.0
  %1407 = vmatpush1.msra.mxu0 0.0
  %1408 = vmatprep.subr.mxu0 0.0
  %1409 = vmatpush1.msra.mxu0 0.0
  %1410 = vmatprep.subr.mxu0 0.0
  %1411 = vmatpush1.msra.mxu0 0.0
  %1412 = vmatprep.subr.mxu0 0.0
  %1413 = vmatpush1.msra.mxu0 0.0
  %1414 = vmatprep.subr.mxu0 0.0
  %1415 = vmatpush1.msra.mxu0 0.0
  %1416 = vmatprep.subr.mxu0 0.0
  %1417 = vmatpush1.msra.mxu0 0.0
  %1418 = vmatprep.subr.mxu0 0.0
  %1419 = vmatpush1.msra.mxu0 0.0
  %1420 = vmatprep.subr.mxu0 0.0
  %1421 = vmatpush1.msra.mxu0 0.0
  %1422 = vmatprep.subr.mxu0 0.0
  %1423 = vmatpush1.msra.mxu0 0.0
  %1424 = vmatprep.subr.mxu0 0.0
  %1425 = vmatpush1.msra.mxu0 0.0
  %1426 = vmatprep.subr.mxu0 0.0
  %1427 = vmatpush1.msra.mxu0 0.0
  %1428 = vmatprep.subr.mxu0 0.0
  %1429 = vmatpush1.msra.mxu0 0.0
  %1430 = vmatprep.subr.mxu0 0.0
  %1431 = vmatpush1.msra.mxu0 0.0
  %1432 = vmatprep.subr.mxu0 0.0
  %1433 = vmatpush1.msra.mxu0 0.0
  %1434 = vmatprep.subr.mxu0 0.0
  %1435 = vmatpush1.msra.mxu0 0.0
  %1436 = vmatprep.subr.mxu0 0.0
  %1437 = vmatpush1.msra.mxu0 0.0
  %1438 = vmatprep.subr.mxu0 0.0
  %1439 = vmatpush1.msra.mxu0 0.0
  %1440 = vmatprep.subr.mxu0 0.0
  %1441 = vmatpush1.msra.mxu0 0.0
  %1442 = vmatprep.subr.mxu0 0.0
  %1443 = vmatpush1.msra.mxu0 0.0
  %1444 = vmatprep.subr.mxu0 0.0
  %1445 = vmatpush1.msra.mxu0 0.0
  %1446 = vmatprep.subr.mxu0 0.0
  %1447 = vmatpush1.msra.mxu0 0.0
  %1448 = vmatprep.mubr.f32.mxu0 0.0
  %1449 = vmatmul.mubr.f32.gmra.mrb[0].mxu0 %v1334
  %v1450 = vpop.f32.mrb[0].mxu0
  %v1451 = vadd.f32 0.0, %v1450
  %v1452 = vpop.f32.mrb[0].mxu0
  %1453 = vmatprep.mubr.f32.mxu0 0.0
  %1454 = vmatmul.mubr.f32.gmra.mrb[0].mxu0 %v1337
  %v1455 = vpop.f32.mrb[0].mxu0
  %v1456 = vadd.f32 0.0, %v1455
  %v1457 = vpop.f32.mrb[0].mxu0
  %1458 = vmatprep.mubr.f32.mxu0 0.0
  %1459 = vmatmul.mubr.f32.gmra.mrb[0].mxu0 %v1340
  %v1460 = vpop.f32.mrb[0].mxu0
  %v1461 = vadd.f32 0.0, %v1460
  %v1462 = vpop.f32.mrb[0].mxu0
  %1463 = vmatprep.mubr.f32.mxu0 0.0
  %1464 = vmatmul.mubr.f32.gmra.mrb[0].mxu0 %v1343
  %v1465 = vpop.f32.mrb[0].mxu0
  %v1466 = vadd.f32 0.0, %v1465
  %v1467 = vpop.f32.mrb[0].mxu0
  %1468 = vmatprep.mubr.f32.mxu0 0.0
  %1469 = vmatmul.mubr.f32.gmra.mrb[0].mxu0 %v1346
  %v1470 = vpop.f32.mrb[0].mxu0
  %v1471 = vadd.f32 0.0, %v1470
  %v1472 = vpop.f32.mrb[0].mxu0
  %1473 = vmatprep.mubr.f32.mxu0 0.0
  %1474 = vmatmul.mubr.f32.gmra.mrb[0].mxu0 %v1349
  %v1475 = vpop.f32.mrb[0].mxu0
  %v1476 = vadd.f32 0.0, %v1475
  %v1477 = vpop.f32.mrb[0].mxu0
  %1478 = vmatprep.mubr.f32.mxu0 0.0
  %1479 = vmatmul.mubr.f32.gmra.mrb[0].mxu0 %v1352
  %v1480 = vpop.f32.mrb[0].mxu0
  %v1481 = vadd.f32 0.0, %v1480
  %v1482 = vpop.f32.mrb[0].mxu0
  %1483 = vmatprep.mubr.f32.mxu0 0.0
  %1484 = vmatmul.mubr.f32.gmra.mrb[0].mxu0 %v1355
  %v1485 = vpop.f32.mrb[0].mxu0
  %v1486 = vadd.f32 0.0, %v1485
  %v1487 = vpop.f32.mrb[0].mxu0
  %1488 = vmatprep.mubr.f32.mxu0 0.0
  %1489 = vmatmul.mubr.f32.gmra.mrb[0].mxu0 %v1358
  %v1490 = vpop.f32.mrb[0].mxu0
  %v1491 = vadd.f32 0.0, %v1490
  %v1492 = vpop.f32.mrb[0].mxu0
  %1493 = vmatprep.mubr.f32.mxu0 0.0
  %1494 = vmatmul.mubr.f32.gmra.mrb[0].mxu0 %v1361
  %v1495 = vpop.f32.mrb[0].mxu0
  %v1496 = vadd.f32 0.0, %v1495
  %v1497 = vpop.f32.mrb[0].mxu0
  %1498 = vmatprep.mubr.f32.mxu0 0.0
  %1499 = vmatmul.mubr.f32.gmra.mrb[0].mxu0 %v1364
  %v1500 = vpop.f32.mrb[0].mxu0
  %v1501 = vadd.f32 0.0, %v1500
  %v1502 = vpop.f32.mrb[0].mxu0
  %1503 = vmatprep.mubr.f32.mxu0 0.0
  %1504 = vmatmul.mubr.f32.gmra.mrb[0].mxu0 %v1367
  %v1505 = vpop.f32.mrb[0].mxu0
  %v1506 = vadd.f32 0.0, %v1505
  %v1507 = vpop.f32.mrb[0].mxu0
  %1508 = vmatprep.mubr.f32.mxu0 0.0
  %1509 = vmatmul.mubr.f32.gmra.mrb[0].mxu0 %v1370
  %v1510 = vpop.f32.mrb[0].mxu0
  %v1511 = vadd.f32 0.0, %v1510
  %v1512 = vpop.f32.mrb[0].mxu0
  %1513 = vmatprep.mubr.f32.mxu0 0.0
  %1514 = vmatmul.mubr.f32.gmra.mrb[0].mxu0 %v1373
  %v1515 = vpop.f32.mrb[0].mxu0
  %v1516 = vadd.f32 0.0, %v1515
  %v1517 = vpop.f32.mrb[0].mxu0
  %1518 = vmatprep.mubr.f32.mxu0 0.0
  %1519 = vmatmul.mubr.f32.gmra.mrb[0].mxu0 %v1376
  %v1520 = vpop.f32.mrb[0].mxu0
  %v1521 = vadd.f32 0.0, %v1520
  %v1522 = vpop.f32.mrb[0].mxu0
  %1523 = vmatprep.mubr.f32.mxu0 0.0
  %1524 = vmatmul.mubr.f32.gmra.mrb[0].mxu0 %v1379
  %v1525 = vpop.f32.mrb[0].mxu0
  %v1526 = vadd.f32 0.0, %v1525
  %v1527 = vpop.f32.mrb[0].mxu0
  %1528 = vdwg.mxu0
  %v1529 = vadd.f32 %v1299, %v1451
  %v1530 = vadd.f32 %v1300, %v1456
  %v1531 = vadd.f32 %v1301, %v1461
  %v1532 = vadd.f32 %v1302, %v1466
  %v1533 = vadd.f32 %v1303, %v1471
  %v1534 = vadd.f32 %v1304, %v1476
  %v1535 = vadd.f32 %v1305, %v1481
  %v1536 = vadd.f32 %v1306, %v1486
  %v1537 = vadd.f32 %v1307, %v1491
  %v1538 = vadd.f32 %v1308, %v1496
  %v1539 = vadd.f32 %v1309, %v1501
  %v1540 = vadd.f32 %v1310, %v1506
  %v1541 = vadd.f32 %v1311, %v1511
  %v1542 = vadd.f32 %v1312, %v1516
  %v1543 = vadd.f32 %v1313, %v1521
  %v1544 = vadd.f32 %v1314, %v1526
  %s1545 = scalar_lea.vmem [#allocation2], 32
  %v1546 = vld [vmem:[%s1545] sm:$0xff]
  %v1547 = vld [vmem:[%s1545 + $0x10] sm:$0xff]
  %v1548 = vld [vmem:[%s1545 + $0x20] sm:$0xff]
  %v1549 = vld [vmem:[%s1545 + $0x30] sm:$0xff]
  %v1550 = vld [vmem:[%s1545 + $0x40] sm:$0xff]
  %v1551 = vld [vmem:[%s1545 + $0x50] sm:$0xff]
  %v1552 = vld [vmem:[%s1545 + $0x60] sm:$0xff]
  %v1553 = vld [vmem:[%s1545 + $0x70] sm:$0xff]
  %v1554 = vld [vmem:[%s1545 + $0xa0] sm:$0xff]
  %v1555 = vld [vmem:[%s1545 + $0xb0] sm:$0xff]
  %v1556 = vld [vmem:[%s1545 + $0xc0] sm:$0xff]
  %v1557 = vld [vmem:[%s1545 + $0xd0] sm:$0xff]
  %v1558 = vld [vmem:[%s1545 + $0xe0] sm:$0xff]
  %v1559 = vld [vmem:[%s1545 + $0xf0] sm:$0xff]
  %v1560 = vld [vmem:[%s1545 + $0x100] sm:$0xff]
  %v1561 = vld [vmem:[%s1545 + $0x110] sm:$0xff]
  %s1562 = scalar_lea.vmem %s1, 24
  %v1563 = vld [vmem:[%s1562] sm:$0xf]
  %v1565 = vsel %vm138, %v1546, 0
  %v1568 = vsel %vm138, %v1547, 0
  %v1571 = vsel %vm138, %v1548, 0
  %v1574 = vsel %vm138, %v1549, 0
  %v1577 = vsel %vm138, %v1550, 0
  %v1580 = vsel %vm138, %v1551, 0
  %v1583 = vsel %vm138, %v1552, 0
  %v1586 = vsel %vm138, %v1553, 0
  %v1589 = vsel %vm138, %v1554, 0
  %v1592 = vsel %vm138, %v1555, 0
  %v1595 = vsel %vm138, %v1556, 0
  %v1598 = vsel %vm138, %v1557, 0
  %v1601 = vsel %vm138, %v1558, 0
  %v1604 = vsel %vm138, %v1559, 0
  %v1607 = vsel %vm138, %v1560, 0
  %v1610 = vsel %vm138, %v1561, 0
  %v1613 = vsel %vm280, %v1563, 0
  %1615 = vmatprep.subr.mxu0 0.0
  %1616 = vmatpush1.msra.mxu0 %v1613
  %1617 = vmatprep.subr.mxu0 0.0
  %1618 = vmatpush1.msra.mxu0 0.0
  %1619 = vmatprep.subr.mxu0 0.0
  %1620 = vmatpush1.msra.mxu0 0.0
  %1621 = vmatprep.subr.mxu0 0.0
  %1622 = vmatpush1.msra.mxu0 0.0
  %1623 = vmatprep.subr.mxu0 0.0
  %1624 = vmatpush1.msra.mxu0 0.0
  %1625 = vmatprep.subr.mxu0 0.0
  %1626 = vmatpush1.msra.mxu0 0.0
  %1627 = vmatprep.subr.mxu0 0.0
  %1628 = vmatpush1.msra.mxu0 0.0
  %1629 = vmatprep.subr.mxu0 0.0
  %1630 = vmatpush1.msra.mxu0 0.0
  %1631 = vmatprep.subr.mxu0 0.0
  %1632 = vmatpush1.msra.mxu0 0.0
  %1633 = vmatprep.subr.mxu0 0.0
  %1634 = vmatpush1.msra.mxu0 0.0
  %1635 = vmatprep.subr.mxu0 0.0
  %1636 = vmatpush1.msra.mxu0 0.0
  %1637 = vmatprep.subr.mxu0 0.0
  %1638 = vmatpush1.msra.mxu0 0.0
  %1639 = vmatprep.subr.mxu0 0.0
  %1640 = vmatpush1.msra.mxu0 0.0
  %1641 = vmatprep.subr.mxu0 0.0
  %1642 = vmatpush1.msra.mxu0 0.0
  %1643 = vmatprep.subr.mxu0 0.0
  %1644 = vmatpush1.msra.mxu0 0.0
  %1645 = vmatprep.subr.mxu0 0.0
  %1646 = vmatpush1.msra.mxu0 0.0
  %1647 = vmatprep.subr.mxu0 0.0
  %1648 = vmatpush1.msra.mxu0 0.0
  %1649 = vmatprep.subr.mxu0 0.0
  %1650 = vmatpush1.msra.mxu0 0.0
  %1651 = vmatprep.subr.mxu0 0.0
  %1652 = vmatpush1.msra.mxu0 0.0
  %1653 = vmatprep.subr.mxu0 0.0
  %1654 = vmatpush1.msra.mxu0 0.0
  %1655 = vmatprep.subr.mxu0 0.0
  %1656 = vmatpush1.msra.mxu0 0.0
  %1657 = vmatprep.subr.mxu0 0.0
  %1658 = vmatpush1.msra.mxu0 0.0
  %1659 = vmatprep.subr.mxu0 0.0
  %1660 = vmatpush1.msra.mxu0 0.0
  %1661 = vmatprep.subr.mxu0 0.0
  %1662 = vmatpush1.msra.mxu0 0.0
  %1663 = vmatprep.subr.mxu0 0.0
  %1664 = vmatpush1.msra.mxu0 0.0
  %1665 = vmatprep.subr.mxu0 0.0
  %1666 = vmatpush1.msra.mxu0 0.0
  %1667 = vmatprep.subr.mxu0 0.0
  %1668 = vmatpush1.msra.mxu0 0.0
  %1669 = vmatprep.subr.mxu0 0.0
  %1670 = vmatpush1.msra.mxu0 0.0
  %1671 = vmatprep.subr.mxu0 0.0
  %1672 = vmatpush1.msra.mxu0 0.0
  %1673 = vmatprep.subr.mxu0 0.0
  %1674 = vmatpush1.msra.mxu0 0.0
  %1675 = vmatprep.subr.mxu0 0.0
  %1676 = vmatpush1.msra.mxu0 0.0
  %1677 = vmatprep.subr.mxu0 0.0
  %1678 = vmatpush1.msra.mxu0 0.0
  %1679 = vmatprep.mubr.f32.mxu0 0.0
  %1680 = vmatmul.mubr.f32.gmra.mrb[0].mxu0 %v1565
  %v1681 = vpop.f32.mrb[0].mxu0
  %v1682 = vadd.f32 0.0, %v1681
  %v1683 = vpop.f32.mrb[0].mxu0
  %1684 = vmatprep.mubr.f32.mxu0 0.0
  %1685 = vmatmul.mubr.f32.gmra.mrb[0].mxu0 %v1568
  %v1686 = vpop.f32.mrb[0].mxu0
  %v1687 = vadd.f32 0.0, %v1686
  %v1688 = vpop.f32.mrb[0].mxu0
  %1689 = vmatprep.mubr.f32.mxu0 0.0
  %1690 = vmatmul.mubr.f32.gmra.mrb[0].mxu0 %v1571
  %v1691 = vpop.f32.mrb[0].mxu0
  %v1692 = vadd.f32 0.0, %v1691
  %v1693 = vpop.f32.mrb[0].mxu0
  %1694 = vmatprep.mubr.f32.mxu0 0.0
  %1695 = vmatmul.mubr.f32.gmra.mrb[0].mxu0 %v1574
  %v1696 = vpop.f32.mrb[0].mxu0
  %v1697 = vadd.f32 0.0, %v1696
  %v1698 = vpop.f32.mrb[0].mxu0
  %1699 = vmatprep.mubr.f32.mxu0 0.0
  %1700 = vmatmul.mubr.f32.gmra.mrb[0].mxu0 %v1577
  %v1701 = vpop.f32.mrb[0].mxu0
  %v1702 = vadd.f32 0.0, %v1701
  %v1703 = vpop.f32.mrb[0].mxu0
  %1704 = vmatprep.mubr.f32.mxu0 0.0
  %1705 = vmatmul.mubr.f32.gmra.mrb[0].mxu0 %v1580
  %v1706 = vpop.f32.mrb[0].mxu0
  %v1707 = vadd.f32 0.0, %v1706
  %v1708 = vpop.f32.mrb[0].mxu0
  %1709 = vmatprep.mubr.f32.mxu0 0.0
  %1710 = vmatmul.mubr.f32.gmra.mrb[0].mxu0 %v1583
  %v1711 = vpop.f32.mrb[0].mxu0
  %v1712 = vadd.f32 0.0, %v1711
  %v1713 = vpop.f32.mrb[0].mxu0
  %1714 = vmatprep.mubr.f32.mxu0 0.0
  %1715 = vmatmul.mubr.f32.gmra.mrb[0].mxu0 %v1586
  %v1716 = vpop.f32.mrb[0].mxu0
  %v1717 = vadd.f32 0.0, %v1716
  %v1718 = vpop.f32.mrb[0].mxu0
  %1719 = vmatprep.mubr.f32.mxu0 0.0
  %1720 = vmatmul.mubr.f32.gmra.mrb[0].mxu0 %v1589
  %v1721 = vpop.f32.mrb[0].mxu0
  %v1722 = vadd.f32 0.0, %v1721
  %v1723 = vpop.f32.mrb[0].mxu0
  %1724 = vmatprep.mubr.f32.mxu0 0.0
  %1725 = vmatmul.mubr.f32.gmra.mrb[0].mxu0 %v1592
  %v1726 = vpop.f32.mrb[0].mxu0
  %v1727 = vadd.f32 0.0, %v1726
  %v1728 = vpop.f32.mrb[0].mxu0
  %1729 = vmatprep.mubr.f32.mxu0 0.0
  %1730 = vmatmul.mubr.f32.gmra.mrb[0].mxu0 %v1595
  %v1731 = vpop.f32.mrb[0].mxu0
  %v1732 = vadd.f32 0.0, %v1731
  %v1733 = vpop.f32.mrb[0].mxu0
  %1734 = vmatprep.mubr.f32.mxu0 0.0
  %1735 = vmatmul.mubr.f32.gmra.mrb[0].mxu0 %v1598
  %v1736 = vpop.f32.mrb[0].mxu0
  %v1737 = vadd.f32 0.0, %v1736
  %v1738 = vpop.f32.mrb[0].mxu0
  %1739 = vmatprep.mubr.f32.mxu0 0.0
  %1740 = vmatmul.mubr.f32.gmra.mrb[0].mxu0 %v1601
  %v1741 = vpop.f32.mrb[0].mxu0
  %v1742 = vadd.f32 0.0, %v1741
  %v1743 = vpop.f32.mrb[0].mxu0
  %1744 = vmatprep.mubr.f32.mxu0 0.0
  %1745 = vmatmul.mubr.f32.gmra.mrb[0].mxu0 %v1604
  %v1746 = vpop.f32.mrb[0].mxu0
  %v1747 = vadd.f32 0.0, %v1746
  %v1748 = vpop.f32.mrb[0].mxu0
  %1749 = vmatprep.mubr.f32.mxu0 0.0
  %1750 = vmatmul.mubr.f32.gmra.mrb[0].mxu0 %v1607
  %v1751 = vpop.f32.mrb[0].mxu0
  %v1752 = vadd.f32 0.0, %v1751
  %v1753 = vpop.f32.mrb[0].mxu0
  %1754 = vmatprep.mubr.f32.mxu0 0.0
  %1755 = vmatmul.mubr.f32.gmra.mrb[0].mxu0 %v1610
  %v1756 = vpop.f32.mrb[0].mxu0
  %v1757 = vadd.f32 0.0, %v1756
  %v1758 = vpop.f32.mrb[0].mxu0
  %1759 = vdwg.mxu0
  %v1760 = vadd.f32 %v1529, %v1682
  %v1761 = vadd.f32 %v1530, %v1687
  %v1762 = vadd.f32 %v1531, %v1692
  %v1763 = vadd.f32 %v1532, %v1697
  %v1764 = vadd.f32 %v1533, %v1702
  %v1765 = vadd.f32 %v1534, %v1707
  %v1766 = vadd.f32 %v1535, %v1712
  %v1767 = vadd.f32 %v1536, %v1717
  %v1768 = vadd.f32 %v1537, %v1722
  %v1769 = vadd.f32 %v1538, %v1727
  %v1770 = vadd.f32 %v1539, %v1732
  %v1771 = vadd.f32 %v1540, %v1737
  %v1772 = vadd.f32 %v1541, %v1742
  %v1773 = vadd.f32 %v1542, %v1747
  %v1774 = vadd.f32 %v1543, %v1752
  %v1775 = vadd.f32 %v1544, %v1757
  %v1776 = vld [vmem:[%s1545 + $0x1] sm:$0xff]
  %v1777 = vld [vmem:[%s1545 + $0x11] sm:$0xff]
  %v1778 = vld [vmem:[%s1545 + $0x21] sm:$0xff]
  %v1779 = vld [vmem:[%s1545 + $0x31] sm:$0xff]
  %v1780 = vld [vmem:[%s1545 + $0x41] sm:$0xff]
  %v1781 = vld [vmem:[%s1545 + $0x51] sm:$0xff]
  %v1782 = vld [vmem:[%s1545 + $0x61] sm:$0xff]
  %v1783 = vld [vmem:[%s1545 + $0x71] sm:$0xff]
  %v1784 = vld [vmem:[%s1545 + $0xa1] sm:$0xff]
  %v1785 = vld [vmem:[%s1545 + $0xb1] sm:$0xff]
  %v1786 = vld [vmem:[%s1545 + $0xc1] sm:$0xff]
  %v1787 = vld [vmem:[%s1545 + $0xd1] sm:$0xff]
  %v1788 = vld [vmem:[%s1545 + $0xe1] sm:$0xff]
  %v1789 = vld [vmem:[%s1545 + $0xf1] sm:$0xff]
  %v1790 = vld [vmem:[%s1545 + $0x101] sm:$0xff]
  %v1791 = vld [vmem:[%s1545 + $0x111] sm:$0xff]
  %s1792 = scalar_lea.vmem %s1, 28
  %v1793 = vld [vmem:[%s1792] sm:$0xf]
  %v1795 = vsel %vm138, %v1776, 0
  %v1798 = vsel %vm138, %v1777, 0
  %v1801 = vsel %vm138, %v1778, 0
  %v1804 = vsel %vm138, %v1779, 0
  %v1807 = vsel %vm138, %v1780, 0
  %v1810 = vsel %vm138, %v1781, 0
  %v1813 = vsel %vm138, %v1782, 0
  %v1816 = vsel %vm138, %v1783, 0
  %v1819 = vsel %vm138, %v1784, 0
  %v1822 = vsel %vm138, %v1785, 0
  %v1825 = vsel %vm138, %v1786, 0
  %v1828 = vsel %vm138, %v1787, 0
  %v1831 = vsel %vm138, %v1788, 0
  %v1834 = vsel %vm138, %v1789, 0
  %v1837 = vsel %vm138, %v1790, 0
  %v1840 = vsel %vm138, %v1791, 0
  %v1843 = vsel %vm280, %v1793, 0
  %1845 = vmatprep.subr.mxu0 0.0
  %1846 = vmatpush1.msra.mxu0 %v1843
  %1847 = vmatprep.subr.mxu0 0.0
  %1848 = vmatpush1.msra.mxu0 0.0
  %1849 = vmatprep.subr.mxu0 0.0
  %1850 = vmatpush1.msra.mxu0 0.0
  %1851 = vmatprep.subr.mxu0 0.0
  %1852 = vmatpush1.msra.mxu0 0.0
  %1853 = vmatprep.subr.mxu0 0.0
  %1854 = vmatpush1.msra.mxu0 0.0
  %1855 = vmatprep.subr.mxu0 0.0
  %1856 = vmatpush1.msra.mxu0 0.0
  %1857 = vmatprep.subr.mxu0 0.0
  %1858 = vmatpush1.msra.mxu0 0.0
  %1859 = vmatprep.subr.mxu0 0.0
  %1860 = vmatpush1.msra.mxu0 0.0
  %1861 = vmatprep.subr.mxu0 0.0
  %1862 = vmatpush1.msra.mxu0 0.0
  %1863 = vmatprep.subr.mxu0 0.0
  %1864 = vmatpush1.msra.mxu0 0.0
  %1865 = vmatprep.subr.mxu0 0.0
  %1866 = vmatpush1.msra.mxu0 0.0
  %1867 = vmatprep.subr.mxu0 0.0
  %1868 = vmatpush1.msra.mxu0 0.0
  %1869 = vmatprep.subr.mxu0 0.0
  %1870 = vmatpush1.msra.mxu0 0.0
  %1871 = vmatprep.subr.mxu0 0.0
  %1872 = vmatpush1.msra.mxu0 0.0
  %1873 = vmatprep.subr.mxu0 0.0
  %1874 = vmatpush1.msra.mxu0 0.0
  %1875 = vmatprep.subr.mxu0 0.0
  %1876 = vmatpush1.msra.mxu0 0.0
  %1877 = vmatprep.subr.mxu0 0.0
  %1878 = vmatpush1.msra.mxu0 0.0
  %1879 = vmatprep.subr.mxu0 0.0
  %1880 = vmatpush1.msra.mxu0 0.0
  %1881 = vmatprep.subr.mxu0 0.0
  %1882 = vmatpush1.msra.mxu0 0.0
  %1883 = vmatprep.subr.mxu0 0.0
  %1884 = vmatpush1.msra.mxu0 0.0
  %1885 = vmatprep.subr.mxu0 0.0
  %1886 = vmatpush1.msra.mxu0 0.0
  %1887 = vmatprep.subr.mxu0 0.0
  %1888 = vmatpush1.msra.mxu0 0.0
  %1889 = vmatprep.subr.mxu0 0.0
  %1890 = vmatpush1.msra.mxu0 0.0
  %1891 = vmatprep.subr.mxu0 0.0
  %1892 = vmatpush1.msra.mxu0 0.0
  %1893 = vmatprep.subr.mxu0 0.0
  %1894 = vmatpush1.msra.mxu0 0.0
  %1895 = vmatprep.subr.mxu0 0.0
  %1896 = vmatpush1.msra.mxu0 0.0
  %1897 = vmatprep.subr.mxu0 0.0
  %1898 = vmatpush1.msra.mxu0 0.0
  %1899 = vmatprep.subr.mxu0 0.0
  %1900 = vmatpush1.msra.mxu0 0.0
  %1901 = vmatprep.subr.mxu0 0.0
  %1902 = vmatpush1.msra.mxu0 0.0
  %1903 = vmatprep.subr.mxu0 0.0
  %1904 = vmatpush1.msra.mxu0 0.0
  %1905 = vmatprep.subr.mxu0 0.0
  %1906 = vmatpush1.msra.mxu0 0.0
  %1907 = vmatprep.subr.mxu0 0.0
  %1908 = vmatpush1.msra.mxu0 0.0
  %1909 = vmatprep.mubr.f32.mxu0 0.0
  %1910 = vmatmul.mubr.f32.gmra.mrb[0].mxu0 %v1795
  %v1911 = vpop.f32.mrb[0].mxu0
  %v1912 = vadd.f32 0.0, %v1911
  %v1913 = vpop.f32.mrb[0].mxu0
  %1914 = vmatprep.mubr.f32.mxu0 0.0
  %1915 = vmatmul.mubr.f32.gmra.mrb[0].mxu0 %v1798
  %v1916 = vpop.f32.mrb[0].mxu0
  %v1917 = vadd.f32 0.0, %v1916
  %v1918 = vpop.f32.mrb[0].mxu0
  %1919 = vmatprep.mubr.f32.mxu0 0.0
  %1920 = vmatmul.mubr.f32.gmra.mrb[0].mxu0 %v1801
  %v1921 = vpop.f32.mrb[0].mxu0
  %v1922 = vadd.f32 0.0, %v1921
  %v1923 = vpop.f32.mrb[0].mxu0
  %1924 = vmatprep.mubr.f32.mxu0 0.0
  %1925 = vmatmul.mubr.f32.gmra.mrb[0].mxu0 %v1804
  %v1926 = vpop.f32.mrb[0].mxu0
  %v1927 = vadd.f32 0.0, %v1926
  %v1928 = vpop.f32.mrb[0].mxu0
  %1929 = vmatprep.mubr.f32.mxu0 0.0
  %1930 = vmatmul.mubr.f32.gmra.mrb[0].mxu0 %v1807
  %v1931 = vpop.f32.mrb[0].mxu0
  %v1932 = vadd.f32 0.0, %v1931
  %v1933 = vpop.f32.mrb[0].mxu0
  %1934 = vmatprep.mubr.f32.mxu0 0.0
  %1935 = vmatmul.mubr.f32.gmra.mrb[0].mxu0 %v1810
  %v1936 = vpop.f32.mrb[0].mxu0
  %v1937 = vadd.f32 0.0, %v1936
  %v1938 = vpop.f32.mrb[0].mxu0
  %1939 = vmatprep.mubr.f32.mxu0 0.0
  %1940 = vmatmul.mubr.f32.gmra.mrb[0].mxu0 %v1813
  %v1941 = vpop.f32.mrb[0].mxu0
  %v1942 = vadd.f32 0.0, %v1941
  %v1943 = vpop.f32.mrb[0].mxu0
  %1944 = vmatprep.mubr.f32.mxu0 0.0
  %1945 = vmatmul.mubr.f32.gmra.mrb[0].mxu0 %v1816
  %v1946 = vpop.f32.mrb[0].mxu0
  %v1947 = vadd.f32 0.0, %v1946
  %v1948 = vpop.f32.mrb[0].mxu0
  %1949 = vmatprep.mubr.f32.mxu0 0.0
  %1950 = vmatmul.mubr.f32.gmra.mrb[0].mxu0 %v1819
  %v1951 = vpop.f32.mrb[0].mxu0
  %v1952 = vadd.f32 0.0, %v1951
  %v1953 = vpop.f32.mrb[0].mxu0
  %1954 = vmatprep.mubr.f32.mxu0 0.0
  %1955 = vmatmul.mubr.f32.gmra.mrb[0].mxu0 %v1822
  %v1956 = vpop.f32.mrb[0].mxu0
  %v1957 = vadd.f32 0.0, %v1956
  %v1958 = vpop.f32.mrb[0].mxu0
  %1959 = vmatprep.mubr.f32.mxu0 0.0
  %1960 = vmatmul.mubr.f32.gmra.mrb[0].mxu0 %v1825
  %v1961 = vpop.f32.mrb[0].mxu0
  %v1962 = vadd.f32 0.0, %v1961
  %v1963 = vpop.f32.mrb[0].mxu0
  %1964 = vmatprep.mubr.f32.mxu0 0.0
  %1965 = vmatmul.mubr.f32.gmra.mrb[0].mxu0 %v1828
  %v1966 = vpop.f32.mrb[0].mxu0
  %v1967 = vadd.f32 0.0, %v1966
  %v1968 = vpop.f32.mrb[0].mxu0
  %1969 = vmatprep.mubr.f32.mxu0 0.0
  %1970 = vmatmul.mubr.f32.gmra.mrb[0].mxu0 %v1831
  %v1971 = vpop.f32.mrb[0].mxu0
  %v1972 = vadd.f32 0.0, %v1971
  %v1973 = vpop.f32.mrb[0].mxu0
  %1974 = vmatprep.mubr.f32.mxu0 0.0
  %1975 = vmatmul.mubr.f32.gmra.mrb[0].mxu0 %v1834
  %v1976 = vpop.f32.mrb[0].mxu0
  %v1977 = vadd.f32 0.0, %v1976
  %v1978 = vpop.f32.mrb[0].mxu0
  %1979 = vmatprep.mubr.f32.mxu0 0.0
  %1980 = vmatmul.mubr.f32.gmra.mrb[0].mxu0 %v1837
  %v1981 = vpop.f32.mrb[0].mxu0
  %v1982 = vadd.f32 0.0, %v1981
  %v1983 = vpop.f32.mrb[0].mxu0
  %1984 = vmatprep.mubr.f32.mxu0 0.0
  %1985 = vmatmul.mubr.f32.gmra.mrb[0].mxu0 %v1840
  %v1986 = vpop.f32.mrb[0].mxu0
  %v1987 = vadd.f32 0.0, %v1986
  %v1988 = vpop.f32.mrb[0].mxu0
  %1989 = vdwg.mxu0
  %v1990 = vadd.f32 %v1760, %v1912
  %v1991 = vadd.f32 %v1761, %v1917
  %v1992 = vadd.f32 %v1762, %v1922
  %v1993 = vadd.f32 %v1763, %v1927
  %v1994 = vadd.f32 %v1764, %v1932
  %v1995 = vadd.f32 %v1765, %v1937
  %v1996 = vadd.f32 %v1766, %v1942
  %v1997 = vadd.f32 %v1767, %v1947
  %v1998 = vadd.f32 %v1768, %v1952
  %v1999 = vadd.f32 %v1769, %v1957
  %v2000 = vadd.f32 %v1770, %v1962
  %v2001 = vadd.f32 %v1771, %v1967
  %v2002 = vadd.f32 %v1772, %v1972
  %v2003 = vadd.f32 %v1773, %v1977
  %v2004 = vadd.f32 %v1774, %v1982
  %v2005 = vadd.f32 %v1775, %v1987
  %v2006 = vld [vmem:[%s1545 + $0x2] sm:$0xff]
  %v2007 = vld [vmem:[%s1545 + $0x12] sm:$0xff]
  %v2008 = vld [vmem:[%s1545 + $0x22] sm:$0xff]
  %v2009 = vld [vmem:[%s1545 + $0x32] sm:$0xff]
  %v2010 = vld [vmem:[%s1545 + $0x42] sm:$0xff]
  %v2011 = vld [vmem:[%s1545 + $0x52] sm:$0xff]
  %v2012 = vld [vmem:[%s1545 + $0x62] sm:$0xff]
  %v2013 = vld [vmem:[%s1545 + $0x72] sm:$0xff]
  %v2014 = vld [vmem:[%s1545 + $0xa2] sm:$0xff]
  %v2015 = vld [vmem:[%s1545 + $0xb2] sm:$0xff]
  %v2016 = vld [vmem:[%s1545 + $0xc2] sm:$0xff]
  %v2017 = vld [vmem:[%s1545 + $0xd2] sm:$0xff]
  %v2018 = vld [vmem:[%s1545 + $0xe2] sm:$0xff]
  %v2019 = vld [vmem:[%s1545 + $0xf2] sm:$0xff]
  %v2020 = vld [vmem:[%s1545 + $0x102] sm:$0xff]
  %v2021 = vld [vmem:[%s1545 + $0x112] sm:$0xff]
  %s2022 = scalar_lea.vmem %s1, 32
  %v2023 = vld [vmem:[%s2022] sm:$0xf]
  %v2025 = vsel %vm138, %v2006, 0
  %v2028 = vsel %vm138, %v2007, 0
  %v2031 = vsel %vm138, %v2008, 0
  %v2034 = vsel %vm138, %v2009, 0
  %v2037 = vsel %vm138, %v2010, 0
  %v2040 = vsel %vm138, %v2011, 0
  %v2043 = vsel %vm138, %v2012, 0
  %v2046 = vsel %vm138, %v2013, 0
  %v2049 = vsel %vm138, %v2014, 0
  %v2052 = vsel %vm138, %v2015, 0
  %v2055 = vsel %vm138, %v2016, 0
  %v2058 = vsel %vm138, %v2017, 0
  %v2061 = vsel %vm138, %v2018, 0
  %v2064 = vsel %vm138, %v2019, 0
  %v2067 = vsel %vm138, %v2020, 0
  %v2070 = vsel %vm138, %v2021, 0
  %v2073 = vsel %vm280, %v2023, 0
  %2075 = vmatprep.subr.mxu0 0.0
  %2076 = vmatpush1.msra.mxu0 %v2073
  %2077 = vmatprep.subr.mxu0 0.0
  %2078 = vmatpush1.msra.mxu0 0.0
  %2079 = vmatprep.subr.mxu0 0.0
  %2080 = vmatpush1.msra.mxu0 0.0
  %2081 = vmatprep.subr.mxu0 0.0
  %2082 = vmatpush1.msra.mxu0 0.0
  %2083 = vmatprep.subr.mxu0 0.0
  %2084 = vmatpush1.msra.mxu0 0.0
  %2085 = vmatprep.subr.mxu0 0.0
  %2086 = vmatpush1.msra.mxu0 0.0
  %2087 = vmatprep.subr.mxu0 0.0
  %2088 = vmatpush1.msra.mxu0 0.0
  %2089 = vmatprep.subr.mxu0 0.0
  %2090 = vmatpush1.msra.mxu0 0.0
  %2091 = vmatprep.subr.mxu0 0.0
  %2092 = vmatpush1.msra.mxu0 0.0
  %2093 = vmatprep.subr.mxu0 0.0
  %2094 = vmatpush1.msra.mxu0 0.0
  %2095 = vmatprep.subr.mxu0 0.0
  %2096 = vmatpush1.msra.mxu0 0.0
  %2097 = vmatprep.subr.mxu0 0.0
  %2098 = vmatpush1.msra.mxu0 0.0
  %2099 = vmatprep.subr.mxu0 0.0
  %2100 = vmatpush1.msra.mxu0 0.0
  %2101 = vmatprep.subr.mxu0 0.0
  %2102 = vmatpush1.msra.mxu0 0.0
  %2103 = vmatprep.subr.mxu0 0.0
  %2104 = vmatpush1.msra.mxu0 0.0
  %2105 = vmatprep.subr.mxu0 0.0
  %2106 = vmatpush1.msra.mxu0 0.0
  %2107 = vmatprep.subr.mxu0 0.0
  %2108 = vmatpush1.msra.mxu0 0.0
  %2109 = vmatprep.subr.mxu0 0.0
  %2110 = vmatpush1.msra.mxu0 0.0
  %2111 = vmatprep.subr.mxu0 0.0
  %2112 = vmatpush1.msra.mxu0 0.0
  %2113 = vmatprep.subr.mxu0 0.0
  %2114 = vmatpush1.msra.mxu0 0.0
  %2115 = vmatprep.subr.mxu0 0.0
  %2116 = vmatpush1.msra.mxu0 0.0
  %2117 = vmatprep.subr.mxu0 0.0
  %2118 = vmatpush1.msra.mxu0 0.0
  %2119 = vmatprep.subr.mxu0 0.0
  %2120 = vmatpush1.msra.mxu0 0.0
  %2121 = vmatprep.subr.mxu0 0.0
  %2122 = vmatpush1.msra.mxu0 0.0
  %2123 = vmatprep.subr.mxu0 0.0
  %2124 = vmatpush1.msra.mxu0 0.0
  %2125 = vmatprep.subr.mxu0 0.0
  %2126 = vmatpush1.msra.mxu0 0.0
  %2127 = vmatprep.subr.mxu0 0.0
  %2128 = vmatpush1.msra.mxu0 0.0
  %2129 = vmatprep.subr.mxu0 0.0
  %2130 = vmatpush1.msra.mxu0 0.0
  %2131 = vmatprep.subr.mxu0 0.0
  %2132 = vmatpush1.msra.mxu0 0.0
  %2133 = vmatprep.subr.mxu0 0.0
  %2134 = vmatpush1.msra.mxu0 0.0
  %2135 = vmatprep.subr.mxu0 0.0
  %2136 = vmatpush1.msra.mxu0 0.0
  %2137 = vmatprep.subr.mxu0 0.0
  %2138 = vmatpush1.msra.mxu0 0.0
  %2139 = vmatprep.mubr.f32.mxu0 0.0
  %2140 = vmatmul.mubr.f32.gmra.mrb[0].mxu0 %v2025
  %v2141 = vpop.f32.mrb[0].mxu0
  %v2142 = vadd.f32 0.0, %v2141
  %v2143 = vpop.f32.mrb[0].mxu0
  %2144 = vmatprep.mubr.f32.mxu0 0.0
  %2145 = vmatmul.mubr.f32.gmra.mrb[0].mxu0 %v2028
  %v2146 = vpop.f32.mrb[0].mxu0
  %v2147 = vadd.f32 0.0, %v2146
  %v2148 = vpop.f32.mrb[0].mxu0
  %2149 = vmatprep.mubr.f32.mxu0 0.0
  %2150 = vmatmul.mubr.f32.gmra.mrb[0].mxu0 %v2031
  %v2151 = vpop.f32.mrb[0].mxu0
  %v2152 = vadd.f32 0.0, %v2151
  %v2153 = vpop.f32.mrb[0].mxu0
  %2154 = vmatprep.mubr.f32.mxu0 0.0
  %2155 = vmatmul.mubr.f32.gmra.mrb[0].mxu0 %v2034
  %v2156 = vpop.f32.mrb[0].mxu0
  %v2157 = vadd.f32 0.0, %v2156
  %v2158 = vpop.f32.mrb[0].mxu0
  %2159 = vmatprep.mubr.f32.mxu0 0.0
  %2160 = vmatmul.mubr.f32.gmra.mrb[0].mxu0 %v2037
  %v2161 = vpop.f32.mrb[0].mxu0
  %v2162 = vadd.f32 0.0, %v2161
  %v2163 = vpop.f32.mrb[0].mxu0
  %2164 = vmatprep.mubr.f32.mxu0 0.0
  %2165 = vmatmul.mubr.f32.gmra.mrb[0].mxu0 %v2040
  %v2166 = vpop.f32.mrb[0].mxu0
  %v2167 = vadd.f32 0.0, %v2166
  %v2168 = vpop.f32.mrb[0].mxu0
  %2169 = vmatprep.mubr.f32.mxu0 0.0
  %2170 = vmatmul.mubr.f32.gmra.mrb[0].mxu0 %v2043
  %v2171 = vpop.f32.mrb[0].mxu0
  %v2172 = vadd.f32 0.0, %v2171
  %v2173 = vpop.f32.mrb[0].mxu0
  %2174 = vmatprep.mubr.f32.mxu0 0.0
  %2175 = vmatmul.mubr.f32.gmra.mrb[0].mxu0 %v2046
  %v2176 = vpop.f32.mrb[0].mxu0
  %v2177 = vadd.f32 0.0, %v2176
  %v2178 = vpop.f32.mrb[0].mxu0
  %2179 = vmatprep.mubr.f32.mxu0 0.0
  %2180 = vmatmul.mubr.f32.gmra.mrb[0].mxu0 %v2049
  %v2181 = vpop.f32.mrb[0].mxu0
  %v2182 = vadd.f32 0.0, %v2181
  %v2183 = vpop.f32.mrb[0].mxu0
  %2184 = vmatprep.mubr.f32.mxu0 0.0
  %2185 = vmatmul.mubr.f32.gmra.mrb[0].mxu0 %v2052
  %v2186 = vpop.f32.mrb[0].mxu0
  %v2187 = vadd.f32 0.0, %v2186
  %v2188 = vpop.f32.mrb[0].mxu0
  %2189 = vmatprep.mubr.f32.mxu0 0.0
  %2190 = vmatmul.mubr.f32.gmra.mrb[0].mxu0 %v2055
  %v2191 = vpop.f32.mrb[0].mxu0
  %v2192 = vadd.f32 0.0, %v2191
  %v2193 = vpop.f32.mrb[0].mxu0
  %2194 = vmatprep.mubr.f32.mxu0 0.0
  %2195 = vmatmul.mubr.f32.gmra.mrb[0].mxu0 %v2058
  %v2196 = vpop.f32.mrb[0].mxu0
  %v2197 = vadd.f32 0.0, %v2196
  %v2198 = vpop.f32.mrb[0].mxu0
  %2199 = vmatprep.mubr.f32.mxu0 0.0
  %2200 = vmatmul.mubr.f32.gmra.mrb[0].mxu0 %v2061
  %v2201 = vpop.f32.mrb[0].mxu0
  %v2202 = vadd.f32 0.0, %v2201
  %v2203 = vpop.f32.mrb[0].mxu0
  %2204 = vmatprep.mubr.f32.mxu0 0.0
  %2205 = vmatmul.mubr.f32.gmra.mrb[0].mxu0 %v2064
  %v2206 = vpop.f32.mrb[0].mxu0
  %v2207 = vadd.f32 0.0, %v2206
  %v2208 = vpop.f32.mrb[0].mxu0
  %2209 = vmatprep.mubr.f32.mxu0 0.0
  %2210 = vmatmul.mubr.f32.gmra.mrb[0].mxu0 %v2067
  %v2211 = vpop.f32.mrb[0].mxu0
  %v2212 = vadd.f32 0.0, %v2211
  %v2213 = vpop.f32.mrb[0].mxu0
  %2214 = vmatprep.mubr.f32.mxu0 0.0
  %2215 = vmatmul.mubr.f32.gmra.mrb[0].mxu0 %v2070
  %v2216 = vpop.f32.mrb[0].mxu0
  %v2217 = vadd.f32 0.0, %v2216
  %v2218 = vpop.f32.mrb[0].mxu0
  %2219 = vdwg.mxu0
  %v2220 = vadd.f32 %v1990, %v2142
  %v2221 = vadd.f32 %v1991, %v2147
  %v2222 = vadd.f32 %v1992, %v2152
  %v2223 = vadd.f32 %v1993, %v2157
  %v2224 = vadd.f32 %v1994, %v2162
  %v2225 = vadd.f32 %v1995, %v2167
  %v2226 = vadd.f32 %v1996, %v2172
  %v2227 = vadd.f32 %v1997, %v2177
  %v2228 = vadd.f32 %v1998, %v2182
  %v2229 = vadd.f32 %v1999, %v2187
  %v2230 = vadd.f32 %v2000, %v2192
  %v2231 = vadd.f32 %v2001, %v2197
  %v2232 = vadd.f32 %v2002, %v2202
  %v2233 = vadd.f32 %v2003, %v2207
  %v2234 = vadd.f32 %v2004, %v2212
  %v2235 = vadd.f32 %v2005, %v2217
  %v2236 = vld [vmem:[%s2] sm:$0x1]
  %v2237 = vld [vmem:[%s3] sm:$0x1]
  %v2238 = vadd.f32 %v2220, %v2221
  %v2239 = vadd.f32 %v2238, %v2222
  %v2240 = vadd.f32 %v2239, %v2223
  %v2241 = vadd.f32 %v2240, %v2224
  %v2242 = vadd.f32 %v2241, %v2225
  %v2243 = vadd.f32 %v2242, %v2226
  %v2244 = vadd.f32 %v2243, %v2227
  %v2245 = vadd.f32 %v2244, %v2228
  %v2246 = vadd.f32 %v2245, %v2229
  %v2247 = vadd.f32 %v2246, %v2230
  %v2248 = vadd.f32 %v2247, %v2231
  %v2249 = vadd.f32 %v2248, %v2232
  %v2250 = vadd.f32 %v2249, %v2233
  %v2251 = vadd.f32 %v2250, %v2234
  %v2252 = vadd.f32 %v2251, %v2235
  %v2253 = vrot.slane %v2252, 4
  %v2254 = vadd.f32 %v2252, %v2253
  %v2255 = vrot.slane %v2254, 2
  %v2256 = vadd.f32 %v2254, %v2255
  %v2257 = vrot.slane %v2256, 1
  %v2258 = vadd.f32 %v2256, %v2257
  %v2259 = vmul.f32 %v2258, 0.0078125
  %v2260 = vmul.f32 %v2220, %v2220
  %v2261 = vmul.f32 %v2221, %v2221
  %v2262 = vmul.f32 %v2222, %v2222
  %v2263 = vmul.f32 %v2223, %v2223
  %v2264 = vmul.f32 %v2224, %v2224
  %v2265 = vmul.f32 %v2225, %v2225
  %v2266 = vmul.f32 %v2226, %v2226
  %v2267 = vmul.f32 %v2227, %v2227
  %v2268 = vmul.f32 %v2228, %v2228
  %v2269 = vmul.f32 %v2229, %v2229
  %v2270 = vmul.f32 %v2230, %v2230
  %v2271 = vmul.f32 %v2231, %v2231
  %v2272 = vmul.f32 %v2232, %v2232
  %v2273 = vmul.f32 %v2233, %v2233
  %v2274 = vmul.f32 %v2234, %v2234
  %v2275 = vmul.f32 %v2235, %v2235
  %v2276 = vadd.f32 %v2260, %v2261
  %v2277 = vadd.f32 %v2276, %v2262
  %v2278 = vadd.f32 %v2277, %v2263
  %v2279 = vadd.f32 %v2278, %v2264
  %v2280 = vadd.f32 %v2279, %v2265
  %v2281 = vadd.f32 %v2280, %v2266
  %v2282 = vadd.f32 %v2281, %v2267
  %v2283 = vadd.f32 %v2282, %v2268
  %v2284 = vadd.f32 %v2283, %v2269
  %v2285 = vadd.f32 %v2284, %v2270
  %v2286 = vadd.f32 %v2285, %v2271
  %v2287 = vadd.f32 %v2286, %v2272
  %v2288 = vadd.f32 %v2287, %v2273
  %v2289 = vadd.f32 %v2288, %v2274
  %v2290 = vadd.f32 %v2289, %v2275
  %v2291 = vrot.slane %v2290, 4
  %v2292 = vadd.f32 %v2290, %v2291
  %v2293 = vrot.slane %v2292, 2
  %v2294 = vadd.f32 %v2292, %v2293
  %v2295 = vrot.slane %v2294, 1
  %v2296 = vadd.f32 %v2294, %v2295
  %v2297 = vmul.f32 %v2296, 0.0078125
  %v2298 = vmul.f32 %v2259, %v2259
  %v2299 = vsub.f32 %v2297, %v2298
  %v2300 = vadd.f32 %v2299, 1e-05
  %v2301 = vrsqrt.pop %v2300
  %v2302 = vmul.f32 %v2236, %v2301
  %v2303 = vmul.f32 %v2259, %v2302
  %v2304 = vsub.f32 %v2237, %v2303
  %v2306 = vlaneseq
  %v2307 = vshrl.u32 %v2306, 7
  %v2308 = vsub.s32 0, %v2307
  %v2309 = vrot.slane %v2302, %v2308
  %v2311 = vmul.f32 %v2220, %v2309
  %v2312 = vmul.f32 %v2221, %v2309
  %v2313 = vmul.f32 %v2222, %v2309
  %v2314 = vmul.f32 %v2223, %v2309
  %v2315 = vmul.f32 %v2224, %v2309
  %v2316 = vmul.f32 %v2225, %v2309
  %v2317 = vmul.f32 %v2226, %v2309
  %v2318 = vmul.f32 %v2227, %v2309
  %v2319 = vmul.f32 %v2228, %v2309
  %v2320 = vmul.f32 %v2229, %v2309
  %v2321 = vmul.f32 %v2230, %v2309
  %v2322 = vmul.f32 %v2231, %v2309
  %v2323 = vmul.f32 %v2232, %v2309
  %v2324 = vmul.f32 %v2233, %v2309
  %v2325 = vmul.f32 %v2234, %v2309
  %v2326 = vmul.f32 %v2235, %v2309
  %v2328 = vlaneseq
  %v2329 = vshrl.u32 %v2328, 7
  %v2330 = vsub.s32 0, %v2329
  %v2331 = vrot.slane %v2304, %v2330
  %v2333 = vadd.f32 %v2311, %v2331
  %v2334 = vadd.f32 %v2312, %v2331
  %v2335 = vadd.f32 %v2313, %v2331
  %v2336 = vadd.f32 %v2314, %v2331
  %v2337 = vadd.f32 %v2315, %v2331
  %v2338 = vadd.f32 %v2316, %v2331
  %v2339 = vadd.f32 %v2317, %v2331
  %v2340 = vadd.f32 %v2318, %v2331
  %v2341 = vadd.f32 %v2319, %v2331
  %v2342 = vadd.f32 %v2320, %v2331
  %v2343 = vadd.f32 %v2321, %v2331
  %v2344 = vadd.f32 %v2322, %v2331
  %v2345 = vadd.f32 %v2323, %v2331
  %v2346 = vadd.f32 %v2324, %v2331
  %v2347 = vadd.f32 %v2325, %v2331
  %v2348 = vadd.f32 %v2326, %v2331
  %v2349 = vmax.f32 %v2333, 0.0
  %v2350 = vmax.f32 %v2334, 0.0
  %v2351 = vmax.f32 %v2335, 0.0
  %v2352 = vmax.f32 %v2336, 0.0
  %v2353 = vmax.f32 %v2337, 0.0
  %v2354 = vmax.f32 %v2338, 0.0
  %v2355 = vmax.f32 %v2339, 0.0
  %v2356 = vmax.f32 %v2340, 0.0
  %v2357 = vmax.f32 %v2341, 0.0
  %v2358 = vmax.f32 %v2342, 0.0
  %v2359 = vmax.f32 %v2343, 0.0
  %v2360 = vmax.f32 %v2344, 0.0
  %v2361 = vmax.f32 %v2345, 0.0
  %v2362 = vmax.f32 %v2346, 0.0
  %v2363 = vmax.f32 %v2347, 0.0
  %v2364 = vmax.f32 %v2348, 0.0
  %2365 = vst [vmem:[#allocation3] sm:$0xff] 0.0
  %2366 = vst [vmem:[#allocation3 + $0x8] sm:$0x3] 0.0
  %2367 = vst [vmem:[#allocation3 + $0x10] sm:$0xff] 0.0
  %2368 = vst [vmem:[#allocation3 + $0x18] sm:$0x3] 0.0
  %2369 = vst [vmem:[#allocation3 + $0x20] sm:$0xff] 0.0
  %2370 = vst [vmem:[#allocation3 + $0x28] sm:$0x3] 0.0
  %2371 = vst [vmem:[#allocation3 + $0x30] sm:$0xff] 0.0
  %2372 = vst [vmem:[#allocation3 + $0x38] sm:$0x3] 0.0
  %2373 = vst [vmem:[#allocation3 + $0x40] sm:$0xff] 0.0
  %2374 = vst [vmem:[#allocation3 + $0x48] sm:$0x3] 0.0
  %2375 = vst [vmem:[#allocation3 + $0x50] sm:$0xff] 0.0
  %2376 = vst [vmem:[#allocation3 + $0x58] sm:$0x3] 0.0
  %2377 = vst [vmem:[#allocation3 + $0x60] sm:$0xff] 0.0
  %2378 = vst [vmem:[#allocation3 + $0x68] sm:$0x3] 0.0
  %2379 = vst [vmem:[#allocation3 + $0x70] sm:$0xff] 0.0
  %2380 = vst [vmem:[#allocation3 + $0x78] sm:$0x3] 0.0
  %2381 = vst [vmem:[#allocation3 + $0x80] sm:$0xff] 0.0
  %2382 = vst [vmem:[#allocation3 + $0x88] sm:$0x3] 0.0
  %2383 = vst [vmem:[#allocation3 + $0x90] sm:$0xff] 0.0
  %2384 = vst [vmem:[#allocation3 + $0x98] sm:$0x3] 0.0
  %2385 = vst [vmem:[#allocation3 + $0xa0] sm:$0xff] 0.0
  %2386 = vst [vmem:[#allocation3 + $0xa8] sm:$0x3] 0.0
  %2387 = vst [vmem:[#allocation3 + $0xb0] sm:$0xff] 0.0
  %2388 = vst [vmem:[#allocation3 + $0xb8] sm:$0x3] 0.0
  %2389 = vst [vmem:[#allocation3 + $0xc0] sm:$0xff] 0.0
  %2390 = vst [vmem:[#allocation3 + $0xc8] sm:$0x3] 0.0
  %2391 = vst [vmem:[#allocation3 + $0xd0] sm:$0xff] 0.0
  %2392 = vst [vmem:[#allocation3 + $0xd8] sm:$0x3] 0.0
  %2393 = vst [vmem:[#allocation3 + $0xe0] sm:$0xff] 0.0
  %2394 = vst [vmem:[#allocation3 + $0xe8] sm:$0x3] 0.0
  %2395 = vst [vmem:[#allocation3 + $0xf0] sm:$0xff] 0.0
  %2396 = vst [vmem:[#allocation3 + $0xf8] sm:$0x3] 0.0
  %2397 = vst [vmem:[#allocation3 + $0x100] sm:$0xff] 0.0
  %2398 = vst [vmem:[#allocation3 + $0x108] sm:$0x3] 0.0
  %2399 = vst [vmem:[#allocation3 + $0x110] sm:$0xff] 0.0
  %2400 = vst [vmem:[#allocation3 + $0x118] sm:$0x3] 0.0
  %2401 = vst [vmem:[#allocation3 + $0x120] sm:$0xff] 0.0
  %2402 = vst [vmem:[#allocation3 + $0x128] sm:$0x3] 0.0
  %2403 = vst [vmem:[#allocation3 + $0x130] sm:$0xff] 0.0
  %2404 = vst [vmem:[#allocation3 + $0x138] sm:$0x3] 0.0
  %s2405 = scalar_lea.vmem [#allocation3], 16
  %2406 = vst [vmem:[%s2405 + $0x1] sm:$0xff] %v2349
  %2407 = vst [vmem:[%s2405 + $0x11] sm:$0xff] %v2350
  %2408 = vst [vmem:[%s2405 + $0x21] sm:$0xff] %v2351
  %2409 = vst [vmem:[%s2405 + $0x31] sm:$0xff] %v2352
  %2410 = vst [vmem:[%s2405 + $0x41] sm:$0xff] %v2353
  %2411 = vst [vmem:[%s2405 + $0x51] sm:$0xff] %v2354
  %2412 = vst [vmem:[%s2405 + $0x61] sm:$0xff] %v2355
  %2413 = vst [vmem:[%s2405 + $0x71] sm:$0xff] %v2356
  %2414 = vst [vmem:[%s2405 + $0xa1] sm:$0xff] %v2357
  %2415 = vst [vmem:[%s2405 + $0xb1] sm:$0xff] %v2358
  %2416 = vst [vmem:[%s2405 + $0xc1] sm:$0xff] %v2359
  %2417 = vst [vmem:[%s2405 + $0xd1] sm:$0xff] %v2360
  %2418 = vst [vmem:[%s2405 + $0xe1] sm:$0xff] %v2361
  %2419 = vst [vmem:[%s2405 + $0xf1] sm:$0xff] %v2362
  %2420 = vst [vmem:[%s2405 + $0x101] sm:$0xff] %v2363
  %2421 = vst [vmem:[%s2405 + $0x111] sm:$0xff] %v2364
  %v2422 = vld [vmem:[#allocation3] sm:$0xff]
  %v2423 = vld [vmem:[#allocation3 + $0x10] sm:$0xff]
  %v2424 = vld [vmem:[#allocation3 + $0x20] sm:$0xff]
  %v2425 = vld [vmem:[#allocation3 + $0x30] sm:$0xff]
  %v2426 = vld [vmem:[#allocation3 + $0x40] sm:$0xff]
  %v2427 = vld [vmem:[#allocation3 + $0x50] sm:$0xff]
  %v2428 = vld [vmem:[#allocation3 + $0x60] sm:$0xff]
  %v2429 = vld [vmem:[#allocation3 + $0x70] sm:$0xff]
  %v2430 = vld [vmem:[#allocation3 + $0xa0] sm:$0xff]
  %v2431 = vld [vmem:[#allocation3 + $0xb0] sm:$0xff]
  %v2432 = vld [vmem:[#allocation3 + $0xc0] sm:$0xff]
  %v2433 = vld [vmem:[#allocation3 + $0xd0] sm:$0xff]
  %v2434 = vld [vmem:[#allocation3 + $0xe0] sm:$0xff]
  %v2435 = vld [vmem:[#allocation3 + $0xf0] sm:$0xff]
  %v2436 = vld [vmem:[#allocation3 + $0x100] sm:$0xff]
  %v2437 = vld [vmem:[#allocation3 + $0x110] sm:$0xff]
  %v2438 = vld [vmem:[%s4] sm:$0xff]
  %v2439 = vld [vmem:[%s4 + $0x8] sm:$0xff]
  %v2440 = vld [vmem:[%s4 + $0x10] sm:$0xff]
  %v2441 = vld [vmem:[%s4 + $0x18] sm:$0xff]
  %v2442 = vld [vmem:[%s4 + $0x20] sm:$0xff]
  %v2443 = vld [vmem:[%s4 + $0x28] sm:$0xff]
  %v2444 = vld [vmem:[%s4 + $0x30] sm:$0xff]
  %v2445 = vld [vmem:[%s4 + $0x38] sm:$0xff]
  %v2446 = vld [vmem:[%s4 + $0x40] sm:$0xff]
  %v2447 = vld [vmem:[%s4 + $0x48] sm:$0xff]
  %v2448 = vld [vmem:[%s4 + $0x50] sm:$0xff]
  %v2449 = vld [vmem:[%s4 + $0x58] sm:$0xff]
  %v2450 = vld [vmem:[%s4 + $0x60] sm:$0xff]
  %v2451 = vld [vmem:[%s4 + $0x68] sm:$0xff]
  %v2452 = vld [vmem:[%s4 + $0x70] sm:$0xff]
  %v2453 = vld [vmem:[%s4 + $0x78] sm:$0xff]
  %v2454 = vld [vmem:[#allocation3 + $0x1] sm:$0xff]
  %v2455 = vld [vmem:[#allocation3 + $0x11] sm:$0xff]
  %v2456 = vld [vmem:[#allocation3 + $0x21] sm:$0xff]
  %v2457 = vld [vmem:[#allocation3 + $0x31] sm:$0xff]
  %v2458 = vld [vmem:[#allocation3 + $0x41] sm:$0xff]
  %v2459 = vld [vmem:[#allocation3 + $0x51] sm:$0xff]
  %v2460 = vld [vmem:[#allocation3 + $0x61] sm:$0xff]
  %v2461 = vld [vmem:[#allocation3 + $0x71] sm:$0xff]
  %v2462 = vld [vmem:[#allocation3 + $0xa1] sm:$0xff]
  %v2463 = vld [vmem:[#allocation3 + $0xb1] sm:$0xff]
  %v2464 = vld [vmem:[#allocation3 + $0xc1] sm:$0xff]
  %v2465 = vld [vmem:[#allocation3 + $0xd1] sm:$0xff]
  %v2466 = vld [vmem:[#allocation3 + $0xe1] sm:$0xff]
  %v2467 = vld [vmem:[#allocation3 + $0xf1] sm:$0xff]
  %v2468 = vld [vmem:[#allocation3 + $0x101] sm:$0xff]
  %v2469 = vld [vmem:[#allocation3 + $0x111] sm:$0xff]
  %s2470 = scalar_lea.vmem %s4, 128
  %v2471 = vld [vmem:[%s2470] sm:$0xff]
  %v2472 = vld [vmem:[%s2470 + $0x8] sm:$0xff]
  %v2473 = vld [vmem:[%s2470 + $0x10] sm:$0xff]
  %v2474 = vld [vmem:[%s2470 + $0x18] sm:$0xff]
  %v2475 = vld [vmem:[%s2470 + $0x20] sm:$0xff]
  %v2476 = vld [vmem:[%s2470 + $0x28] sm:$0xff]
  %v2477 = vld [vmem:[%s2470 + $0x30] sm:$0xff]
  %v2478 = vld [vmem:[%s2470 + $0x38] sm:$0xff]
  %v2479 = vld [vmem:[%s2470 + $0x40] sm:$0xff]
  %v2480 = vld [vmem:[%s2470 + $0x48] sm:$0xff]
  %v2481 = vld [vmem:[%s2470 + $0x50] sm:$0xff]
  %v2482 = vld [vmem:[%s2470 + $0x58] sm:$0xff]
  %v2483 = vld [vmem:[%s2470 + $0x60] sm:$0xff]
  %v2484 = vld [vmem:[%s2470 + $0x68] sm:$0xff]
  %v2485 = vld [vmem:[%s2470 + $0x70] sm:$0xff]
  %v2486 = vld [vmem:[%s2470 + $0x78] sm:$0xff]
  %2487 = vmatprep.subr.mxu0 0.0
  %2488 = vmatpush1.msra.mxu0 %v2471
  %2489 = vmatprep.subr.mxu0 0.0
  %2490 = vmatpush1.msra.mxu0 %v2472
  %2491 = vmatprep.subr.mxu0 0.0
  %2492 = vmatpush1.msra.mxu0 %v2473
  %2493 = vmatprep.subr.mxu0 0.0
  %2494 = vmatpush1.msra.mxu0 %v2474
  %2495 = vmatprep.subr.mxu0 0.0
  %2496 = vmatpush1.msra.mxu0 %v2475
  %2497 = vmatprep.subr.mxu0 0.0
  %2498 = vmatpush1.msra.mxu0 %v2476
  %2499 = vmatprep.subr.mxu0 0.0
  %2500 = vmatpush1.msra.mxu0 %v2477
  %2501 = vmatprep.subr.mxu0 0.0
  %2502 = vmatpush1.msra.mxu0 %v2478
  %2503 = vmatprep.subr.mxu0 0.0
  %2504 = vmatpush1.msra.mxu0 %v2479
  %2505 = vmatprep.subr.mxu0 0.0
  %2506 = vmatpush1.msra.mxu0 %v2480
  %2507 = vmatprep.subr.mxu0 0.0
  %2508 = vmatpush1.msra.mxu0 %v2481
  %2509 = vmatprep.subr.mxu0 0.0
  %2510 = vmatpush1.msra.mxu0 %v2482
  %2511 = vmatprep.subr.mxu0 0.0
  %2512 = vmatpush1.msra.mxu0 %v2483
  %2513 = vmatprep.subr.mxu0 0.0
  %2514 = vmatpush1.msra.mxu0 %v2484
  %2515 = vmatprep.subr.mxu0 0.0
  %2516 = vmatpush1.msra.mxu0 %v2485
  %2517 = vmatprep.subr.mxu0 0.0
  %2518 = vmatpush1.msra.mxu0 %v2486
  %2519 = vmatprep.subr.mxu0 0.0
  %2520 = vmatpush1.msra.mxu0 0.0
  %2521 = vmatprep.subr.mxu0 0.0
  %2522 = vmatpush1.msra.mxu0 0.0
  %2523 = vmatprep.subr.mxu0 0.0
  %2524 = vmatpush1.msra.mxu0 0.0
  %2525 = vmatprep.subr.mxu0 0.0
  %2526 = vmatpush1.msra.mxu0 0.0
  %2527 = vmatprep.subr.mxu0 0.0
  %2528 = vmatpush1.msra.mxu0 0.0
  %2529 = vmatprep.subr.mxu0 0.0
  %2530 = vmatpush1.msra.mxu0 0.0
  %2531 = vmatprep.subr.mxu0 0.0
  %2532 = vmatpush1.msra.mxu0 0.0
  %2533 = vmatprep.subr.mxu0 0.0
  %2534 = vmatpush1.msra.mxu0 0.0
  %2535 = vmatprep.subr.mxu0 0.0
  %2536 = vmatpush1.msra.mxu0 0.0
  %2537 = vmatprep.subr.mxu0 0.0
  %2538 = vmatpush1.msra.mxu0 0.0
  %2539 = vmatprep.subr.mxu0 0.0
  %2540 = vmatpush1.msra.mxu0 0.0
  %2541 = vmatprep.subr.mxu0 0.0
  %2542 = vmatpush1.msra.mxu0 0.0
  %2543 = vmatprep.subr.mxu0 0.0
  %2544 = vmatpush1.msra.mxu0 0.0
  %2545 = vmatprep.subr.mxu0 0.0
  %2546 = vmatpush1.msra.mxu0 0.0
  %2547 = vmatprep.subr.mxu0 0.0
  %2548 = vmatpush1.msra.mxu0 0.0
  %2549 = vmatprep.subr.mxu0 0.0
  %2550 = vmatpush1.msra.mxu0 0.0
  %2551 = vmatprep.mubr.f32.mxu0 0.0
  %2552 = vmatmul.mubr.f32.gmra.mrb[0].mxu0 %v2454
  %v2553 = vpop.f32.mrb[0].mxu0
  %v2554 = vadd.f32 0.0, %v2553
  %v2555 = vpop.f32.mrb[0].mxu0
  %2556 = vmatprep.mubr.f32.mxu0 0.0
  %2557 = vmatmul.mubr.f32.gmra.mrb[0].mxu0 %v2455
  %v2558 = vpop.f32.mrb[0].mxu0
  %v2559 = vadd.f32 0.0, %v2558
  %v2560 = vpop.f32.mrb[0].mxu0
  %2561 = vmatprep.mubr.f32.mxu0 0.0
  %2562 = vmatmul.mubr.f32.gmra.mrb[0].mxu0 %v2456
  %v2563 = vpop.f32.mrb[0].mxu0
  %v2564 = vadd.f32 0.0, %v2563
  %v2565 = vpop.f32.mrb[0].mxu0
  %2566 = vmatprep.mubr.f32.mxu0 0.0
  %2567 = vmatmul.mubr.f32.gmra.mrb[0].mxu0 %v2457
  %v2568 = vpop.f32.mrb[0].mxu0
  %v2569 = vadd.f32 0.0, %v2568
  %v2570 = vpop.f32.mrb[0].mxu0
  %2571 = vmatprep.mubr.f32.mxu0 0.0
  %2572 = vmatmul.mubr.f32.gmra.mrb[0].mxu0 %v2458
  %v2573 = vpop.f32.mrb[0].mxu0
  %v2574 = vadd.f32 0.0, %v2573
  %v2575 = vpop.f32.mrb[0].mxu0
  %2576 = vmatprep.mubr.f32.mxu0 0.0
  %2577 = vmatmul.mubr.f32.gmra.mrb[0].mxu0 %v2459
  %v2578 = vpop.f32.mrb[0].mxu0
  %v2579 = vadd.f32 0.0, %v2578
  %v2580 = vpop.f32.mrb[0].mxu0
  %2581 = vmatprep.mubr.f32.mxu0 0.0
  %2582 = vmatmul.mubr.f32.gmra.mrb[0].mxu0 %v2460
  %v2583 = vpop.f32.mrb[0].mxu0
  %v2584 = vadd.f32 0.0, %v2583
  %v2585 = vpop.f32.mrb[0].mxu0
  %2586 = vmatprep.mubr.f32.mxu0 0.0
  %2587 = vmatmul.mubr.f32.gmra.mrb[0].mxu0 %v2461
  %v2588 = vpop.f32.mrb[0].mxu0
  %v2589 = vadd.f32 0.0, %v2588
  %v2590 = vpop.f32.mrb[0].mxu0
  %2591 = vmatprep.mubr.f32.mxu0 0.0
  %2592 = vmatmul.mubr.f32.gmra.mrb[0].mxu0 %v2462
  %v2593 = vpop.f32.mrb[0].mxu0
  %v2594 = vadd.f32 0.0, %v2593
  %v2595 = vpop.f32.mrb[0].mxu0
  %2596 = vmatprep.mubr.f32.mxu0 0.0
  %2597 = vmatmul.mubr.f32.gmra.mrb[0].mxu0 %v2463
  %v2598 = vpop.f32.mrb[0].mxu0
  %v2599 = vadd.f32 0.0, %v2598
  %v2600 = vpop.f32.mrb[0].mxu0
  %2601 = vmatprep.mubr.f32.mxu0 0.0
  %2602 = vmatmul.mubr.f32.gmra.mrb[0].mxu0 %v2464
  %v2603 = vpop.f32.mrb[0].mxu0
  %v2604 = vadd.f32 0.0, %v2603
  %v2605 = vpop.f32.mrb[0].mxu0
  %2606 = vmatprep.mubr.f32.mxu0 0.0
  %2607 = vmatmul.mubr.f32.gmra.mrb[0].mxu0 %v2465
  %v2608 = vpop.f32.mrb[0].mxu0
  %v2609 = vadd.f32 0.0, %v2608
  %v2610 = vpop.f32.mrb[0].mxu0
  %2611 = vmatprep.mubr.f32.mxu0 0.0
  %2612 = vmatmul.mubr.f32.gmra.mrb[0].mxu0 %v2466
  %v2613 = vpop.f32.mrb[0].mxu0
  %v2614 = vadd.f32 0.0, %v2613
  %v2615 = vpop.f32.mrb[0].mxu0
  %2616 = vmatprep.mubr.f32.mxu0 0.0
  %2617 = vmatmul.mubr.f32.gmra.mrb[0].mxu0 %v2467
  %v2618 = vpop.f32.mrb[0].mxu0
  %v2619 = vadd.f32 0.0, %v2618
  %v2620 = vpop.f32.mrb[0].mxu0
  %2621 = vmatprep.mubr.f32.mxu0 0.0
  %2622 = vmatmul.mubr.f32.gmra.mrb[0].mxu0 %v2468
  %v2623 = vpop.f32.mrb[0].mxu0
  %v2624 = vadd.f32 0.0, %v2623
  %v2625 = vpop.f32.mrb[0].mxu0
  %2626 = vmatprep.mubr.f32.mxu0 0.0
  %2627 = vmatmul.mubr.f32.gmra.mrb[0].mxu0 %v2469
  %v2628 = vpop.f32.mrb[0].mxu0
  %v2629 = vadd.f32 0.0, %v2628
  %v2630 = vpop.f32.mrb[0].mxu0
  %2631 = vdwg.mxu0
  %2632 = vmatprep.subr.mxu0 0.0
  %2633 = vmatpush1.msra.mxu0 %v2438
  %2634 = vmatprep.subr.mxu0 0.0
  %2635 = vmatpush1.msra.mxu0 %v2439
  %2636 = vmatprep.subr.mxu0 0.0
  %2637 = vmatpush1.msra.mxu0 %v2440
  %2638 = vmatprep.subr.mxu0 0.0
  %2639 = vmatpush1.msra.mxu0 %v2441
  %2640 = vmatprep.subr.mxu0 0.0
  %2641 = vmatpush1.msra.mxu0 %v2442
  %2642 = vmatprep.subr.mxu0 0.0
  %2643 = vmatpush1.msra.mxu0 %v2443
  %2644 = vmatprep.subr.mxu0 0.0
  %2645 = vmatpush1.msra.mxu0 %v2444
  %2646 = vmatprep.subr.mxu0 0.0
  %2647 = vmatpush1.msra.mxu0 %v2445
  %2648 = vmatprep.subr.mxu0 0.0
  %2649 = vmatpush1.msra.mxu0 %v2446
  %2650 = vmatprep.subr.mxu0 0.0
  %2651 = vmatpush1.msra.mxu0 %v2447
  %2652 = vmatprep.subr.mxu0 0.0
  %2653 = vmatpush1.msra.mxu0 %v2448
  %2654 = vmatprep.subr.mxu0 0.0
  %2655 = vmatpush1.msra.mxu0 %v2449
  %2656 = vmatprep.subr.mxu0 0.0
  %2657 = vmatpush1.msra.mxu0 %v2450
  %2658 = vmatprep.subr.mxu0 0.0
  %2659 = vmatpush1.msra.mxu0 %v2451
  %2660 = vmatprep.subr.mxu0 0.0
  %2661 = vmatpush1.msra.mxu0 %v2452
  %2662 = vmatprep.subr.mxu0 0.0
  %2663 = vmatpush1.msra.mxu0 %v2453
  %2664 = vmatprep.subr.mxu0 0.0
  %2665 = vmatpush1.msra.mxu0 0.0
  %2666 = vmatprep.subr.mxu0 0.0
  %2667 = vmatpush1.msra.mxu0 0.0
  %2668 = vmatprep.subr.mxu0 0.0
  %2669 = vmatpush1.msra.mxu0 0.0
  %2670 = vmatprep.subr.mxu0 0.0
  %2671 = vmatpush1.msra.mxu0 0.0
  %2672 = vmatprep.subr.mxu0 0.0
  %2673 = vmatpush1.msra.mxu0 0.0
  %2674 = vmatprep.subr.mxu0 0.0
  %2675 = vmatpush1.msra.mxu0 0.0
  %2676 = vmatprep.subr.mxu0 0.0
  %2677 = vmatpush1.msra.mxu0 0.0
  %2678 = vmatprep.subr.mxu0 0.0
  %2679 = vmatpush1.msra.mxu0 0.0
  %2680 = vmatprep.subr.mxu0 0.0
  %2681 = vmatpush1.msra.mxu0 0.0
  %2682 = vmatprep.subr.mxu0 0.0
  %2683 = vmatpush1.msra.mxu0 0.0
  %2684 = vmatprep.subr.mxu0 0.0
  %2685 = vmatpush1.msra.mxu0 0.0
  %2686 = vmatprep.subr.mxu0 0.0
  %2687 = vmatpush1.msra.mxu0 0.0
  %2688 = vmatprep.subr.mxu0 0.0
  %2689 = vmatpush1.msra.mxu0 0.0
  %2690 = vmatprep.subr.mxu0 0.0
  %2691 = vmatpush1.msra.mxu0 0.0
  %2692 = vmatprep.subr.mxu0 0.0
  %2693 = vmatpush1.msra.mxu0 0.0
  %2694 = vmatprep.subr.mxu0 0.0
  %2695 = vmatpush1.msra.mxu0 0.0
  %2696 = vmatprep.mubr.f32.mxu0 0.0
  %2697 = vmatmul.mubr.f32.gmra.mrb[0].mxu0 %v2422
  %v2698 = vpop.f32.mrb[0].mxu0
  %v2699 = vadd.f32 %v2554, %v2698
  %v2700 = vpop.f32.mrb[0].mxu0
  %2701 = vmatprep.mubr.f32.mxu0 0.0
  %2702 = vmatmul.mubr.f32.gmra.mrb[0].mxu0 %v2423
  %v2703 = vpop.f32.mrb[0].mxu0
  %v2704 = vadd.f32 %v2559, %v2703
  %v2705 = vpop.f32.mrb[0].mxu0
  %2706 = vmatprep.mubr.f32.mxu0 0.0
  %2707 = vmatmul.mubr.f32.gmra.mrb[0].mxu0 %v2424
  %v2708 = vpop.f32.mrb[0].mxu0
  %v2709 = vadd.f32 %v2564, %v2708
  %v2710 = vpop.f32.mrb[0].mxu0
  %2711 = vmatprep.mubr.f32.mxu0 0.0
  %2712 = vmatmul.mubr.f32.gmra.mrb[0].mxu0 %v2425
  %v2713 = vpop.f32.mrb[0].mxu0
  %v2714 = vadd.f32 %v2569, %v2713
  %v2715 = vpop.f32.mrb[0].mxu0
  %2716 = vmatprep.mubr.f32.mxu0 0.0
  %2717 = vmatmul.mubr.f32.gmra.mrb[0].mxu0 %v2426
  %v2718 = vpop.f32.mrb[0].mxu0
  %v2719 = vadd.f32 %v2574, %v2718
  %v2720 = vpop.f32.mrb[0].mxu0
  %2721 = vmatprep.mubr.f32.mxu0 0.0
  %2722 = vmatmul.mubr.f32.gmra.mrb[0].mxu0 %v2427
  %v2723 = vpop.f32.mrb[0].mxu0
  %v2724 = vadd.f32 %v2579, %v2723
  %v2725 = vpop.f32.mrb[0].mxu0
  %2726 = vmatprep.mubr.f32.mxu0 0.0
  %2727 = vmatmul.mubr.f32.gmra.mrb[0].mxu0 %v2428
  %v2728 = vpop.f32.mrb[0].mxu0
  %v2729 = vadd.f32 %v2584, %v2728
  %v2730 = vpop.f32.mrb[0].mxu0
  %2731 = vmatprep.mubr.f32.mxu0 0.0
  %2732 = vmatmul.mubr.f32.gmra.mrb[0].mxu0 %v2429
  %v2733 = vpop.f32.mrb[0].mxu0
  %v2734 = vadd.f32 %v2589, %v2733
  %v2735 = vpop.f32.mrb[0].mxu0
  %2736 = vmatprep.mubr.f32.mxu0 0.0
  %2737 = vmatmul.mubr.f32.gmra.mrb[0].mxu0 %v2430
  %v2738 = vpop.f32.mrb[0].mxu0
  %v2739 = vadd.f32 %v2594, %v2738
  %v2740 = vpop.f32.mrb[0].mxu0
  %2741 = vmatprep.mubr.f32.mxu0 0.0
  %2742 = vmatmul.mubr.f32.gmra.mrb[0].mxu0 %v2431
  %v2743 = vpop.f32.mrb[0].mxu0
  %v2744 = vadd.f32 %v2599, %v2743
  %v2745 = vpop.f32.mrb[0].mxu0
  %2746 = vmatprep.mubr.f32.mxu0 0.0
  %2747 = vmatmul.mubr.f32.gmra.mrb[0].mxu0 %v2432
  %v2748 = vpop.f32.mrb[0].mxu0
  %v2749 = vadd.f32 %v2604, %v2748
  %v2750 = vpop.f32.mrb[0].mxu0
  %2751 = vmatprep.mubr.f32.mxu0 0.0
  %2752 = vmatmul.mubr.f32.gmra.mrb[0].mxu0 %v2433
  %v2753 = vpop.f32.mrb[0].mxu0
  %v2754 = vadd.f32 %v2609, %v2753
  %v2755 = vpop.f32.mrb[0].mxu0
  %2756 = vmatprep.mubr.f32.mxu0 0.0
  %2757 = vmatmul.mubr.f32.gmra.mrb[0].mxu0 %v2434
  %v2758 = vpop.f32.mrb[0].mxu0
  %v2759 = vadd.f32 %v2614, %v2758
  %v2760 = vpop.f32.mrb[0].mxu0
  %2761 = vmatprep.mubr.f32.mxu0 0.0
  %2762 = vmatmul.mubr.f32.gmra.mrb[0].mxu0 %v2435
  %v2763 = vpop.f32.mrb[0].mxu0
  %v2764 = vadd.f32 %v2619, %v2763
  %v2765 = vpop.f32.mrb[0].mxu0
  %2766 = vmatprep.mubr.f32.mxu0 0.0
  %2767 = vmatmul.mubr.f32.gmra.mrb[0].mxu0 %v2436
  %v2768 = vpop.f32.mrb[0].mxu0
  %v2769 = vadd.f32 %v2624, %v2768
  %v2770 = vpop.f32.mrb[0].mxu0
  %2771 = vmatprep.mubr.f32.mxu0 0.0
  %2772 = vmatmul.mubr.f32.gmra.mrb[0].mxu0 %v2437
  %v2773 = vpop.f32.mrb[0].mxu0
  %v2774 = vadd.f32 %v2629, %v2773
  %v2775 = vpop.f32.mrb[0].mxu0
  %2776 = vdwg.mxu0
  %v2777 = vld [vmem:[#allocation3 + $0x2] sm:$0xff]
  %v2778 = vld [vmem:[#allocation3 + $0x12] sm:$0xff]
  %v2779 = vld [vmem:[#allocation3 + $0x22] sm:$0xff]
  %v2780 = vld [vmem:[#allocation3 + $0x32] sm:$0xff]
  %v2781 = vld [vmem:[#allocation3 + $0x42] sm:$0xff]
  %v2782 = vld [vmem:[#allocation3 + $0x52] sm:$0xff]
  %v2783 = vld [vmem:[#allocation3 + $0x62] sm:$0xff]
  %v2784 = vld [vmem:[#allocation3 + $0x72] sm:$0xff]
  %v2785 = vld [vmem:[#allocation3 + $0xa2] sm:$0xff]
  %v2786 = vld [vmem:[#allocation3 + $0xb2] sm:$0xff]
  %v2787 = vld [vmem:[#allocation3 + $0xc2] sm:$0xff]
  %v2788 = vld [vmem:[#allocation3 + $0xd2] sm:$0xff]
  %v2789 = vld [vmem:[#allocation3 + $0xe2] sm:$0xff]
  %v2790 = vld [vmem:[#allocation3 + $0xf2] sm:$0xff]
  %v2791 = vld [vmem:[#allocation3 + $0x102] sm:$0xff]
  %v2792 = vld [vmem:[#allocation3 + $0x112] sm:$0xff]
  %s2793 = scalar_lea.vmem %s4, 256
  %v2794 = vld [vmem:[%s2793] sm:$0xff]
  %v2795 = vld [vmem:[%s2793 + $0x8] sm:$0xff]
  %v2796 = vld [vmem:[%s2793 + $0x10] sm:$0xff]
  %v2797 = vld [vmem:[%s2793 + $0x18] sm:$0xff]
  %v2798 = vld [vmem:[%s2793 + $0x20] sm:$0xff]
  %v2799 = vld [vmem:[%s2793 + $0x28] sm:$0xff]
  %v2800 = vld [vmem:[%s2793 + $0x30] sm:$0xff]
  %v2801 = vld [vmem:[%s2793 + $0x38] sm:$0xff]
  %v2802 = vld [vmem:[%s2793 + $0x40] sm:$0xff]
  %v2803 = vld [vmem:[%s2793 + $0x48] sm:$0xff]
  %v2804 = vld [vmem:[%s2793 + $0x50] sm:$0xff]
  %v2805 = vld [vmem:[%s2793 + $0x58] sm:$0xff]
  %v2806 = vld [vmem:[%s2793 + $0x60] sm:$0xff]
  %v2807 = vld [vmem:[%s2793 + $0x68] sm:$0xff]
  %v2808 = vld [vmem:[%s2793 + $0x70] sm:$0xff]
  %v2809 = vld [vmem:[%s2793 + $0x78] sm:$0xff]
  %2810 = vmatprep.subr.mxu0 0.0
  %2811 = vmatpush1.msra.mxu0 %v2794
  %2812 = vmatprep.subr.mxu0 0.0
  %2813 = vmatpush1.msra.mxu0 %v2795
  %2814 = vmatprep.subr.mxu0 0.0
  %2815 = vmatpush1.msra.mxu0 %v2796
  %2816 = vmatprep.subr.mxu0 0.0
  %2817 = vmatpush1.msra.mxu0 %v2797
  %2818 = vmatprep.subr.mxu0 0.0
  %2819 = vmatpush1.msra.mxu0 %v2798
  %2820 = vmatprep.subr.mxu0 0.0
  %2821 = vmatpush1.msra.mxu0 %v2799
  %2822 = vmatprep.subr.mxu0 0.0
  %2823 = vmatpush1.msra.mxu0 %v2800
  %2824 = vmatprep.subr.mxu0 0.0
  %2825 = vmatpush1.msra.mxu0 %v2801
  %2826 = vmatprep.subr.mxu0 0.0
  %2827 = vmatpush1.msra.mxu0 %v2802
  %2828 = vmatprep.subr.mxu0 0.0
  %2829 = vmatpush1.msra.mxu0 %v2803
  %2830 = vmatprep.subr.mxu0 0.0
  %2831 = vmatpush1.msra.mxu0 %v2804
  %2832 = vmatprep.subr.mxu0 0.0
  %2833 = vmatpush1.msra.mxu0 %v2805
  %2834 = vmatprep.subr.mxu0 0.0
  %2835 = vmatpush1.msra.mxu0 %v2806
  %2836 = vmatprep.subr.mxu0 0.0
  %2837 = vmatpush1.msra.mxu0 %v2807
  %2838 = vmatprep.subr.mxu0 0.0
  %2839 = vmatpush1.msra.mxu0 %v2808
  %2840 = vmatprep.subr.mxu0 0.0
  %2841 = vmatpush1.msra.mxu0 %v2809
  %2842 = vmatprep.subr.mxu0 0.0
  %2843 = vmatpush1.msra.mxu0 0.0
  %2844 = vmatprep.subr.mxu0 0.0
  %2845 = vmatpush1.msra.mxu0 0.0
  %2846 = vmatprep.subr.mxu0 0.0
  %2847 = vmatpush1.msra.mxu0 0.0
  %2848 = vmatprep.subr.mxu0 0.0
  %2849 = vmatpush1.msra.mxu0 0.0
  %2850 = vmatprep.subr.mxu0 0.0
  %2851 = vmatpush1.msra.mxu0 0.0
  %2852 = vmatprep.subr.mxu0 0.0
  %2853 = vmatpush1.msra.mxu0 0.0
  %2854 = vmatprep.subr.mxu0 0.0
  %2855 = vmatpush1.msra.mxu0 0.0
  %2856 = vmatprep.subr.mxu0 0.0
  %2857 = vmatpush1.msra.mxu0 0.0
  %2858 = vmatprep.subr.mxu0 0.0
  %2859 = vmatpush1.msra.mxu0 0.0
  %2860 = vmatprep.subr.mxu0 0.0
  %2861 = vmatpush1.msra.mxu0 0.0
  %2862 = vmatprep.subr.mxu0 0.0
  %2863 = vmatpush1.msra.mxu0 0.0
  %2864 = vmatprep.subr.mxu0 0.0
  %2865 = vmatpush1.msra.mxu0 0.0
  %2866 = vmatprep.subr.mxu0 0.0
  %2867 = vmatpush1.msra.mxu0 0.0
  %2868 = vmatprep.subr.mxu0 0.0
  %2869 = vmatpush1.msra.mxu0 0.0
  %2870 = vmatprep.subr.mxu0 0.0
  %2871 = vmatpush1.msra.mxu0 0.0
  %2872 = vmatprep.subr.mxu0 0.0
  %2873 = vmatpush1.msra.mxu0 0.0
  %2874 = vmatprep.mubr.f32.mxu0 0.0
  %2875 = vmatmul.mubr.f32.gmra.mrb[0].mxu0 %v2777
  %v2876 = vpop.f32.mrb[0].mxu0
  %v2877 = vadd.f32 0.0, %v2876
  %v2878 = vpop.f32.mrb[0].mxu0
  %2879 = vmatprep.mubr.f32.mxu0 0.0
  %2880 = vmatmul.mubr.f32.gmra.mrb[0].mxu0 %v2778
  %v2881 = vpop.f32.mrb[0].mxu0
  %v2882 = vadd.f32 0.0, %v2881
  %v2883 = vpop.f32.mrb[0].mxu0
  %2884 = vmatprep.mubr.f32.mxu0 0.0
  %2885 = vmatmul.mubr.f32.gmra.mrb[0].mxu0 %v2779
  %v2886 = vpop.f32.mrb[0].mxu0
  %v2887 = vadd.f32 0.0, %v2886
  %v2888 = vpop.f32.mrb[0].mxu0
  %2889 = vmatprep.mubr.f32.mxu0 0.0
  %2890 = vmatmul.mubr.f32.gmra.mrb[0].mxu0 %v2780
  %v2891 = vpop.f32.mrb[0].mxu0
  %v2892 = vadd.f32 0.0, %v2891
  %v2893 = vpop.f32.mrb[0].mxu0
  %2894 = vmatprep.mubr.f32.mxu0 0.0
  %2895 = vmatmul.mubr.f32.gmra.mrb[0].mxu0 %v2781
  %v2896 = vpop.f32.mrb[0].mxu0
  %v2897 = vadd.f32 0.0, %v2896
  %v2898 = vpop.f32.mrb[0].mxu0
  %2899 = vmatprep.mubr.f32.mxu0 0.0
  %2900 = vmatmul.mubr.f32.gmra.mrb[0].mxu0 %v2782
  %v2901 = vpop.f32.mrb[0].mxu0
  %v2902 = vadd.f32 0.0, %v2901
  %v2903 = vpop.f32.mrb[0].mxu0
  %2904 = vmatprep.mubr.f32.mxu0 0.0
  %2905 = vmatmul.mubr.f32.gmra.mrb[0].mxu0 %v2783
  %v2906 = vpop.f32.mrb[0].mxu0
  %v2907 = vadd.f32 0.0, %v2906
  %v2908 = vpop.f32.mrb[0].mxu0
  %2909 = vmatprep.mubr.f32.mxu0 0.0
  %2910 = vmatmul.mubr.f32.gmra.mrb[0].mxu0 %v2784
  %v2911 = vpop.f32.mrb[0].mxu0
  %v2912 = vadd.f32 0.0, %v2911
  %v2913 = vpop.f32.mrb[0].mxu0
  %2914 = vmatprep.mubr.f32.mxu0 0.0
  %2915 = vmatmul.mubr.f32.gmra.mrb[0].mxu0 %v2785
  %v2916 = vpop.f32.mrb[0].mxu0
  %v2917 = vadd.f32 0.0, %v2916
  %v2918 = vpop.f32.mrb[0].mxu0
  %2919 = vmatprep.mubr.f32.mxu0 0.0
  %2920 = vmatmul.mubr.f32.gmra.mrb[0].mxu0 %v2786
  %v2921 = vpop.f32.mrb[0].mxu0
  %v2922 = vadd.f32 0.0, %v2921
  %v2923 = vpop.f32.mrb[0].mxu0
  %2924 = vmatprep.mubr.f32.mxu0 0.0
  %2925 = vmatmul.mubr.f32.gmra.mrb[0].mxu0 %v2787
  %v2926 = vpop.f32.mrb[0].mxu0
  %v2927 = vadd.f32 0.0, %v2926
  %v2928 = vpop.f32.mrb[0].mxu0
  %2929 = vmatprep.mubr.f32.mxu0 0.0
  %2930 = vmatmul.mubr.f32.gmra.mrb[0].mxu0 %v2788
  %v2931 = vpop.f32.mrb[0].mxu0
  %v2932 = vadd.f32 0.0, %v2931
  %v2933 = vpop.f32.mrb[0].mxu0
  %2934 = vmatprep.mubr.f32.mxu0 0.0
  %2935 = vmatmul.mubr.f32.gmra.mrb[0].mxu0 %v2789
  %v2936 = vpop.f32.mrb[0].mxu0
  %v2937 = vadd.f32 0.0, %v2936
  %v2938 = vpop.f32.mrb[0].mxu0
  %2939 = vmatprep.mubr.f32.mxu0 0.0
  %2940 = vmatmul.mubr.f32.gmra.mrb[0].mxu0 %v2790
  %v2941 = vpop.f32.mrb[0].mxu0
  %v2942 = vadd.f32 0.0, %v2941
  %v2943 = vpop.f32.mrb[0].mxu0
  %2944 = vmatprep.mubr.f32.mxu0 0.0
  %2945 = vmatmul.mubr.f32.gmra.mrb[0].mxu0 %v2791
  %v2946 = vpop.f32.mrb[0].mxu0
  %v2947 = vadd.f32 0.0, %v2946
  %v2948 = vpop.f32.mrb[0].mxu0
  %2949 = vmatprep.mubr.f32.mxu0 0.0
  %2950 = vmatmul.mubr.f32.gmra.mrb[0].mxu0 %v2792
  %v2951 = vpop.f32.mrb[0].mxu0
  %v2952 = vadd.f32 0.0, %v2951
  %v2953 = vpop.f32.mrb[0].mxu0
  %2954 = vdwg.mxu0
  %v2955 = vadd.f32 %v2699, %v2877
  %v2956 = vadd.f32 %v2704, %v2882
  %v2957 = vadd.f32 %v2709, %v2887
  %v2958 = vadd.f32 %v2714, %v2892
  %v2959 = vadd.f32 %v2719, %v2897
  %v2960 = vadd.f32 %v2724, %v2902
  %v2961 = vadd.f32 %v2729, %v2907
  %v2962 = vadd.f32 %v2734, %v2912
  %v2963 = vadd.f32 %v2739, %v2917
  %v2964 = vadd.f32 %v2744, %v2922
  %v2965 = vadd.f32 %v2749, %v2927
  %v2966 = vadd.f32 %v2754, %v2932
  %v2967 = vadd.f32 %v2759, %v2937
  %v2968 = vadd.f32 %v2764, %v2942
  %v2969 = vadd.f32 %v2769, %v2947
  %v2970 = vadd.f32 %v2774, %v2952
  %v2971 = vld [vmem:[%s2405] sm:$0xff]
  %v2972 = vld [vmem:[%s2405 + $0x10] sm:$0xff]
  %v2973 = vld [vmem:[%s2405 + $0x20] sm:$0xff]
  %v2974 = vld [vmem:[%s2405 + $0x30] sm:$0xff]
  %v2975 = vld [vmem:[%s2405 + $0x40] sm:$0xff]
  %v2976 = vld [vmem:[%s2405 + $0x50] sm:$0xff]
  %v2977 = vld [vmem:[%s2405 + $0x60] sm:$0xff]
  %v2978 = vld [vmem:[%s2405 + $0x70] sm:$0xff]
  %v2979 = vld [vmem:[%s2405 + $0xa0] sm:$0xff]
  %v2980 = vld [vmem:[%s2405 + $0xb0] sm:$0xff]
  %v2981 = vld [vmem:[%s2405 + $0xc0] sm:$0xff]
  %v2982 = vld [vmem:[%s2405 + $0xd0] sm:$0xff]
  %v2983 = vld [vmem:[%s2405 + $0xe0] sm:$0xff]
  %v2984 = vld [vmem:[%s2405 + $0xf0] sm:$0xff]
  %v2985 = vld [vmem:[%s2405 + $0x100] sm:$0xff]
  %v2986 = vld [vmem:[%s2405 + $0x110] sm:$0xff]
  %s2987 = scalar_lea.vmem %s4, 384
  %v2988 = vld [vmem:[%s2987] sm:$0xff]
  %v2989 = vld [vmem:[%s2987 + $0x8] sm:$0xff]
  %v2990 = vld [vmem:[%s2987 + $0x10] sm:$0xff]
  %v2991 = vld [vmem:[%s2987 + $0x18] sm:$0xff]
  %v2992 = vld [vmem:[%s2987 + $0x20] sm:$0xff]
  %v2993 = vld [vmem:[%s2987 + $0x28] sm:$0xff]
  %v2994 = vld [vmem:[%s2987 + $0x30] sm:$0xff]
  %v2995 = vld [vmem:[%s2987 + $0x38] sm:$0xff]
  %v2996 = vld [vmem:[%s2987 + $0x40] sm:$0xff]
  %v2997 = vld [vmem:[%s2987 + $0x48] sm:$0xff]
  %v2998 = vld [vmem:[%s2987 + $0x50] sm:$0xff]
  %v2999 = vld [vmem:[%s2987 + $0x58] sm:$0xff]
  %v3000 = vld [vmem:[%s2987 + $0x60] sm:$0xff]
  %v3001 = vld [vmem:[%s2987 + $0x68] sm:$0xff]
  %v3002 = vld [vmem:[%s2987 + $0x70] sm:$0xff]
  %v3003 = vld [vmem:[%s2987 + $0x78] sm:$0xff]
  %3004 = vmatprep.subr.mxu0 0.0
  %3005 = vmatpush1.msra.mxu0 %v2988
  %3006 = vmatprep.subr.mxu0 0.0
  %3007 = vmatpush1.msra.mxu0 %v2989
  %3008 = vmatprep.subr.mxu0 0.0
  %3009 = vmatpush1.msra.mxu0 %v2990
  %3010 = vmatprep.subr.mxu0 0.0
  %3011 = vmatpush1.msra.mxu0 %v2991
  %3012 = vmatprep.subr.mxu0 0.0
  %3013 = vmatpush1.msra.mxu0 %v2992
  %3014 = vmatprep.subr.mxu0 0.0
  %3015 = vmatpush1.msra.mxu0 %v2993
  %3016 = vmatprep.subr.mxu0 0.0
  %3017 = vmatpush1.msra.mxu0 %v2994
  %3018 = vmatprep.subr.mxu0 0.0
  %3019 = vmatpush1.msra.mxu0 %v2995
  %3020 = vmatprep.subr.mxu0 0.0
  %3021 = vmatpush1.msra.mxu0 %v2996
  %3022 = vmatprep.subr.mxu0 0.0
  %3023 = vmatpush1.msra.mxu0 %v2997
  %3024 = vmatprep.subr.mxu0 0.0
  %3025 = vmatpush1.msra.mxu0 %v2998
  %3026 = vmatprep.subr.mxu0 0.0
  %3027 = vmatpush1.msra.mxu0 %v2999
  %3028 = vmatprep.subr.mxu0 0.0
  %3029 = vmatpush1.msra.mxu0 %v3000
  %3030 = vmatprep.subr.mxu0 0.0
  %3031 = vmatpush1.msra.mxu0 %v3001
  %3032 = vmatprep.subr.mxu0 0.0
  %3033 = vmatpush1.msra.mxu0 %v3002
  %3034 = vmatprep.subr.mxu0 0.0
  %3035 = vmatpush1.msra.mxu0 %v3003
  %3036 = vmatprep.subr.mxu0 0.0
  %3037 = vmatpush1.msra.mxu0 0.0
  %3038 = vmatprep.subr.mxu0 0.0
  %3039 = vmatpush1.msra.mxu0 0.0
  %3040 = vmatprep.subr.mxu0 0.0
  %3041 = vmatpush1.msra.mxu0 0.0
  %3042 = vmatprep.subr.mxu0 0.0
  %3043 = vmatpush1.msra.mxu0 0.0
  %3044 = vmatprep.subr.mxu0 0.0
  %3045 = vmatpush1.msra.mxu0 0.0
  %3046 = vmatprep.subr.mxu0 0.0
  %3047 = vmatpush1.msra.mxu0 0.0
  %3048 = vmatprep.subr.mxu0 0.0
  %3049 = vmatpush1.msra.mxu0 0.0
  %3050 = vmatprep.subr.mxu0 0.0
  %3051 = vmatpush1.msra.mxu0 0.0
  %3052 = vmatprep.subr.mxu0 0.0
  %3053 = vmatpush1.msra.mxu0 0.0
  %3054 = vmatprep.subr.mxu0 0.0
  %3055 = vmatpush1.msra.mxu0 0.0
  %3056 = vmatprep.subr.mxu0 0.0
  %3057 = vmatpush1.msra.mxu0 0.0
  %3058 = vmatprep.subr.mxu0 0.0
  %3059 = vmatpush1.msra.mxu0 0.0
  %3060 = vmatprep.subr.mxu0 0.0
  %3061 = vmatpush1.msra.mxu0 0.0
  %3062 = vmatprep.subr.mxu0 0.0
  %3063 = vmatpush1.msra.mxu0 0.0
  %3064 = vmatprep.subr.mxu0 0.0
  %3065 = vmatpush1.msra.mxu0 0.0
  %3066 = vmatprep.subr.mxu0 0.0
  %3067 = vmatpush1.msra.mxu0 0.0
  %3068 = vmatprep.mubr.f32.mxu0 0.0
  %3069 = vmatmul.mubr.f32.gmra.mrb[0].mxu0 %v2971
  %v3070 = vpop.f32.mrb[0].mxu0
  %v3071 = vadd.f32 0.0, %v3070
  %v3072 = vpop.f32.mrb[0].mxu0
  %3073 = vmatprep.mubr.f32.mxu0 0.0
  %3074 = vmatmul.mubr.f32.gmra.mrb[0].mxu0 %v2972
  %v3075 = vpop.f32.mrb[0].mxu0
  %v3076 = vadd.f32 0.0, %v3075
  %v3077 = vpop.f32.mrb[0].mxu0
  %3078 = vmatprep.mubr.f32.mxu0 0.0
  %3079 = vmatmul.mubr.f32.gmra.mrb[0].mxu0 %v2973
  %v3080 = vpop.f32.mrb[0].mxu0
  %v3081 = vadd.f32 0.0, %v3080
  %v3082 = vpop.f32.mrb[0].mxu0
  %3083 = vmatprep.mubr.f32.mxu0 0.0
  %3084 = vmatmul.mubr.f32.gmra.mrb[0].mxu0 %v2974
  %v3085 = vpop.f32.mrb[0].mxu0
  %v3086 = vadd.f32 0.0, %v3085
  %v3087 = vpop.f32.mrb[0].mxu0
  %3088 = vmatprep.mubr.f32.mxu0 0.0
  %3089 = vmatmul.mubr.f32.gmra.mrb[0].mxu0 %v2975
  %v3090 = vpop.f32.mrb[0].mxu0
  %v3091 = vadd.f32 0.0, %v3090
  %v3092 = vpop.f32.mrb[0].mxu0
  %3093 = vmatprep.mubr.f32.mxu0 0.0
  %3094 = vmatmul.mubr.f32.gmra.mrb[0].mxu0 %v2976
  %v3095 = vpop.f32.mrb[0].mxu0
  %v3096 = vadd.f32 0.0, %v3095
  %v3097 = vpop.f32.mrb[0].mxu0
  %3098 = vmatprep.mubr.f32.mxu0 0.0
  %3099 = vmatmul.mubr.f32.gmra.mrb[0].mxu0 %v2977
  %v3100 = vpop.f32.mrb[0].mxu0
  %v3101 = vadd.f32 0.0, %v3100
  %v3102 = vpop.f32.mrb[0].mxu0
  %3103 = vmatprep.mubr.f32.mxu0 0.0
  %3104 = vmatmul.mubr.f32.gmra.mrb[0].mxu0 %v2978
  %v3105 = vpop.f32.mrb[0].mxu0
  %v3106 = vadd.f32 0.0, %v3105
  %v3107 = vpop.f32.mrb[0].mxu0
  %3108 = vmatprep.mubr.f32.mxu0 0.0
  %3109 = vmatmul.mubr.f32.gmra.mrb[0].mxu0 %v2979
  %v3110 = vpop.f32.mrb[0].mxu0
  %v3111 = vadd.f32 0.0, %v3110
  %v3112 = vpop.f32.mrb[0].mxu0
  %3113 = vmatprep.mubr.f32.mxu0 0.0
  %3114 = vmatmul.mubr.f32.gmra.mrb[0].mxu0 %v2980
  %v3115 = vpop.f32.mrb[0].mxu0
  %v3116 = vadd.f32 0.0, %v3115
  %v3117 = vpop.f32.mrb[0].mxu0
  %3118 = vmatprep.mubr.f32.mxu0 0.0
  %3119 = vmatmul.mubr.f32.gmra.mrb[0].mxu0 %v2981
  %v3120 = vpop.f32.mrb[0].mxu0
  %v3121 = vadd.f32 0.0, %v3120
  %v3122 = vpop.f32.mrb[0].mxu0
  %3123 = vmatprep.mubr.f32.mxu0 0.0
  %3124 = vmatmul.mubr.f32.gmra.mrb[0].mxu0 %v2982
  %v3125 = vpop.f32.mrb[0].mxu0
  %v3126 = vadd.f32 0.0, %v3125
  %v3127 = vpop.f32.mrb[0].mxu0
  %3128 = vmatprep.mubr.f32.mxu0 0.0
  %3129 = vmatmul.mubr.f32.gmra.mrb[0].mxu0 %v2983
  %v3130 = vpop.f32.mrb[0].mxu0
  %v3131 = vadd.f32 0.0, %v3130
  %v3132 = vpop.f32.mrb[0].mxu0
  %3133 = vmatprep.mubr.f32.mxu0 0.0
  %3134 = vmatmul.mubr.f32.gmra.mrb[0].mxu0 %v2984
  %v3135 = vpop.f32.mrb[0].mxu0
  %v3136 = vadd.f32 0.0, %v3135
  %v3137 = vpop.f32.mrb[0].mxu0
  %3138 = vmatprep.mubr.f32.mxu0 0.0
  %3139 = vmatmul.mubr.f32.gmra.mrb[0].mxu0 %v2985
  %v3140 = vpop.f32.mrb[0].mxu0
  %v3141 = vadd.f32 0.0, %v3140
  %v3142 = vpop.f32.mrb[0].mxu0
  %3143 = vmatprep.mubr.f32.mxu0 0.0
  %3144 = vmatmul.mubr.f32.gmra.mrb[0].mxu0 %v2986
  %v3145 = vpop.f32.mrb[0].mxu0
  %v3146 = vadd.f32 0.0, %v3145
  %v3147 = vpop.f32.mrb[0].mxu0
  %3148 = vdwg.mxu0
  %v3149 = vadd.f32 %v2955, %v3071
  %v3150 = vadd.f32 %v2956, %v3076
  %v3151 = vadd.f32 %v2957, %v3081
  %v3152 = vadd.f32 %v2958, %v3086
  %v3153 = vadd.f32 %v2959, %v3091
  %v3154 = vadd.f32 %v2960, %v3096
  %v3155 = vadd.f32 %v2961, %v3101
  %v3156 = vadd.f32 %v2962, %v3106
  %v3157 = vadd.f32 %v2963, %v3111
  %v3158 = vadd.f32 %v2964, %v3116
  %v3159 = vadd.f32 %v2965, %v3121
  %v3160 = vadd.f32 %v2966, %v3126
  %v3161 = vadd.f32 %v2967, %v3131
  %v3162 = vadd.f32 %v2968, %v3136
  %v3163 = vadd.f32 %v2969, %v3141
  %v3164 = vadd.f32 %v2970, %v3146
  %v3165 = vld [vmem:[%s2405 + $0x1] sm:$0xff]
  %v3166 = vld [vmem:[%s2405 + $0x11] sm:$0xff]
  %v3167 = vld [vmem:[%s2405 + $0x21] sm:$0xff]
  %v3168 = vld [vmem:[%s2405 + $0x31] sm:$0xff]
  %v3169 = vld [vmem:[%s2405 + $0x41] sm:$0xff]
  %v3170 = vld [vmem:[%s2405 + $0x51] sm:$0xff]
  %v3171 = vld [vmem:[%s2405 + $0x61] sm:$0xff]
  %v3172 = vld [vmem:[%s2405 + $0x71] sm:$0xff]
  %v3173 = vld [vmem:[%s2405 + $0xa1] sm:$0xff]
  %v3174 = vld [vmem:[%s2405 + $0xb1] sm:$0xff]
  %v3175 = vld [vmem:[%s2405 + $0xc1] sm:$0xff]
  %v3176 = vld [vmem:[%s2405 + $0xd1] sm:$0xff]
  %v3177 = vld [vmem:[%s2405 + $0xe1] sm:$0xff]
  %v3178 = vld [vmem:[%s2405 + $0xf1] sm:$0xff]
  %v3179 = vld [vmem:[%s2405 + $0x101] sm:$0xff]
  %v3180 = vld [vmem:[%s2405 + $0x111] sm:$0xff]
  %s3181 = scalar_lea.vmem %s4, 512
  %v3182 = vld [vmem:[%s3181] sm:$0xff]
  %v3183 = vld [vmem:[%s3181 + $0x8] sm:$0xff]
  %v3184 = vld [vmem:[%s3181 + $0x10] sm:$0xff]
  %v3185 = vld [vmem:[%s3181 + $0x18] sm:$0xff]
  %v3186 = vld [vmem:[%s3181 + $0x20] sm:$0xff]
  %v3187 = vld [vmem:[%s3181 + $0x28] sm:$0xff]
  %v3188 = vld [vmem:[%s3181 + $0x30] sm:$0xff]
  %v3189 = vld [vmem:[%s3181 + $0x38] sm:$0xff]
  %v3190 = vld [vmem:[%s3181 + $0x40] sm:$0xff]
  %v3191 = vld [vmem:[%s3181 + $0x48] sm:$0xff]
  %v3192 = vld [vmem:[%s3181 + $0x50] sm:$0xff]
  %v3193 = vld [vmem:[%s3181 + $0x58] sm:$0xff]
  %v3194 = vld [vmem:[%s3181 + $0x60] sm:$0xff]
  %v3195 = vld [vmem:[%s3181 + $0x68] sm:$0xff]
  %v3196 = vld [vmem:[%s3181 + $0x70] sm:$0xff]
  %v3197 = vld [vmem:[%s3181 + $0x78] sm:$0xff]
  %3198 = vmatprep.subr.mxu0 0.0
  %3199 = vmatpush1.msra.mxu0 %v3182
  %3200 = vmatprep.subr.mxu0 0.0
  %3201 = vmatpush1.msra.mxu0 %v3183
  %3202 = vmatprep.subr.mxu0 0.0
  %3203 = vmatpush1.msra.mxu0 %v3184
  %3204 = vmatprep.subr.mxu0 0.0
  %3205 = vmatpush1.msra.mxu0 %v3185
  %3206 = vmatprep.subr.mxu0 0.0
  %3207 = vmatpush1.msra.mxu0 %v3186
  %3208 = vmatprep.subr.mxu0 0.0
  %3209 = vmatpush1.msra.mxu0 %v3187
  %3210 = vmatprep.subr.mxu0 0.0
  %3211 = vmatpush1.msra.mxu0 %v3188
  %3212 = vmatprep.subr.mxu0 0.0
  %3213 = vmatpush1.msra.mxu0 %v3189
  %3214 = vmatprep.subr.mxu0 0.0
  %3215 = vmatpush1.msra.mxu0 %v3190
  %3216 = vmatprep.subr.mxu0 0.0
  %3217 = vmatpush1.msra.mxu0 %v3191
  %3218 = vmatprep.subr.mxu0 0.0
  %3219 = vmatpush1.msra.mxu0 %v3192
  %3220 = vmatprep.subr.mxu0 0.0
  %3221 = vmatpush1.msra.mxu0 %v3193
  %3222 = vmatprep.subr.mxu0 0.0
  %3223 = vmatpush1.msra.mxu0 %v3194
  %3224 = vmatprep.subr.mxu0 0.0
  %3225 = vmatpush1.msra.mxu0 %v3195
  %3226 = vmatprep.subr.mxu0 0.0
  %3227 = vmatpush1.msra.mxu0 %v3196
  %3228 = vmatprep.subr.mxu0 0.0
  %3229 = vmatpush1.msra.mxu0 %v3197
  %3230 = vmatprep.subr.mxu0 0.0
  %3231 = vmatpush1.msra.mxu0 0.0
  %3232 = vmatprep.subr.mxu0 0.0
  %3233 = vmatpush1.msra.mxu0 0.0
  %3234 = vmatprep.subr.mxu0 0.0
  %3235 = vmatpush1.msra.mxu0 0.0
  %3236 = vmatprep.subr.mxu0 0.0
  %3237 = vmatpush1.msra.mxu0 0.0
  %3238 = vmatprep.subr.mxu0 0.0
  %3239 = vmatpush1.msra.mxu0 0.0
  %3240 = vmatprep.subr.mxu0 0.0
  %3241 = vmatpush1.msra.mxu0 0.0
  %3242 = vmatprep.subr.mxu0 0.0
  %3243 = vmatpush1.msra.mxu0 0.0
  %3244 = vmatprep.subr.mxu0 0.0
  %3245 = vmatpush1.msra.mxu0 0.0
  %3246 = vmatprep.subr.mxu0 0.0
  %3247 = vmatpush1.msra.mxu0 0.0
  %3248 = vmatprep.subr.mxu0 0.0
  %3249 = vmatpush1.msra.mxu0 0.0
  %3250 = vmatprep.subr.mxu0 0.0
  %3251 = vmatpush1.msra.mxu0 0.0
  %3252 = vmatprep.subr.mxu0 0.0
  %3253 = vmatpush1.msra.mxu0 0.0
  %3254 = vmatprep.subr.mxu0 0.0
  %3255 = vmatpush1.msra.mxu0 0.0
  %3256 = vmatprep.subr.mxu0 0.0
  %3257 = vmatpush1.msra.mxu0 0.0
  %3258 = vmatprep.subr.mxu0 0.0
  %3259 = vmatpush1.msra.mxu0 0.0
  %3260 = vmatprep.subr.mxu0 0.0
  %3261 = vmatpush1.msra.mxu0 0.0
  %3262 = vmatprep.mubr.f32.mxu0 0.0
  %3263 = vmatmul.mubr.f32.gmra.mrb[0].mxu0 %v3165
  %v3264 = vpop.f32.mrb[0].mxu0
  %v3265 = vadd.f32 0.0, %v3264
  %v3266 = vpop.f32.mrb[0].mxu0
  %3267 = vmatprep.mubr.f32.mxu0 0.0
  %3268 = vmatmul.mubr.f32.gmra.mrb[0].mxu0 %v3166
  %v3269 = vpop.f32.mrb[0].mxu0
  %v3270 = vadd.f32 0.0, %v3269
  %v3271 = vpop.f32.mrb[0].mxu0
  %3272 = vmatprep.mubr.f32.mxu0 0.0
  %3273 = vmatmul.mubr.f32.gmra.mrb[0].mxu0 %v3167
  %v3274 = vpop.f32.mrb[0].mxu0
  %v3275 = vadd.f32 0.0, %v3274
  %v3276 = vpop.f32.mrb[0].mxu0
  %3277 = vmatprep.mubr.f32.mxu0 0.0
  %3278 = vmatmul.mubr.f32.gmra.mrb[0].mxu0 %v3168
  %v3279 = vpop.f32.mrb[0].mxu0
  %v3280 = vadd.f32 0.0, %v3279
  %v3281 = vpop.f32.mrb[0].mxu0
  %3282 = vmatprep.mubr.f32.mxu0 0.0
  %3283 = vmatmul.mubr.f32.gmra.mrb[0].mxu0 %v3169
  %v3284 = vpop.f32.mrb[0].mxu0
  %v3285 = vadd.f32 0.0, %v3284
  %v3286 = vpop.f32.mrb[0].mxu0
  %3287 = vmatprep.mubr.f32.mxu0 0.0
  %3288 = vmatmul.mubr.f32.gmra.mrb[0].mxu0 %v3170
  %v3289 = vpop.f32.mrb[0].mxu0
  %v3290 = vadd.f32 0.0, %v3289
  %v3291 = vpop.f32.mrb[0].mxu0
  %3292 = vmatprep.mubr.f32.mxu0 0.0
  %3293 = vmatmul.mubr.f32.gmra.mrb[0].mxu0 %v3171
  %v3294 = vpop.f32.mrb[0].mxu0
  %v3295 = vadd.f32 0.0, %v3294
  %v3296 = vpop.f32.mrb[0].mxu0
  %3297 = vmatprep.mubr.f32.mxu0 0.0
  %3298 = vmatmul.mubr.f32.gmra.mrb[0].mxu0 %v3172
  %v3299 = vpop.f32.mrb[0].mxu0
  %v3300 = vadd.f32 0.0, %v3299
  %v3301 = vpop.f32.mrb[0].mxu0
  %3302 = vmatprep.mubr.f32.mxu0 0.0
  %3303 = vmatmul.mubr.f32.gmra.mrb[0].mxu0 %v3173
  %v3304 = vpop.f32.mrb[0].mxu0
  %v3305 = vadd.f32 0.0, %v3304
  %v3306 = vpop.f32.mrb[0].mxu0
  %3307 = vmatprep.mubr.f32.mxu0 0.0
  %3308 = vmatmul.mubr.f32.gmra.mrb[0].mxu0 %v3174
  %v3309 = vpop.f32.mrb[0].mxu0
  %v3310 = vadd.f32 0.0, %v3309
  %v3311 = vpop.f32.mrb[0].mxu0
  %3312 = vmatprep.mubr.f32.mxu0 0.0
  %3313 = vmatmul.mubr.f32.gmra.mrb[0].mxu0 %v3175
  %v3314 = vpop.f32.mrb[0].mxu0
  %v3315 = vadd.f32 0.0, %v3314
  %v3316 = vpop.f32.mrb[0].mxu0
  %3317 = vmatprep.mubr.f32.mxu0 0.0
  %3318 = vmatmul.mubr.f32.gmra.mrb[0].mxu0 %v3176
  %v3319 = vpop.f32.mrb[0].mxu0
  %v3320 = vadd.f32 0.0, %v3319
  %v3321 = vpop.f32.mrb[0].mxu0
  %3322 = vmatprep.mubr.f32.mxu0 0.0
  %3323 = vmatmul.mubr.f32.gmra.mrb[0].mxu0 %v3177
  %v3324 = vpop.f32.mrb[0].mxu0
  %v3325 = vadd.f32 0.0, %v3324
  %v3326 = vpop.f32.mrb[0].mxu0
  %3327 = vmatprep.mubr.f32.mxu0 0.0
  %3328 = vmatmul.mubr.f32.gmra.mrb[0].mxu0 %v3178
  %v3329 = vpop.f32.mrb[0].mxu0
  %v3330 = vadd.f32 0.0, %v3329
  %v3331 = vpop.f32.mrb[0].mxu0
  %3332 = vmatprep.mubr.f32.mxu0 0.0
  %3333 = vmatmul.mubr.f32.gmra.mrb[0].mxu0 %v3179
  %v3334 = vpop.f32.mrb[0].mxu0
  %v3335 = vadd.f32 0.0, %v3334
  %v3336 = vpop.f32.mrb[0].mxu0
  %3337 = vmatprep.mubr.f32.mxu0 0.0
  %3338 = vmatmul.mubr.f32.gmra.mrb[0].mxu0 %v3180
  %v3339 = vpop.f32.mrb[0].mxu0
  %v3340 = vadd.f32 0.0, %v3339
  %v3341 = vpop.f32.mrb[0].mxu0
  %3342 = vdwg.mxu0
  %v3343 = vadd.f32 %v3149, %v3265
  %v3344 = vadd.f32 %v3150, %v3270
  %v3345 = vadd.f32 %v3151, %v3275
  %v3346 = vadd.f32 %v3152, %v3280
  %v3347 = vadd.f32 %v3153, %v3285
  %v3348 = vadd.f32 %v3154, %v3290
  %v3349 = vadd.f32 %v3155, %v3295
  %v3350 = vadd.f32 %v3156, %v3300
  %v3351 = vadd.f32 %v3157, %v3305
  %v3352 = vadd.f32 %v3158, %v3310
  %v3353 = vadd.f32 %v3159, %v3315
  %v3354 = vadd.f32 %v3160, %v3320
  %v3355 = vadd.f32 %v3161, %v3325
  %v3356 = vadd.f32 %v3162, %v3330
  %v3357 = vadd.f32 %v3163, %v3335
  %v3358 = vadd.f32 %v3164, %v3340
  %v3359 = vld [vmem:[%s2405 + $0x2] sm:$0xff]
  %v3360 = vld [vmem:[%s2405 + $0x12] sm:$0xff]
  %v3361 = vld [vmem:[%s2405 + $0x22] sm:$0xff]
  %v3362 = vld [vmem:[%s2405 + $0x32] sm:$0xff]
  %v3363 = vld [vmem:[%s2405 + $0x42] sm:$0xff]
  %v3364 = vld [vmem:[%s2405 + $0x52] sm:$0xff]
  %v3365 = vld [vmem:[%s2405 + $0x62] sm:$0xff]
  %v3366 = vld [vmem:[%s2405 + $0x72] sm:$0xff]
  %v3367 = vld [vmem:[%s2405 + $0xa2] sm:$0xff]
  %v3368 = vld [vmem:[%s2405 + $0xb2] sm:$0xff]
  %v3369 = vld [vmem:[%s2405 + $0xc2] sm:$0xff]
  %v3370 = vld [vmem:[%s2405 + $0xd2] sm:$0xff]
  %v3371 = vld [vmem:[%s2405 + $0xe2] sm:$0xff]
  %v3372 = vld [vmem:[%s2405 + $0xf2] sm:$0xff]
  %v3373 = vld [vmem:[%s2405 + $0x102] sm:$0xff]
  %v3374 = vld [vmem:[%s2405 + $0x112] sm:$0xff]
  %s3375 = scalar_lea.vmem %s4, 640
  %v3376 = vld [vmem:[%s3375] sm:$0xff]
  %v3377 = vld [vmem:[%s3375 + $0x8] sm:$0xff]
  %v3378 = vld [vmem:[%s3375 + $0x10] sm:$0xff]
  %v3379 = vld [vmem:[%s3375 + $0x18] sm:$0xff]
  %v3380 = vld [vmem:[%s3375 + $0x20] sm:$0xff]
  %v3381 = vld [vmem:[%s3375 + $0x28] sm:$0xff]
  %v3382 = vld [vmem:[%s3375 + $0x30] sm:$0xff]
  %v3383 = vld [vmem:[%s3375 + $0x38] sm:$0xff]
  %v3384 = vld [vmem:[%s3375 + $0x40] sm:$0xff]
  %v3385 = vld [vmem:[%s3375 + $0x48] sm:$0xff]
  %v3386 = vld [vmem:[%s3375 + $0x50] sm:$0xff]
  %v3387 = vld [vmem:[%s3375 + $0x58] sm:$0xff]
  %v3388 = vld [vmem:[%s3375 + $0x60] sm:$0xff]
  %v3389 = vld [vmem:[%s3375 + $0x68] sm:$0xff]
  %v3390 = vld [vmem:[%s3375 + $0x70] sm:$0xff]
  %v3391 = vld [vmem:[%s3375 + $0x78] sm:$0xff]
  %3392 = vmatprep.subr.mxu0 0.0
  %3393 = vmatpush1.msra.mxu0 %v3376
  %3394 = vmatprep.subr.mxu0 0.0
  %3395 = vmatpush1.msra.mxu0 %v3377
  %3396 = vmatprep.subr.mxu0 0.0
  %3397 = vmatpush1.msra.mxu0 %v3378
  %3398 = vmatprep.subr.mxu0 0.0
  %3399 = vmatpush1.msra.mxu0 %v3379
  %3400 = vmatprep.subr.mxu0 0.0
  %3401 = vmatpush1.msra.mxu0 %v3380
  %3402 = vmatprep.subr.mxu0 0.0
  %3403 = vmatpush1.msra.mxu0 %v3381
  %3404 = vmatprep.subr.mxu0 0.0
  %3405 = vmatpush1.msra.mxu0 %v3382
  %3406 = vmatprep.subr.mxu0 0.0
  %3407 = vmatpush1.msra.mxu0 %v3383
  %3408 = vmatprep.subr.mxu0 0.0
  %3409 = vmatpush1.msra.mxu0 %v3384
  %3410 = vmatprep.subr.mxu0 0.0
  %3411 = vmatpush1.msra.mxu0 %v3385
  %3412 = vmatprep.subr.mxu0 0.0
  %3413 = vmatpush1.msra.mxu0 %v3386
  %3414 = vmatprep.subr.mxu0 0.0
  %3415 = vmatpush1.msra.mxu0 %v3387
  %3416 = vmatprep.subr.mxu0 0.0
  %3417 = vmatpush1.msra.mxu0 %v3388
  %3418 = vmatprep.subr.mxu0 0.0
  %3419 = vmatpush1.msra.mxu0 %v3389
  %3420 = vmatprep.subr.mxu0 0.0
  %3421 = vmatpush1.msra.mxu0 %v3390
  %3422 = vmatprep.subr.mxu0 0.0
  %3423 = vmatpush1.msra.mxu0 %v3391
  %3424 = vmatprep.subr.mxu0 0.0
  %3425 = vmatpush1.msra.mxu0 0.0
  %3426 = vmatprep.subr.mxu0 0.0
  %3427 = vmatpush1.msra.mxu0 0.0
  %3428 = vmatprep.subr.mxu0 0.0
  %3429 = vmatpush1.msra.mxu0 0.0
  %3430 = vmatprep.subr.mxu0 0.0
  %3431 = vmatpush1.msra.mxu0 0.0
  %3432 = vmatprep.subr.mxu0 0.0
  %3433 = vmatpush1.msra.mxu0 0.0
  %3434 = vmatprep.subr.mxu0 0.0
  %3435 = vmatpush1.msra.mxu0 0.0
  %3436 = vmatprep.subr.mxu0 0.0
  %3437 = vmatpush1.msra.mxu0 0.0
  %3438 = vmatprep.subr.mxu0 0.0
  %3439 = vmatpush1.msra.mxu0 0.0
  %3440 = vmatprep.subr.mxu0 0.0
  %3441 = vmatpush1.msra.mxu0 0.0
  %3442 = vmatprep.subr.mxu0 0.0
  %3443 = vmatpush1.msra.mxu0 0.0
  %3444 = vmatprep.subr.mxu0 0.0
  %3445 = vmatpush1.msra.mxu0 0.0
  %3446 = vmatprep.subr.mxu0 0.0
  %3447 = vmatpush1.msra.mxu0 0.0
  %3448 = vmatprep.subr.mxu0 0.0
  %3449 = vmatpush1.msra.mxu0 0.0
  %3450 = vmatprep.subr.mxu0 0.0
  %3451 = vmatpush1.msra.mxu0 0.0
  %3452 = vmatprep.subr.mxu0 0.0
  %3453 = vmatpush1.msra.mxu0 0.0
  %3454 = vmatprep.subr.mxu0 0.0
  %3455 = vmatpush1.msra.mxu0 0.0
  %3456 = vmatprep.mubr.f32.mxu0 0.0
  %3457 = vmatmul.mubr.f32.gmra.mrb[0].mxu0 %v3359
  %v3458 = vpop.f32.mrb[0].mxu0
  %v3459 = vadd.f32 0.0, %v3458
  %v3460 = vpop.f32.mrb[0].mxu0
  %3461 = vmatprep.mubr.f32.mxu0 0.0
  %3462 = vmatmul.mubr.f32.gmra.mrb[0].mxu0 %v3360
  %v3463 = vpop.f32.mrb[0].mxu0
  %v3464 = vadd.f32 0.0, %v3463
  %v3465 = vpop.f32.mrb[0].mxu0
  %3466 = vmatprep.mubr.f32.mxu0 0.0
  %3467 = vmatmul.mubr.f32.gmra.mrb[0].mxu0 %v3361
  %v3468 = vpop.f32.mrb[0].mxu0
  %v3469 = vadd.f32 0.0, %v3468
  %v3470 = vpop.f32.mrb[0].mxu0
  %3471 = vmatprep.mubr.f32.mxu0 0.0
  %3472 = vmatmul.mubr.f32.gmra.mrb[0].mxu0 %v3362
  %v3473 = vpop.f32.mrb[0].mxu0
  %v3474 = vadd.f32 0.0, %v3473
  %v3475 = vpop.f32.mrb[0].mxu0
  %3476 = vmatprep.mubr.f32.mxu0 0.0
  %3477 = vmatmul.mubr.f32.gmra.mrb[0].mxu0 %v3363
  %v3478 = vpop.f32.mrb[0].mxu0
  %v3479 = vadd.f32 0.0, %v3478
  %v3480 = vpop.f32.mrb[0].mxu0
  %3481 = vmatprep.mubr.f32.mxu0 0.0
  %3482 = vmatmul.mubr.f32.gmra.mrb[0].mxu0 %v3364
  %v3483 = vpop.f32.mrb[0].mxu0
  %v3484 = vadd.f32 0.0, %v3483
  %v3485 = vpop.f32.mrb[0].mxu0
  %3486 = vmatprep.mubr.f32.mxu0 0.0
  %3487 = vmatmul.mubr.f32.gmra.mrb[0].mxu0 %v3365
  %v3488 = vpop.f32.mrb[0].mxu0
  %v3489 = vadd.f32 0.0, %v3488
  %v3490 = vpop.f32.mrb[0].mxu0
  %3491 = vmatprep.mubr.f32.mxu0 0.0
  %3492 = vmatmul.mubr.f32.gmra.mrb[0].mxu0 %v3366
  %v3493 = vpop.f32.mrb[0].mxu0
  %v3494 = vadd.f32 0.0, %v3493
  %v3495 = vpop.f32.mrb[0].mxu0
  %3496 = vmatprep.mubr.f32.mxu0 0.0
  %3497 = vmatmul.mubr.f32.gmra.mrb[0].mxu0 %v3367
  %v3498 = vpop.f32.mrb[0].mxu0
  %v3499 = vadd.f32 0.0, %v3498
  %v3500 = vpop.f32.mrb[0].mxu0
  %3501 = vmatprep.mubr.f32.mxu0 0.0
  %3502 = vmatmul.mubr.f32.gmra.mrb[0].mxu0 %v3368
  %v3503 = vpop.f32.mrb[0].mxu0
  %v3504 = vadd.f32 0.0, %v3503
  %v3505 = vpop.f32.mrb[0].mxu0
  %3506 = vmatprep.mubr.f32.mxu0 0.0
  %3507 = vmatmul.mubr.f32.gmra.mrb[0].mxu0 %v3369
  %v3508 = vpop.f32.mrb[0].mxu0
  %v3509 = vadd.f32 0.0, %v3508
  %v3510 = vpop.f32.mrb[0].mxu0
  %3511 = vmatprep.mubr.f32.mxu0 0.0
  %3512 = vmatmul.mubr.f32.gmra.mrb[0].mxu0 %v3370
  %v3513 = vpop.f32.mrb[0].mxu0
  %v3514 = vadd.f32 0.0, %v3513
  %v3515 = vpop.f32.mrb[0].mxu0
  %3516 = vmatprep.mubr.f32.mxu0 0.0
  %3517 = vmatmul.mubr.f32.gmra.mrb[0].mxu0 %v3371
  %v3518 = vpop.f32.mrb[0].mxu0
  %v3519 = vadd.f32 0.0, %v3518
  %v3520 = vpop.f32.mrb[0].mxu0
  %3521 = vmatprep.mubr.f32.mxu0 0.0
  %3522 = vmatmul.mubr.f32.gmra.mrb[0].mxu0 %v3372
  %v3523 = vpop.f32.mrb[0].mxu0
  %v3524 = vadd.f32 0.0, %v3523
  %v3525 = vpop.f32.mrb[0].mxu0
  %3526 = vmatprep.mubr.f32.mxu0 0.0
  %3527 = vmatmul.mubr.f32.gmra.mrb[0].mxu0 %v3373
  %v3528 = vpop.f32.mrb[0].mxu0
  %v3529 = vadd.f32 0.0, %v3528
  %v3530 = vpop.f32.mrb[0].mxu0
  %3531 = vmatprep.mubr.f32.mxu0 0.0
  %3532 = vmatmul.mubr.f32.gmra.mrb[0].mxu0 %v3374
  %v3533 = vpop.f32.mrb[0].mxu0
  %v3534 = vadd.f32 0.0, %v3533
  %v3535 = vpop.f32.mrb[0].mxu0
  %3536 = vdwg.mxu0
  %v3537 = vadd.f32 %v3343, %v3459
  %v3538 = vadd.f32 %v3344, %v3464
  %v3539 = vadd.f32 %v3345, %v3469
  %v3540 = vadd.f32 %v3346, %v3474
  %v3541 = vadd.f32 %v3347, %v3479
  %v3542 = vadd.f32 %v3348, %v3484
  %v3543 = vadd.f32 %v3349, %v3489
  %v3544 = vadd.f32 %v3350, %v3494
  %v3545 = vadd.f32 %v3351, %v3499
  %v3546 = vadd.f32 %v3352, %v3504
  %v3547 = vadd.f32 %v3353, %v3509
  %v3548 = vadd.f32 %v3354, %v3514
  %v3549 = vadd.f32 %v3355, %v3519
  %v3550 = vadd.f32 %v3356, %v3524
  %v3551 = vadd.f32 %v3357, %v3529
  %v3552 = vadd.f32 %v3358, %v3534
  %s3553 = scalar_lea.vmem [#allocation3], 32
  %v3554 = vld [vmem:[%s3553] sm:$0xff]
  %v3555 = vld [vmem:[%s3553 + $0x10] sm:$0xff]
  %v3556 = vld [vmem:[%s3553 + $0x20] sm:$0xff]
  %v3557 = vld [vmem:[%s3553 + $0x30] sm:$0xff]
  %v3558 = vld [vmem:[%s3553 + $0x40] sm:$0xff]
  %v3559 = vld [vmem:[%s3553 + $0x50] sm:$0xff]
  %v3560 = vld [vmem:[%s3553 + $0x60] sm:$0xff]
  %v3561 = vld [vmem:[%s3553 + $0x70] sm:$0xff]
  %v3562 = vld [vmem:[%s3553 + $0xa0] sm:$0xff]
  %v3563 = vld [vmem:[%s3553 + $0xb0] sm:$0xff]
  %v3564 = vld [vmem:[%s3553 + $0xc0] sm:$0xff]
  %v3565 = vld [vmem:[%s3553 + $0xd0] sm:$0xff]
  %v3566 = vld [vmem:[%s3553 + $0xe0] sm:$0xff]
  %v3567 = vld [vmem:[%s3553 + $0xf0] sm:$0xff]
  %v3568 = vld [vmem:[%s3553 + $0x100] sm:$0xff]
  %v3569 = vld [vmem:[%s3553 + $0x110] sm:$0xff]
  %s3570 = scalar_lea.vmem %s4, 768
  %v3571 = vld [vmem:[%s3570] sm:$0xff]
  %v3572 = vld [vmem:[%s3570 + $0x8] sm:$0xff]
  %v3573 = vld [vmem:[%s3570 + $0x10] sm:$0xff]
  %v3574 = vld [vmem:[%s3570 + $0x18] sm:$0xff]
  %v3575 = vld [vmem:[%s3570 + $0x20] sm:$0xff]
  %v3576 = vld [vmem:[%s3570 + $0x28] sm:$0xff]
  %v3577 = vld [vmem:[%s3570 + $0x30] sm:$0xff]
  %v3578 = vld [vmem:[%s3570 + $0x38] sm:$0xff]
  %v3579 = vld [vmem:[%s3570 + $0x40] sm:$0xff]
  %v3580 = vld [vmem:[%s3570 + $0x48] sm:$0xff]
  %v3581 = vld [vmem:[%s3570 + $0x50] sm:$0xff]
  %v3582 = vld [vmem:[%s3570 + $0x58] sm:$0xff]
  %v3583 = vld [vmem:[%s3570 + $0x60] sm:$0xff]
  %v3584 = vld [vmem:[%s3570 + $0x68] sm:$0xff]
  %v3585 = vld [vmem:[%s3570 + $0x70] sm:$0xff]
  %v3586 = vld [vmem:[%s3570 + $0x78] sm:$0xff]
  %3587 = vmatprep.subr.mxu0 0.0
  %3588 = vmatpush1.msra.mxu0 %v3571
  %3589 = vmatprep.subr.mxu0 0.0
  %3590 = vmatpush1.msra.mxu0 %v3572
  %3591 = vmatprep.subr.mxu0 0.0
  %3592 = vmatpush1.msra.mxu0 %v3573
  %3593 = vmatprep.subr.mxu0 0.0
  %3594 = vmatpush1.msra.mxu0 %v3574
  %3595 = vmatprep.subr.mxu0 0.0
  %3596 = vmatpush1.msra.mxu0 %v3575
  %3597 = vmatprep.subr.mxu0 0.0
  %3598 = vmatpush1.msra.mxu0 %v3576
  %3599 = vmatprep.subr.mxu0 0.0
  %3600 = vmatpush1.msra.mxu0 %v3577
  %3601 = vmatprep.subr.mxu0 0.0
  %3602 = vmatpush1.msra.mxu0 %v3578
  %3603 = vmatprep.subr.mxu0 0.0
  %3604 = vmatpush1.msra.mxu0 %v3579
  %3605 = vmatprep.subr.mxu0 0.0
  %3606 = vmatpush1.msra.mxu0 %v3580
  %3607 = vmatprep.subr.mxu0 0.0
  %3608 = vmatpush1.msra.mxu0 %v3581
  %3609 = vmatprep.subr.mxu0 0.0
  %3610 = vmatpush1.msra.mxu0 %v3582
  %3611 = vmatprep.subr.mxu0 0.0
  %3612 = vmatpush1.msra.mxu0 %v3583
  %3613 = vmatprep.subr.mxu0 0.0
  %3614 = vmatpush1.msra.mxu0 %v3584
  %3615 = vmatprep.subr.mxu0 0.0
  %3616 = vmatpush1.msra.mxu0 %v3585
  %3617 = vmatprep.subr.mxu0 0.0
  %3618 = vmatpush1.msra.mxu0 %v3586
  %3619 = vmatprep.subr.mxu0 0.0
  %3620 = vmatpush1.msra.mxu0 0.0
  %3621 = vmatprep.subr.mxu0 0.0
  %3622 = vmatpush1.msra.mxu0 0.0
  %3623 = vmatprep.subr.mxu0 0.0
  %3624 = vmatpush1.msra.mxu0 0.0
  %3625 = vmatprep.subr.mxu0 0.0
  %3626 = vmatpush1.msra.mxu0 0.0
  %3627 = vmatprep.subr.mxu0 0.0
  %3628 = vmatpush1.msra.mxu0 0.0
  %3629 = vmatprep.subr.mxu0 0.0
  %3630 = vmatpush1.msra.mxu0 0.0
  %3631 = vmatprep.subr.mxu0 0.0
  %3632 = vmatpush1.msra.mxu0 0.0
  %3633 = vmatprep.subr.mxu0 0.0
  %3634 = vmatpush1.msra.mxu0 0.0
  %3635 = vmatprep.subr.mxu0 0.0
  %3636 = vmatpush1.msra.mxu0 0.0
  %3637 = vmatprep.subr.mxu0 0.0
  %3638 = vmatpush1.msra.mxu0 0.0
  %3639 = vmatprep.subr.mxu0 0.0
  %3640 = vmatpush1.msra.mxu0 0.0
  %3641 = vmatprep.subr.mxu0 0.0
  %3642 = vmatpush1.msra.mxu0 0.0
  %3643 = vmatprep.subr.mxu0 0.0
  %3644 = vmatpush1.msra.mxu0 0.0
  %3645 = vmatprep.subr.mxu0 0.0
  %3646 = vmatpush1.msra.mxu0 0.0
  %3647 = vmatprep.subr.mxu0 0.0
  %3648 = vmatpush1.msra.mxu0 0.0
  %3649 = vmatprep.subr.mxu0 0.0
  %3650 = vmatpush1.msra.mxu0 0.0
  %3651 = vmatprep.mubr.f32.mxu0 0.0
  %3652 = vmatmul.mubr.f32.gmra.mrb[0].mxu0 %v3554
  %v3653 = vpop.f32.mrb[0].mxu0
  %v3654 = vadd.f32 0.0, %v3653
  %v3655 = vpop.f32.mrb[0].mxu0
  %3656 = vmatprep.mubr.f32.mxu0 0.0
  %3657 = vmatmul.mubr.f32.gmra.mrb[0].mxu0 %v3555
  %v3658 = vpop.f32.mrb[0].mxu0
  %v3659 = vadd.f32 0.0, %v3658
  %v3660 = vpop.f32.mrb[0].mxu0
  %3661 = vmatprep.mubr.f32.mxu0 0.0
  %3662 = vmatmul.mubr.f32.gmra.mrb[0].mxu0 %v3556
  %v3663 = vpop.f32.mrb[0].mxu0
  %v3664 = vadd.f32 0.0, %v3663
  %v3665 = vpop.f32.mrb[0].mxu0
  %3666 = vmatprep.mubr.f32.mxu0 0.0
  %3667 = vmatmul.mubr.f32.gmra.mrb[0].mxu0 %v3557
  %v3668 = vpop.f32.mrb[0].mxu0
  %v3669 = vadd.f32 0.0, %v3668
  %v3670 = vpop.f32.mrb[0].mxu0
  %3671 = vmatprep.mubr.f32.mxu0 0.0
  %3672 = vmatmul.mubr.f32.gmra.mrb[0].mxu0 %v3558
  %v3673 = vpop.f32.mrb[0].mxu0
  %v3674 = vadd.f32 0.0, %v3673
  %v3675 = vpop.f32.mrb[0].mxu0
  %3676 = vmatprep.mubr.f32.mxu0 0.0
  %3677 = vmatmul.mubr.f32.gmra.mrb[0].mxu0 %v3559
  %v3678 = vpop.f32.mrb[0].mxu0
  %v3679 = vadd.f32 0.0, %v3678
  %v3680 = vpop.f32.mrb[0].mxu0
  %3681 = vmatprep.mubr.f32.mxu0 0.0
  %3682 = vmatmul.mubr.f32.gmra.mrb[0].mxu0 %v3560
  %v3683 = vpop.f32.mrb[0].mxu0
  %v3684 = vadd.f32 0.0, %v3683
  %v3685 = vpop.f32.mrb[0].mxu0
  %3686 = vmatprep.mubr.f32.mxu0 0.0
  %3687 = vmatmul.mubr.f32.gmra.mrb[0].mxu0 %v3561
  %v3688 = vpop.f32.mrb[0].mxu0
  %v3689 = vadd.f32 0.0, %v3688
  %v3690 = vpop.f32.mrb[0].mxu0
  %3691 = vmatprep.mubr.f32.mxu0 0.0
  %3692 = vmatmul.mubr.f32.gmra.mrb[0].mxu0 %v3562
  %v3693 = vpop.f32.mrb[0].mxu0
  %v3694 = vadd.f32 0.0, %v3693
  %v3695 = vpop.f32.mrb[0].mxu0
  %3696 = vmatprep.mubr.f32.mxu0 0.0
  %3697 = vmatmul.mubr.f32.gmra.mrb[0].mxu0 %v3563
  %v3698 = vpop.f32.mrb[0].mxu0
  %v3699 = vadd.f32 0.0, %v3698
  %v3700 = vpop.f32.mrb[0].mxu0
  %3701 = vmatprep.mubr.f32.mxu0 0.0
  %3702 = vmatmul.mubr.f32.gmra.mrb[0].mxu0 %v3564
  %v3703 = vpop.f32.mrb[0].mxu0
  %v3704 = vadd.f32 0.0, %v3703
  %v3705 = vpop.f32.mrb[0].mxu0
  %3706 = vmatprep.mubr.f32.mxu0 0.0
  %3707 = vmatmul.mubr.f32.gmra.mrb[0].mxu0 %v3565
  %v3708 = vpop.f32.mrb[0].mxu0
  %v3709 = vadd.f32 0.0, %v3708
  %v3710 = vpop.f32.mrb[0].mxu0
  %3711 = vmatprep.mubr.f32.mxu0 0.0
  %3712 = vmatmul.mubr.f32.gmra.mrb[0].mxu0 %v3566
  %v3713 = vpop.f32.mrb[0].mxu0
  %v3714 = vadd.f32 0.0, %v3713
  %v3715 = vpop.f32.mrb[0].mxu0
  %3716 = vmatprep.mubr.f32.mxu0 0.0
  %3717 = vmatmul.mubr.f32.gmra.mrb[0].mxu0 %v3567
  %v3718 = vpop.f32.mrb[0].mxu0
  %v3719 = vadd.f32 0.0, %v3718
  %v3720 = vpop.f32.mrb[0].mxu0
  %3721 = vmatprep.mubr.f32.mxu0 0.0
  %3722 = vmatmul.mubr.f32.gmra.mrb[0].mxu0 %v3568
  %v3723 = vpop.f32.mrb[0].mxu0
  %v3724 = vadd.f32 0.0, %v3723
  %v3725 = vpop.f32.mrb[0].mxu0
  %3726 = vmatprep.mubr.f32.mxu0 0.0
  %3727 = vmatmul.mubr.f32.gmra.mrb[0].mxu0 %v3569
  %v3728 = vpop.f32.mrb[0].mxu0
  %v3729 = vadd.f32 0.0, %v3728
  %v3730 = vpop.f32.mrb[0].mxu0
  %3731 = vdwg.mxu0
  %v3732 = vadd.f32 %v3537, %v3654
  %v3733 = vadd.f32 %v3538, %v3659
  %v3734 = vadd.f32 %v3539, %v3664
  %v3735 = vadd.f32 %v3540, %v3669
  %v3736 = vadd.f32 %v3541, %v3674
  %v3737 = vadd.f32 %v3542, %v3679
  %v3738 = vadd.f32 %v3543, %v3684
  %v3739 = vadd.f32 %v3544, %v3689
  %v3740 = vadd.f32 %v3545, %v3694
  %v3741 = vadd.f32 %v3546, %v3699
  %v3742 = vadd.f32 %v3547, %v3704
  %v3743 = vadd.f32 %v3548, %v3709
  %v3744 = vadd.f32 %v3549, %v3714
  %v3745 = vadd.f32 %v3550, %v3719
  %v3746 = vadd.f32 %v3551, %v3724
  %v3747 = vadd.f32 %v3552, %v3729
  %v3748 = vld [vmem:[%s3553 + $0x1] sm:$0xff]
  %v3749 = vld [vmem:[%s3553 + $0x11] sm:$0xff]
  %v3750 = vld [vmem:[%s3553 + $0x21] sm:$0xff]
  %v3751 = vld [vmem:[%s3553 + $0x31] sm:$0xff]
  %v3752 = vld [vmem:[%s3553 + $0x41] sm:$0xff]
  %v3753 = vld [vmem:[%s3553 + $0x51] sm:$0xff]
  %v3754 = vld [vmem:[%s3553 + $0x61] sm:$0xff]
  %v3755 = vld [vmem:[%s3553 + $0x71] sm:$0xff]
  %v3756 = vld [vmem:[%s3553 + $0xa1] sm:$0xff]
  %v3757 = vld [vmem:[%s3553 + $0xb1] sm:$0xff]
  %v3758 = vld [vmem:[%s3553 + $0xc1] sm:$0xff]
  %v3759 = vld [vmem:[%s3553 + $0xd1] sm:$0xff]
  %v3760 = vld [vmem:[%s3553 + $0xe1] sm:$0xff]
  %v3761 = vld [vmem:[%s3553 + $0xf1] sm:$0xff]
  %v3762 = vld [vmem:[%s3553 + $0x101] sm:$0xff]
  %v3763 = vld [vmem:[%s3553 + $0x111] sm:$0xff]
  %s3764 = scalar_lea.vmem %s4, 896
  %v3765 = vld [vmem:[%s3764] sm:$0xff]
  %v3766 = vld [vmem:[%s3764 + $0x8] sm:$0xff]
  %v3767 = vld [vmem:[%s3764 + $0x10] sm:$0xff]
  %v3768 = vld [vmem:[%s3764 + $0x18] sm:$0xff]
  %v3769 = vld [vmem:[%s3764 + $0x20] sm:$0xff]
  %v3770 = vld [vmem:[%s3764 + $0x28] sm:$0xff]
  %v3771 = vld [vmem:[%s3764 + $0x30] sm:$0xff]
  %v3772 = vld [vmem:[%s3764 + $0x38] sm:$0xff]
  %v3773 = vld [vmem:[%s3764 + $0x40] sm:$0xff]
  %v3774 = vld [vmem:[%s3764 + $0x48] sm:$0xff]
  %v3775 = vld [vmem:[%s3764 + $0x50] sm:$0xff]
  %v3776 = vld [vmem:[%s3764 + $0x58] sm:$0xff]
  %v3777 = vld [vmem:[%s3764 + $0x60] sm:$0xff]
  %v3778 = vld [vmem:[%s3764 + $0x68] sm:$0xff]
  %v3779 = vld [vmem:[%s3764 + $0x70] sm:$0xff]
  %v3780 = vld [vmem:[%s3764 + $0x78] sm:$0xff]
  %3781 = vmatprep.subr.mxu0 0.0
  %3782 = vmatpush1.msra.mxu0 %v3765
  %3783 = vmatprep.subr.mxu0 0.0
  %3784 = vmatpush1.msra.mxu0 %v3766
  %3785 = vmatprep.subr.mxu0 0.0
  %3786 = vmatpush1.msra.mxu0 %v3767
  %3787 = vmatprep.subr.mxu0 0.0
  %3788 = vmatpush1.msra.mxu0 %v3768
  %3789 = vmatprep.subr.mxu0 0.0
  %3790 = vmatpush1.msra.mxu0 %v3769
  %3791 = vmatprep.subr.mxu0 0.0
  %3792 = vmatpush1.msra.mxu0 %v3770
  %3793 = vmatprep.subr.mxu0 0.0
  %3794 = vmatpush1.msra.mxu0 %v3771
  %3795 = vmatprep.subr.mxu0 0.0
  %3796 = vmatpush1.msra.mxu0 %v3772
  %3797 = vmatprep.subr.mxu0 0.0
  %3798 = vmatpush1.msra.mxu0 %v3773
  %3799 = vmatprep.subr.mxu0 0.0
  %3800 = vmatpush1.msra.mxu0 %v3774
  %3801 = vmatprep.subr.mxu0 0.0
  %3802 = vmatpush1.msra.mxu0 %v3775
  %3803 = vmatprep.subr.mxu0 0.0
  %3804 = vmatpush1.msra.mxu0 %v3776
  %3805 = vmatprep.subr.mxu0 0.0
  %3806 = vmatpush1.msra.mxu0 %v3777
  %3807 = vmatprep.subr.mxu0 0.0
  %3808 = vmatpush1.msra.mxu0 %v3778
  %3809 = vmatprep.subr.mxu0 0.0
  %3810 = vmatpush1.msra.mxu0 %v3779
  %3811 = vmatprep.subr.mxu0 0.0
  %3812 = vmatpush1.msra.mxu0 %v3780
  %3813 = vmatprep.subr.mxu0 0.0
  %3814 = vmatpush1.msra.mxu0 0.0
  %3815 = vmatprep.subr.mxu0 0.0
  %3816 = vmatpush1.msra.mxu0 0.0
  %3817 = vmatprep.subr.mxu0 0.0
  %3818 = vmatpush1.msra.mxu0 0.0
  %3819 = vmatprep.subr.mxu0 0.0
  %3820 = vmatpush1.msra.mxu0 0.0
  %3821 = vmatprep.subr.mxu0 0.0
  %3822 = vmatpush1.msra.mxu0 0.0
  %3823 = vmatprep.subr.mxu0 0.0
  %3824 = vmatpush1.msra.mxu0 0.0
  %3825 = vmatprep.subr.mxu0 0.0
  %3826 = vmatpush1.msra.mxu0 0.0
  %3827 = vmatprep.subr.mxu0 0.0
  %3828 = vmatpush1.msra.mxu0 0.0
  %3829 = vmatprep.subr.mxu0 0.0
  %3830 = vmatpush1.msra.mxu0 0.0
  %3831 = vmatprep.subr.mxu0 0.0
  %3832 = vmatpush1.msra.mxu0 0.0
  %3833 = vmatprep.subr.mxu0 0.0
  %3834 = vmatpush1.msra.mxu0 0.0
  %3835 = vmatprep.subr.mxu0 0.0
  %3836 = vmatpush1.msra.mxu0 0.0
  %3837 = vmatprep.subr.mxu0 0.0
  %3838 = vmatpush1.msra.mxu0 0.0
  %3839 = vmatprep.subr.mxu0 0.0
  %3840 = vmatpush1.msra.mxu0 0.0
  %3841 = vmatprep.subr.mxu0 0.0
  %3842 = vmatpush1.msra.mxu0 0.0
  %3843 = vmatprep.subr.mxu0 0.0
  %3844 = vmatpush1.msra.mxu0 0.0
  %3845 = vmatprep.mubr.f32.mxu0 0.0
  %3846 = vmatmul.mubr.f32.gmra.mrb[0].mxu0 %v3748
  %v3847 = vpop.f32.mrb[0].mxu0
  %v3848 = vadd.f32 0.0, %v3847
  %v3849 = vpop.f32.mrb[0].mxu0
  %3850 = vmatprep.mubr.f32.mxu0 0.0
  %3851 = vmatmul.mubr.f32.gmra.mrb[0].mxu0 %v3749
  %v3852 = vpop.f32.mrb[0].mxu0
  %v3853 = vadd.f32 0.0, %v3852
  %v3854 = vpop.f32.mrb[0].mxu0
  %3855 = vmatprep.mubr.f32.mxu0 0.0
  %3856 = vmatmul.mubr.f32.gmra.mrb[0].mxu0 %v3750
  %v3857 = vpop.f32.mrb[0].mxu0
  %v3858 = vadd.f32 0.0, %v3857
  %v3859 = vpop.f32.mrb[0].mxu0
  %3860 = vmatprep.mubr.f32.mxu0 0.0
  %3861 = vmatmul.mubr.f32.gmra.mrb[0].mxu0 %v3751
  %v3862 = vpop.f32.mrb[0].mxu0
  %v3863 = vadd.f32 0.0, %v3862
  %v3864 = vpop.f32.mrb[0].mxu0
  %3865 = vmatprep.mubr.f32.mxu0 0.0
  %3866 = vmatmul.mubr.f32.gmra.mrb[0].mxu0 %v3752
  %v3867 = vpop.f32.mrb[0].mxu0
  %v3868 = vadd.f32 0.0, %v3867
  %v3869 = vpop.f32.mrb[0].mxu0
  %3870 = vmatprep.mubr.f32.mxu0 0.0
  %3871 = vmatmul.mubr.f32.gmra.mrb[0].mxu0 %v3753
  %v3872 = vpop.f32.mrb[0].mxu0
  %v3873 = vadd.f32 0.0, %v3872
  %v3874 = vpop.f32.mrb[0].mxu0
  %3875 = vmatprep.mubr.f32.mxu0 0.0
  %3876 = vmatmul.mubr.f32.gmra.mrb[0].mxu0 %v3754
  %v3877 = vpop.f32.mrb[0].mxu0
  %v3878 = vadd.f32 0.0, %v3877
  %v3879 = vpop.f32.mrb[0].mxu0
  %3880 = vmatprep.mubr.f32.mxu0 0.0
  %3881 = vmatmul.mubr.f32.gmra.mrb[0].mxu0 %v3755
  %v3882 = vpop.f32.mrb[0].mxu0
  %v3883 = vadd.f32 0.0, %v3882
  %v3884 = vpop.f32.mrb[0].mxu0
  %3885 = vmatprep.mubr.f32.mxu0 0.0
  %3886 = vmatmul.mubr.f32.gmra.mrb[0].mxu0 %v3756
  %v3887 = vpop.f32.mrb[0].mxu0
  %v3888 = vadd.f32 0.0, %v3887
  %v3889 = vpop.f32.mrb[0].mxu0
  %3890 = vmatprep.mubr.f32.mxu0 0.0
  %3891 = vmatmul.mubr.f32.gmra.mrb[0].mxu0 %v3757
  %v3892 = vpop.f32.mrb[0].mxu0
  %v3893 = vadd.f32 0.0, %v3892
  %v3894 = vpop.f32.mrb[0].mxu0
  %3895 = vmatprep.mubr.f32.mxu0 0.0
  %3896 = vmatmul.mubr.f32.gmra.mrb[0].mxu0 %v3758
  %v3897 = vpop.f32.mrb[0].mxu0
  %v3898 = vadd.f32 0.0, %v3897
  %v3899 = vpop.f32.mrb[0].mxu0
  %3900 = vmatprep.mubr.f32.mxu0 0.0
  %3901 = vmatmul.mubr.f32.gmra.mrb[0].mxu0 %v3759
  %v3902 = vpop.f32.mrb[0].mxu0
  %v3903 = vadd.f32 0.0, %v3902
  %v3904 = vpop.f32.mrb[0].mxu0
  %3905 = vmatprep.mubr.f32.mxu0 0.0
  %3906 = vmatmul.mubr.f32.gmra.mrb[0].mxu0 %v3760
  %v3907 = vpop.f32.mrb[0].mxu0
  %v3908 = vadd.f32 0.0, %v3907
  %v3909 = vpop.f32.mrb[0].mxu0
  %3910 = vmatprep.mubr.f32.mxu0 0.0
  %3911 = vmatmul.mubr.f32.gmra.mrb[0].mxu0 %v3761
  %v3912 = vpop.f32.mrb[0].mxu0
  %v3913 = vadd.f32 0.0, %v3912
  %v3914 = vpop.f32.mrb[0].mxu0
  %3915 = vmatprep.mubr.f32.mxu0 0.0
  %3916 = vmatmul.mubr.f32.gmra.mrb[0].mxu0 %v3762
  %v3917 = vpop.f32.mrb[0].mxu0
  %v3918 = vadd.f32 0.0, %v3917
  %v3919 = vpop.f32.mrb[0].mxu0
  %3920 = vmatprep.mubr.f32.mxu0 0.0
  %3921 = vmatmul.mubr.f32.gmra.mrb[0].mxu0 %v3763
  %v3922 = vpop.f32.mrb[0].mxu0
  %v3923 = vadd.f32 0.0, %v3922
  %v3924 = vpop.f32.mrb[0].mxu0
  %3925 = vdwg.mxu0
  %v3926 = vadd.f32 %v3732, %v3848
  %v3927 = vadd.f32 %v3733, %v3853
  %v3928 = vadd.f32 %v3734, %v3858
  %v3929 = vadd.f32 %v3735, %v3863
  %v3930 = vadd.f32 %v3736, %v3868
  %v3931 = vadd.f32 %v3737, %v3873
  %v3932 = vadd.f32 %v3738, %v3878
  %v3933 = vadd.f32 %v3739, %v3883
  %v3934 = vadd.f32 %v3740, %v3888
  %v3935 = vadd.f32 %v3741, %v3893
  %v3936 = vadd.f32 %v3742, %v3898
  %v3937 = vadd.f32 %v3743, %v3903
  %v3938 = vadd.f32 %v3744, %v3908
  %v3939 = vadd.f32 %v3745, %v3913
  %v3940 = vadd.f32 %v3746, %v3918
  %v3941 = vadd.f32 %v3747, %v3923
  %v3942 = vld [vmem:[%s3553 + $0x2] sm:$0xff]
  %v3943 = vld [vmem:[%s3553 + $0x12] sm:$0xff]
  %v3944 = vld [vmem:[%s3553 + $0x22] sm:$0xff]
  %v3945 = vld [vmem:[%s3553 + $0x32] sm:$0xff]
  %v3946 = vld [vmem:[%s3553 + $0x42] sm:$0xff]
  %v3947 = vld [vmem:[%s3553 + $0x52] sm:$0xff]
  %v3948 = vld [vmem:[%s3553 + $0x62] sm:$0xff]
  %v3949 = vld [vmem:[%s3553 + $0x72] sm:$0xff]
  %v3950 = vld [vmem:[%s3553 + $0xa2] sm:$0xff]
  %v3951 = vld [vmem:[%s3553 + $0xb2] sm:$0xff]
  %v3952 = vld [vmem:[%s3553 + $0xc2] sm:$0xff]
  %v3953 = vld [vmem:[%s3553 + $0xd2] sm:$0xff]
  %v3954 = vld [vmem:[%s3553 + $0xe2] sm:$0xff]
  %v3955 = vld [vmem:[%s3553 + $0xf2] sm:$0xff]
  %v3956 = vld [vmem:[%s3553 + $0x102] sm:$0xff]
  %v3957 = vld [vmem:[%s3553 + $0x112] sm:$0xff]
  %s3958 = scalar_lea.vmem %s4, 1024
  %v3959 = vld [vmem:[%s3958] sm:$0xff]
  %v3960 = vld [vmem:[%s3958 + $0x8] sm:$0xff]
  %v3961 = vld [vmem:[%s3958 + $0x10] sm:$0xff]
  %v3962 = vld [vmem:[%s3958 + $0x18] sm:$0xff]
  %v3963 = vld [vmem:[%s3958 + $0x20] sm:$0xff]
  %v3964 = vld [vmem:[%s3958 + $0x28] sm:$0xff]
  %v3965 = vld [vmem:[%s3958 + $0x30] sm:$0xff]
  %v3966 = vld [vmem:[%s3958 + $0x38] sm:$0xff]
  %v3967 = vld [vmem:[%s3958 + $0x40] sm:$0xff]
  %v3968 = vld [vmem:[%s3958 + $0x48] sm:$0xff]
  %v3969 = vld [vmem:[%s3958 + $0x50] sm:$0xff]
  %v3970 = vld [vmem:[%s3958 + $0x58] sm:$0xff]
  %v3971 = vld [vmem:[%s3958 + $0x60] sm:$0xff]
  %v3972 = vld [vmem:[%s3958 + $0x68] sm:$0xff]
  %v3973 = vld [vmem:[%s3958 + $0x70] sm:$0xff]
  %v3974 = vld [vmem:[%s3958 + $0x78] sm:$0xff]
  %3975 = vmatprep.subr.mxu0 0.0
  %3976 = vmatpush1.msra.mxu0 %v3959
  %3977 = vmatprep.subr.mxu0 0.0
  %3978 = vmatpush1.msra.mxu0 %v3960
  %3979 = vmatprep.subr.mxu0 0.0
  %3980 = vmatpush1.msra.mxu0 %v3961
  %3981 = vmatprep.subr.mxu0 0.0
  %3982 = vmatpush1.msra.mxu0 %v3962
  %3983 = vmatprep.subr.mxu0 0.0
  %3984 = vmatpush1.msra.mxu0 %v3963
  %3985 = vmatprep.subr.mxu0 0.0
  %3986 = vmatpush1.msra.mxu0 %v3964
  %3987 = vmatprep.subr.mxu0 0.0
  %3988 = vmatpush1.msra.mxu0 %v3965
  %3989 = vmatprep.subr.mxu0 0.0
  %3990 = vmatpush1.msra.mxu0 %v3966
  %3991 = vmatprep.subr.mxu0 0.0
  %3992 = vmatpush1.msra.mxu0 %v3967
  %3993 = vmatprep.subr.mxu0 0.0
  %3994 = vmatpush1.msra.mxu0 %v3968
  %3995 = vmatprep.subr.mxu0 0.0
  %3996 = vmatpush1.msra.mxu0 %v3969
  %3997 = vmatprep.subr.mxu0 0.0
  %3998 = vmatpush1.msra.mxu0 %v3970
  %3999 = vmatprep.subr.mxu0 0.0
  %4000 = vmatpush1.msra.mxu0 %v3971
  %4001 = vmatprep.subr.mxu0 0.0
  %4002 = vmatpush1.msra.mxu0 %v3972
  %4003 = vmatprep.subr.mxu0 0.0
  %4004 = vmatpush1.msra.mxu0 %v3973
  %4005 = vmatprep.subr.mxu0 0.0
  %4006 = vmatpush1.msra.mxu0 %v3974
  %4007 = vmatprep.subr.mxu0 0.0
  %4008 = vmatpush1.msra.mxu0 0.0
  %4009 = vmatprep.subr.mxu0 0.0
  %4010 = vmatpush1.msra.mxu0 0.0
  %4011 = vmatprep.subr.mxu0 0.0
  %4012 = vmatpush1.msra.mxu0 0.0
  %4013 = vmatprep.subr.mxu0 0.0
  %4014 = vmatpush1.msra.mxu0 0.0
  %4015 = vmatprep.subr.mxu0 0.0
  %4016 = vmatpush1.msra.mxu0 0.0
  %4017 = vmatprep.subr.mxu0 0.0
  %4018 = vmatpush1.msra.mxu0 0.0
  %4019 = vmatprep.subr.mxu0 0.0
  %4020 = vmatpush1.msra.mxu0 0.0
  %4021 = vmatprep.subr.mxu0 0.0
  %4022 = vmatpush1.msra.mxu0 0.0
  %4023 = vmatprep.subr.mxu0 0.0
  %4024 = vmatpush1.msra.mxu0 0.0
  %4025 = vmatprep.subr.mxu0 0.0
  %4026 = vmatpush1.msra.mxu0 0.0
  %4027 = vmatprep.subr.mxu0 0.0
  %4028 = vmatpush1.msra.mxu0 0.0
  %4029 = vmatprep.subr.mxu0 0.0
  %4030 = vmatpush1.msra.mxu0 0.0
  %4031 = vmatprep.subr.mxu0 0.0
  %4032 = vmatpush1.msra.mxu0 0.0
  %4033 = vmatprep.subr.mxu0 0.0
  %4034 = vmatpush1.msra.mxu0 0.0
  %4035 = vmatprep.subr.mxu0 0.0
  %4036 = vmatpush1.msra.mxu0 0.0
  %4037 = vmatprep.subr.mxu0 0.0
  %4038 = vmatpush1.msra.mxu0 0.0
  %4039 = vmatprep.mubr.f32.mxu0 0.0
  %4040 = vmatmul.mubr.f32.gmra.mrb[0].mxu0 %v3942
  %v4041 = vpop.f32.mrb[0].mxu0
  %v4042 = vadd.f32 0.0, %v4041
  %v4043 = vpop.f32.mrb[0].mxu0
  %4044 = vmatprep.mubr.f32.mxu0 0.0
  %4045 = vmatmul.mubr.f32.gmra.mrb[0].mxu0 %v3943
  %v4046 = vpop.f32.mrb[0].mxu0
  %v4047 = vadd.f32 0.0, %v4046
  %v4048 = vpop.f32.mrb[0].mxu0
  %4049 = vmatprep.mubr.f32.mxu0 0.0
  %4050 = vmatmul.mubr.f32.gmra.mrb[0].mxu0 %v3944
  %v4051 = vpop.f32.mrb[0].mxu0
  %v4052 = vadd.f32 0.0, %v4051
  %v4053 = vpop.f32.mrb[0].mxu0
  %4054 = vmatprep.mubr.f32.mxu0 0.0
  %4055 = vmatmul.mubr.f32.gmra.mrb[0].mxu0 %v3945
  %v4056 = vpop.f32.mrb[0].mxu0
  %v4057 = vadd.f32 0.0, %v4056
  %v4058 = vpop.f32.mrb[0].mxu0
  %4059 = vmatprep.mubr.f32.mxu0 0.0
  %4060 = vmatmul.mubr.f32.gmra.mrb[0].mxu0 %v3946
  %v4061 = vpop.f32.mrb[0].mxu0
  %v4062 = vadd.f32 0.0, %v4061
  %v4063 = vpop.f32.mrb[0].mxu0
  %4064 = vmatprep.mubr.f32.mxu0 0.0
  %4065 = vmatmul.mubr.f32.gmra.mrb[0].mxu0 %v3947
  %v4066 = vpop.f32.mrb[0].mxu0
  %v4067 = vadd.f32 0.0, %v4066
  %v4068 = vpop.f32.mrb[0].mxu0
  %4069 = vmatprep.mubr.f32.mxu0 0.0
  %4070 = vmatmul.mubr.f32.gmra.mrb[0].mxu0 %v3948
  %v4071 = vpop.f32.mrb[0].mxu0
  %v4072 = vadd.f32 0.0, %v4071
  %v4073 = vpop.f32.mrb[0].mxu0
  %4074 = vmatprep.mubr.f32.mxu0 0.0
  %4075 = vmatmul.mubr.f32.gmra.mrb[0].mxu0 %v3949
  %v4076 = vpop.f32.mrb[0].mxu0
  %v4077 = vadd.f32 0.0, %v4076
  %v4078 = vpop.f32.mrb[0].mxu0
  %4079 = vmatprep.mubr.f32.mxu0 0.0
  %4080 = vmatmul.mubr.f32.gmra.mrb[0].mxu0 %v3950
  %v4081 = vpop.f32.mrb[0].mxu0
  %v4082 = vadd.f32 0.0, %v4081
  %v4083 = vpop.f32.mrb[0].mxu0
  %4084 = vmatprep.mubr.f32.mxu0 0.0
  %4085 = vmatmul.mubr.f32.gmra.mrb[0].mxu0 %v3951
  %v4086 = vpop.f32.mrb[0].mxu0
  %v4087 = vadd.f32 0.0, %v4086
  %v4088 = vpop.f32.mrb[0].mxu0
  %4089 = vmatprep.mubr.f32.mxu0 0.0
  %4090 = vmatmul.mubr.f32.gmra.mrb[0].mxu0 %v3952
  %v4091 = vpop.f32.mrb[0].mxu0
  %v4092 = vadd.f32 0.0, %v4091
  %v4093 = vpop.f32.mrb[0].mxu0
  %4094 = vmatprep.mubr.f32.mxu0 0.0
  %4095 = vmatmul.mubr.f32.gmra.mrb[0].mxu0 %v3953
  %v4096 = vpop.f32.mrb[0].mxu0
  %v4097 = vadd.f32 0.0, %v4096
  %v4098 = vpop.f32.mrb[0].mxu0
  %4099 = vmatprep.mubr.f32.mxu0 0.0
  %4100 = vmatmul.mubr.f32.gmra.mrb[0].mxu0 %v3954
  %v4101 = vpop.f32.mrb[0].mxu0
  %v4102 = vadd.f32 0.0, %v4101
  %v4103 = vpop.f32.mrb[0].mxu0
  %4104 = vmatprep.mubr.f32.mxu0 0.0
  %4105 = vmatmul.mubr.f32.gmra.mrb[0].mxu0 %v3955
  %v4106 = vpop.f32.mrb[0].mxu0
  %v4107 = vadd.f32 0.0, %v4106
  %v4108 = vpop.f32.mrb[0].mxu0
  %4109 = vmatprep.mubr.f32.mxu0 0.0
  %4110 = vmatmul.mubr.f32.gmra.mrb[0].mxu0 %v3956
  %v4111 = vpop.f32.mrb[0].mxu0
  %v4112 = vadd.f32 0.0, %v4111
  %v4113 = vpop.f32.mrb[0].mxu0
  %4114 = vmatprep.mubr.f32.mxu0 0.0
  %4115 = vmatmul.mubr.f32.gmra.mrb[0].mxu0 %v3957
  %v4116 = vpop.f32.mrb[0].mxu0
  %v4117 = vadd.f32 0.0, %v4116
  %v4118 = vpop.f32.mrb[0].mxu0
  %4119 = vdwg.mxu0
  %v4120 = vadd.f32 %v3926, %v4042
  %v4121 = vadd.f32 %v3927, %v4047
  %v4122 = vadd.f32 %v3928, %v4052
  %v4123 = vadd.f32 %v3929, %v4057
  %v4124 = vadd.f32 %v3930, %v4062
  %v4125 = vadd.f32 %v3931, %v4067
  %v4126 = vadd.f32 %v3932, %v4072
  %v4127 = vadd.f32 %v3933, %v4077
  %v4128 = vadd.f32 %v3934, %v4082
  %v4129 = vadd.f32 %v3935, %v4087
  %v4130 = vadd.f32 %v3936, %v4092
  %v4131 = vadd.f32 %v3937, %v4097
  %v4132 = vadd.f32 %v3938, %v4102
  %v4133 = vadd.f32 %v3939, %v4107
  %v4134 = vadd.f32 %v3940, %v4112
  %v4135 = vadd.f32 %v3941, %v4117
  %v4136 = vld [vmem:[%s5] sm:$0x1]
  %v4137 = vld [vmem:[%s6] sm:$0x1]
  %v4138 = vadd.f32 %v4120, %v4121
  %v4139 = vadd.f32 %v4138, %v4122
  %v4140 = vadd.f32 %v4139, %v4123
  %v4141 = vadd.f32 %v4140, %v4124
  %v4142 = vadd.f32 %v4141, %v4125
  %v4143 = vadd.f32 %v4142, %v4126
  %v4144 = vadd.f32 %v4143, %v4127
  %v4145 = vadd.f32 %v4144, %v4128
  %v4146 = vadd.f32 %v4145, %v4129
  %v4147 = vadd.f32 %v4146, %v4130
  %v4148 = vadd.f32 %v4147, %v4131
  %v4149 = vadd.f32 %v4148, %v4132
  %v4150 = vadd.f32 %v4149, %v4133
  %v4151 = vadd.f32 %v4150, %v4134
  %v4152 = vadd.f32 %v4151, %v4135
  %v4153 = vrot.slane %v4152, 4
  %v4154 = vadd.f32 %v4152, %v4153
  %v4155 = vrot.slane %v4154, 2
  %v4156 = vadd.f32 %v4154, %v4155
  %v4157 = vrot.slane %v4156, 1
  %v4158 = vadd.f32 %v4156, %v4157
  %v4159 = vmul.f32 %v4158, 0.0078125
  %v4160 = vmul.f32 %v4120, %v4120
  %v4161 = vmul.f32 %v4121, %v4121
  %v4162 = vmul.f32 %v4122, %v4122
  %v4163 = vmul.f32 %v4123, %v4123
  %v4164 = vmul.f32 %v4124, %v4124
  %v4165 = vmul.f32 %v4125, %v4125
  %v4166 = vmul.f32 %v4126, %v4126
  %v4167 = vmul.f32 %v4127, %v4127
  %v4168 = vmul.f32 %v4128, %v4128
  %v4169 = vmul.f32 %v4129, %v4129
  %v4170 = vmul.f32 %v4130, %v4130
  %v4171 = vmul.f32 %v4131, %v4131
  %v4172 = vmul.f32 %v4132, %v4132
  %v4173 = vmul.f32 %v4133, %v4133
  %v4174 = vmul.f32 %v4134, %v4134
  %v4175 = vmul.f32 %v4135, %v4135
  %v4176 = vadd.f32 %v4160, %v4161
  %v4177 = vadd.f32 %v4176, %v4162
  %v4178 = vadd.f32 %v4177, %v4163
  %v4179 = vadd.f32 %v4178, %v4164
  %v4180 = vadd.f32 %v4179, %v4165
  %v4181 = vadd.f32 %v4180, %v4166
  %v4182 = vadd.f32 %v4181, %v4167
  %v4183 = vadd.f32 %v4182, %v4168
  %v4184 = vadd.f32 %v4183, %v4169
  %v4185 = vadd.f32 %v4184, %v4170
  %v4186 = vadd.f32 %v4185, %v4171
  %v4187 = vadd.f32 %v4186, %v4172
  %v4188 = vadd.f32 %v4187, %v4173
  %v4189 = vadd.f32 %v4188, %v4174
  %v4190 = vadd.f32 %v4189, %v4175
  %v4191 = vrot.slane %v4190, 4
  %v4192 = vadd.f32 %v4190, %v4191
  %v4193 = vrot.slane %v4192, 2
  %v4194 = vadd.f32 %v4192, %v4193
  %v4195 = vrot.slane %v4194, 1
  %v4196 = vadd.f32 %v4194, %v4195
  %v4197 = vmul.f32 %v4196, 0.0078125
  %v4198 = vmul.f32 %v4159, %v4159
  %v4199 = vsub.f32 %v4197, %v4198
  %v4200 = vadd.f32 %v4199, 1e-05
  %v4201 = vrsqrt.pop %v4200
  %v4202 = vmul.f32 %v4136, %v4201
  %v4203 = vmul.f32 %v4159, %v4202
  %v4204 = vsub.f32 %v4137, %v4203
  %v4206 = vlaneseq
  %v4207 = vshrl.u32 %v4206, 7
  %v4208 = vsub.s32 0, %v4207
  %v4209 = vrot.slane %v4202, %v4208
  %v4211 = vmul.f32 %v4120, %v4209
  %v4212 = vmul.f32 %v4121, %v4209
  %v4213 = vmul.f32 %v4122, %v4209
  %v4214 = vmul.f32 %v4123, %v4209
  %v4215 = vmul.f32 %v4124, %v4209
  %v4216 = vmul.f32 %v4125, %v4209
  %v4217 = vmul.f32 %v4126, %v4209
  %v4218 = vmul.f32 %v4127, %v4209
  %v4219 = vmul.f32 %v4128, %v4209
  %v4220 = vmul.f32 %v4129, %v4209
  %v4221 = vmul.f32 %v4130, %v4209
  %v4222 = vmul.f32 %v4131, %v4209
  %v4223 = vmul.f32 %v4132, %v4209
  %v4224 = vmul.f32 %v4133, %v4209
  %v4225 = vmul.f32 %v4134, %v4209
  %v4226 = vmul.f32 %v4135, %v4209
  %v4228 = vlaneseq
  %v4229 = vshrl.u32 %v4228, 7
  %v4230 = vsub.s32 0, %v4229
  %v4231 = vrot.slane %v4204, %v4230
  %v4233 = vadd.f32 %v4211, %v4231
  %v4234 = vadd.f32 %v4212, %v4231
  %v4235 = vadd.f32 %v4213, %v4231
  %v4236 = vadd.f32 %v4214, %v4231
  %v4237 = vadd.f32 %v4215, %v4231
  %v4238 = vadd.f32 %v4216, %v4231
  %v4239 = vadd.f32 %v4217, %v4231
  %v4240 = vadd.f32 %v4218, %v4231
  %v4241 = vadd.f32 %v4219, %v4231
  %v4242 = vadd.f32 %v4220, %v4231
  %v4243 = vadd.f32 %v4221, %v4231
  %v4244 = vadd.f32 %v4222, %v4231
  %v4245 = vadd.f32 %v4223, %v4231
  %v4246 = vadd.f32 %v4224, %v4231
  %v4247 = vadd.f32 %v4225, %v4231
  %v4248 = vadd.f32 %v4226, %v4231
  %v4249 = vmax.f32 %v4233, 0.0
  %v4250 = vmax.f32 %v4234, 0.0
  %v4251 = vmax.f32 %v4235, 0.0
  %v4252 = vmax.f32 %v4236, 0.0
  %v4253 = vmax.f32 %v4237, 0.0
  %v4254 = vmax.f32 %v4238, 0.0
  %v4255 = vmax.f32 %v4239, 0.0
  %v4256 = vmax.f32 %v4240, 0.0
  %v4257 = vmax.f32 %v4241, 0.0
  %v4258 = vmax.f32 %v4242, 0.0
  %v4259 = vmax.f32 %v4243, 0.0
  %v4260 = vmax.f32 %v4244, 0.0
  %v4261 = vmax.f32 %v4245, 0.0
  %v4262 = vmax.f32 %v4246, 0.0
  %v4263 = vmax.f32 %v4247, 0.0
  %v4264 = vmax.f32 %v4248, 0.0
  %4265 = vst [vmem:[%s7] sm:$0xff] %v4249
  %4266 = vst [vmem:[%s7 + $0x8] sm:$0xff] %v4250
  %4267 = vst [vmem:[%s7 + $0x10] sm:$0xff] %v4251
  %4268 = vst [vmem:[%s7 + $0x18] sm:$0xff] %v4252
  %4269 = vst [vmem:[%s7 + $0x20] sm:$0xff] %v4253
  %4270 = vst [vmem:[%s7 + $0x28] sm:$0xff] %v4254
  %4271 = vst [vmem:[%s7 + $0x30] sm:$0xff] %v4255
  %4272 = vst [vmem:[%s7 + $0x38] sm:$0xff] %v4256
  %4273 = vst [vmem:[%s7 + $0x40] sm:$0xff] %v4257
  %4274 = vst [vmem:[%s7 + $0x48] sm:$0xff] %v4258
  %4275 = vst [vmem:[%s7 + $0x50] sm:$0xff] %v4259
  %4276 = vst [vmem:[%s7 + $0x58] sm:$0xff] %v4260
  %4277 = vst [vmem:[%s7 + $0x60] sm:$0xff] %v4261
  %4278 = vst [vmem:[%s7 + $0x68] sm:$0xff] %v4262
  %4279 = vst [vmem:[%s7 + $0x70] sm:$0xff] %v4263
  %4280 = vst [vmem:[%s7 + $0x78] sm:$0xff] %v4264
  // Predicated region
  $region30: #{encoder_forward.1} parent=0 // pred_check
    _
  $region31: #{encoder_forward.1} parent=0 // pred_check_branch
    %4282 = sbr.rel (0) target = $region33
  $region32: #{encoder_forward.1} parent=0 // pred_region
    _
  $region33: #{encoder_forward.1} parent=0 // pred_fallthru
    _
  // Predicated region
  $region34: #{encoder_forward.1} parent=0 // pred_check
    _
  $region35: #{encoder_forward.1} parent=0 // pred_check_branch
    %4284 = sbr.rel (0) target = $region37
  $region36: #{encoder_forward.1} parent=0 // pred_region
    _
  $region37: #{encoder_forward.1} parent=0 // pred_fallthru
    _

</llo_original>
